<compile_context>
chip_gen: v7x
topology: tpu7x:2x2x1
jax: 0.10.0
libtpu: 0.0.40
codegen_flags: <defaults>
</compile_context>

<pallas_src>
import jax
import jax.numpy as jnp
from jax.experimental import pallas as pl
from jax.experimental.pallas import tpu as pltpu


def _round_up(x, m):
    return ((x + m - 1) // m) * m


# ----------------------------------------------------------------------------
# Fused 5-layer MLP kernel (all weights resident in VMEM)
# ----------------------------------------------------------------------------
def _mlp_kernel(x_ref,
                w0_ref, s0_ref, w1_ref, s1_ref, w2_ref, s2_ref,
                w3_ref, s3_ref, w4_ref, s4_ref,
                o_ref):
    h = x_ref[...]                                     # bf16 (tm, K_pad)
    for w_ref, s_ref in ((w0_ref, s0_ref), (w1_ref, s1_ref),
                         (w2_ref, s2_ref), (w3_ref, s3_ref)):
        z = jnp.dot(h, w_ref[...], preferred_element_type=jnp.float32)
        z = jnp.maximum(z + s_ref[...], 0.0)           # folded BN shift + ReLU
        h = z.astype(jnp.bfloat16)
    z = jnp.dot(h, w4_ref[...], preferred_element_type=jnp.float32) + s4_ref[...]
    o_ref[...] = z.astype(o_ref.dtype)


def fused_mlp(x, layers):
    """x: (M, K) f32.  layers: list of 5 (bf16 weight (in,out), f32 shift (1,out))."""
    M, K = x.shape
    N_out = layers[-1][0].shape[1]

    # Batch tiling (sublane granularity 16 for bf16 activations), capped at 128.
    tm = min(_round_up(max(M, 1), 16), 128)
    M_pad = _round_up(M, tm)
    K_pad = _round_up(K, 128)
    N_pad = _round_up(N_out, 128)

    x_p = jnp.zeros((M_pad, K_pad), jnp.bfloat16).at[:M, :K].set(
        x.astype(jnp.bfloat16))

    # Pad first-layer input rows (zero rows are no-ops) and last-layer output
    # columns (sliced off after the call) to lane-aligned shapes.
    w0, s0 = layers[0]
    w0 = jnp.zeros((K_pad, w0.shape[1]), w0.dtype).at[:K, :].set(w0)
    w4, s4 = layers[4]
    w4 = jnp.zeros((w4.shape[0], N_pad), w4.dtype).at[:, :N_out].set(w4)
    s4 = jnp.zeros((1, N_pad), s4.dtype).at[:, :N_out].set(s4)
    padded = [(w0, s0), layers[1], layers[2], layers[3], (w4, s4)]

    flat_args = [x_p]
    in_specs = [pl.BlockSpec((tm, K_pad), lambda i: (i, 0))]
    for w, s in padded:
        flat_args += [w, s]
        in_specs += [pl.BlockSpec(w.shape, lambda i: (0, 0)),   # resident weight
                     pl.BlockSpec(s.shape, lambda i: (0, 0))]   # resident shift

    out = pl.pallas_call(
        _mlp_kernel,
        out_shape=jax.ShapeDtypeStruct((M_pad, N_pad), jnp.float32),
        grid_spec=pltpu.PrefetchScalarGridSpec(
            num_scalar_prefetch=0,
            grid=(M_pad // tm,),
            in_specs=in_specs,
            out_specs=pl.BlockSpec((tm, N_pad), lambda i: (i, 0)),
        ),
        compiler_params=pltpu.CompilerParams(
            dimension_semantics=("parallel",),
            vmem_limit_bytes=32 * 1024 * 1024),
    )(*flat_args)
    return out[:M, :N_out]


# ----------------------------------------------------------------------------
# Parameter construction (deterministic, mimics the torch module's shapes)
# ----------------------------------------------------------------------------
def init_params(key, input_dim, output_dim):
    dims = [input_dim, 1024, 512, 512, 1024, output_dim]
    params = []
    for li in range(5):
        fan_in, fan_out = dims[li], dims[li + 1]
        key, kw, kb = jax.random.split(key, 3)
        bound = 1.0 / jnp.sqrt(fan_in)
        w = jax.random.uniform(kw, (fan_in, fan_out), jnp.float32, -bound, bound)
        b = jax.random.uniform(kb, (fan_out,), jnp.float32, -bound, bound)
        layer = {"w": w, "b": b}
        if li < 4:  # layers followed by BatchNorm1d
            key, kg, kbe, km, kv = jax.random.split(key, 5)
            layer["gamma"] = 1.0 + 0.1 * jax.random.normal(kg, (fan_out,), jnp.float32)
            layer["beta"] = 0.1 * jax.random.normal(kbe, (fan_out,), jnp.float32)
            layer["running_mean"] = 0.1 * jax.random.normal(km, (fan_out,), jnp.float32)
            layer["running_var"] = 1.0 + 0.1 * jax.random.uniform(kv, (fan_out,),
                                                                  jnp.float32)
        params.append(layer)
    return params


def fold_params(params, eps=1e-5):
    """Fold Linear bias + eval-mode BatchNorm into (bf16 weight, f32 shift)."""
    folded = []
    for layer in params:
        w, b = layer["w"], layer["b"]
        if "gamma" in layer:
            inv_std = layer["gamma"] / jnp.sqrt(layer["running_var"] + eps)
            w = w * inv_std[None, :]                       # BN scale into weight
            shift = (b - layer["running_mean"]) * inv_std + layer["beta"]
        else:
            shift = b
        folded.append((w.astype(jnp.bfloat16),
                       shift.reshape(1, -1).astype(jnp.float32)))
    return folded


# ----------------------------------------------------------------------------
# References
# ----------------------------------------------------------------------------
def reference_net_f32(params, x, eps=1e-5):
    """Original module semantics in pure f32 JAX (eval-mode BN)."""
    h = x
    for layer in params:
        z = h @ layer["w"] + layer["b"]
        if "gamma" in layer:
            z = (z - layer["running_mean"]) / jnp.sqrt(layer["running_var"] + eps)
            z = z * layer["gamma"] + layer["beta"]
            z = jnp.maximum(z, 0.0)
        h = z
    return h


def reference_net_bf16(folded, x):
    """Same bf16 weights/activations as the kernel, f32 accumulation."""
    h = x.astype(jnp.bfloat16)
    for li, (w, s) in enumerate(folded):
        z = jnp.dot(h, w, preferred_element_type=jnp.float32) + s
        if li < len(folded) - 1:
            z = jnp.maximum(z, 0.0)
            h = z.astype(jnp.bfloat16)
        else:
            h = z
    return h


if __name__ == "__main__":
    key = jax.random.PRNGKey(0)
    key, kx, kp = jax.random.split(key, 3)

    batch = 8
    input_dim = 16
    output_dim = 8

    x = jax.random.normal(kx, (batch, input_dim), jnp.float32)
    params = init_params(kp, input_dim, output_dim)
    folded = fold_params(params)

    out = fused_mlp(x, folded)
    out = jax.block_until_ready(out)
    assert out.shape == (batch, output_dim)

    ref_bf16 = reference_net_bf16(folded, x)
    assert jnp.allclose(out, ref_bf16, atol=1e-2, rtol=1e-2), \
        "mismatch vs bf16-matched reference"

    ref_f32 = reference_net_f32(params, x)
    assert jnp.allclose(out, ref_f32, atol=1e-1, rtol=1e-1), \
        "mismatch vs f32 reference"

    print("KERNEL_OK")
</pallas_src>

<mosaic_0001>
module attributes {stable_mosaic.version = 11 : i64} {
  func.func @_mlp_kernel(%arg0: i32, %arg1: memref<16x128xbf16, #tpu.memory_space<vmem>>, %arg2: memref<128x1024xbf16, #tpu.memory_space<vmem>>, %arg3: memref<1x1024xf32, #tpu.memory_space<vmem>>, %arg4: memref<1024x512xbf16, #tpu.memory_space<vmem>>, %arg5: memref<1x512xf32, #tpu.memory_space<vmem>>, %arg6: memref<512x512xbf16, #tpu.memory_space<vmem>>, %arg7: memref<1x512xf32, #tpu.memory_space<vmem>>, %arg8: memref<512x1024xbf16, #tpu.memory_space<vmem>>, %arg9: memref<1x1024xf32, #tpu.memory_space<vmem>>, %arg10: memref<1024x128xbf16, #tpu.memory_space<vmem>>, %arg11: memref<1x128xf32, #tpu.memory_space<vmem>>, %arg12: memref<16x128xf32, #tpu.memory_space<vmem>>) attributes {dimension_semantics = [#tpu.dimension_semantics<parallel>], iteration_bounds = array<i64: 1>, scalar_prefetch = 0 : i64, scratch_operands = 0 : i64, tpu.core_type = #tpu.core_type<tc>, window_params = [{transform_indices = @transform_0, window_bounds = array<i64: 16, 128>}, {pipeline_mode = #tpu.pipeline_mode<synchronous>, transform_indices = @transform_1, window_bounds = array<i64: 128, 1024>}, {pipeline_mode = #tpu.pipeline_mode<synchronous>, transform_indices = @transform_2, window_bounds = array<i64: 1, 1024>}, {pipeline_mode = #tpu.pipeline_mode<synchronous>, transform_indices = @transform_3, window_bounds = array<i64: 1024, 512>}, {pipeline_mode = #tpu.pipeline_mode<synchronous>, transform_indices = @transform_4, window_bounds = array<i64: 1, 512>}, {pipeline_mode = #tpu.pipeline_mode<synchronous>, transform_indices = @transform_5, window_bounds = array<i64: 512, 512>}, {pipeline_mode = #tpu.pipeline_mode<synchronous>, transform_indices = @transform_6, window_bounds = array<i64: 1, 512>}, {pipeline_mode = #tpu.pipeline_mode<synchronous>, transform_indices = @transform_7, window_bounds = array<i64: 512, 1024>}, {pipeline_mode = #tpu.pipeline_mode<synchronous>, transform_indices = @transform_8, window_bounds = array<i64: 1, 1024>}, {pipeline_mode = #tpu.pipeline_mode<synchronous>, transform_indices = @transform_9, window_bounds = array<i64: 1024, 128>}, {pipeline_mode = #tpu.pipeline_mode<synchronous>, transform_indices = @transform_10, window_bounds = array<i64: 1, 128>}, {transform_indices = @transform_11, window_bounds = array<i64: 16, 128>}]} {
    %c0 = arith.constant 0 : index
    %c0_0 = arith.constant 0 : index
    %0 = vector.load %arg1[%c0, %c0_0] : memref<16x128xbf16, #tpu.memory_space<vmem>>, vector<16x128xbf16>
    %c0_1 = arith.constant 0 : index
    %c0_2 = arith.constant 0 : index
    %1 = vector.load %arg2[%c0_1, %c0_2] : memref<128x1024xbf16, #tpu.memory_space<vmem>>, vector<128x1024xbf16>
    %cst = arith.constant dense<0.000000e+00> : vector<16x1024xf32>
    %2 = tpu.matmul %0, %1, %cst {dimension_numbers = #tpu.dot_dimension_numbers<[1], [0], [0], [1], [0, 0, 1, 1], [], []>} : vector<16x128xbf16>, vector<128x1024xbf16>, vector<16x1024xf32> -> vector<16x1024xf32>
    %c0_3 = arith.constant 0 : index
    %c0_4 = arith.constant 0 : index
    %3 = vector.load %arg3[%c0_3, %c0_4] : memref<1x1024xf32, #tpu.memory_space<vmem>>, vector<1x1024xf32>
    %4 = vector.broadcast %3 : vector<1x1024xf32> to vector<16x1024xf32>
    %5 = arith.addf %2, %4 : vector<16x1024xf32>
    %cst_5 = arith.constant 0.000000e+00 : f32
    %6 = vector.broadcast %cst_5 : f32 to vector<16x1024xf32>
    %7 = arith.maximumf %5, %6 : vector<16x1024xf32>
    %8 = arith.truncf %7 : vector<16x1024xf32> to vector<16x1024xbf16>
    %c0_6 = arith.constant 0 : index
    %c0_7 = arith.constant 0 : index
    %9 = vector.load %arg4[%c0_6, %c0_7] : memref<1024x512xbf16, #tpu.memory_space<vmem>>, vector<1024x512xbf16>
    %cst_8 = arith.constant dense<0.000000e+00> : vector<16x512xf32>
    %10 = tpu.matmul %8, %9, %cst_8 {dimension_numbers = #tpu.dot_dimension_numbers<[1], [0], [0], [1], [0, 0, 1, 1], [], []>} : vector<16x1024xbf16>, vector<1024x512xbf16>, vector<16x512xf32> -> vector<16x512xf32>
    %c0_9 = arith.constant 0 : index
    %c0_10 = arith.constant 0 : index
    %11 = vector.load %arg5[%c0_9, %c0_10] : memref<1x512xf32, #tpu.memory_space<vmem>>, vector<1x512xf32>
    %12 = vector.broadcast %11 : vector<1x512xf32> to vector<16x512xf32>
    %13 = arith.addf %10, %12 : vector<16x512xf32>
    %cst_11 = arith.constant 0.000000e+00 : f32
    %14 = vector.broadcast %cst_11 : f32 to vector<16x512xf32>
    %15 = arith.maximumf %13, %14 : vector<16x512xf32>
    %16 = arith.truncf %15 : vector<16x512xf32> to vector<16x512xbf16>
    %c0_12 = arith.constant 0 : index
    %c0_13 = arith.constant 0 : index
    %17 = vector.load %arg6[%c0_12, %c0_13] : memref<512x512xbf16, #tpu.memory_space<vmem>>, vector<512x512xbf16>
    %cst_14 = arith.constant dense<0.000000e+00> : vector<16x512xf32>
    %18 = tpu.matmul %16, %17, %cst_14 {dimension_numbers = #tpu.dot_dimension_numbers<[1], [0], [0], [1], [0, 0, 1, 1], [], []>} : vector<16x512xbf16>, vector<512x512xbf16>, vector<16x512xf32> -> vector<16x512xf32>
    %c0_15 = arith.constant 0 : index
    %c0_16 = arith.constant 0 : index
    %19 = vector.load %arg7[%c0_15, %c0_16] : memref<1x512xf32, #tpu.memory_space<vmem>>, vector<1x512xf32>
    %20 = vector.broadcast %19 : vector<1x512xf32> to vector<16x512xf32>
    %21 = arith.addf %18, %20 : vector<16x512xf32>
    %cst_17 = arith.constant 0.000000e+00 : f32
    %22 = vector.broadcast %cst_17 : f32 to vector<16x512xf32>
    %23 = arith.maximumf %21, %22 : vector<16x512xf32>
    %24 = arith.truncf %23 : vector<16x512xf32> to vector<16x512xbf16>
    %c0_18 = arith.constant 0 : index
    %c0_19 = arith.constant 0 : index
    %25 = vector.load %arg8[%c0_18, %c0_19] : memref<512x1024xbf16, #tpu.memory_space<vmem>>, vector<512x1024xbf16>
    %cst_20 = arith.constant dense<0.000000e+00> : vector<16x1024xf32>
    %26 = tpu.matmul %24, %25, %cst_20 {dimension_numbers = #tpu.dot_dimension_numbers<[1], [0], [0], [1], [0, 0, 1, 1], [], []>} : vector<16x512xbf16>, vector<512x1024xbf16>, vector<16x1024xf32> -> vector<16x1024xf32>
    %c0_21 = arith.constant 0 : index
    %c0_22 = arith.constant 0 : index
    %27 = vector.load %arg9[%c0_21, %c0_22] : memref<1x1024xf32, #tpu.memory_space<vmem>>, vector<1x1024xf32>
    %28 = vector.broadcast %27 : vector<1x1024xf32> to vector<16x1024xf32>
    %29 = arith.addf %26, %28 : vector<16x1024xf32>
    %cst_23 = arith.constant 0.000000e+00 : f32
    %30 = vector.broadcast %cst_23 : f32 to vector<16x1024xf32>
    %31 = arith.maximumf %29, %30 : vector<16x1024xf32>
    %32 = arith.truncf %31 : vector<16x1024xf32> to vector<16x1024xbf16>
    %c0_24 = arith.constant 0 : index
    %c0_25 = arith.constant 0 : index
    %33 = vector.load %arg10[%c0_24, %c0_25] : memref<1024x128xbf16, #tpu.memory_space<vmem>>, vector<1024x128xbf16>
    %cst_26 = arith.constant dense<0.000000e+00> : vector<16x128xf32>
    %34 = tpu.matmul %32, %33, %cst_26 {dimension_numbers = #tpu.dot_dimension_numbers<[1], [0], [0], [1], [0, 0, 1, 1], [], []>} : vector<16x1024xbf16>, vector<1024x128xbf16>, vector<16x128xf32> -> vector<16x128xf32>
    %c0_27 = arith.constant 0 : index
    %c0_28 = arith.constant 0 : index
    %35 = vector.load %arg11[%c0_27, %c0_28] : memref<1x128xf32, #tpu.memory_space<vmem>>, vector<1x128xf32>
    %36 = vector.broadcast %35 : vector<1x128xf32> to vector<16x128xf32>
    %37 = arith.addf %34, %36 : vector<16x128xf32>
    %c0_29 = arith.constant 0 : index
    %c0_30 = arith.constant 0 : index
    %38 = vector.load %arg12[%c0_29, %c0_30] : memref<16x128xf32, #tpu.memory_space<vmem>>, vector<16x128xf32>
    tpu.vector_store %arg12[%c0_29, %c0_30], %37 {strides = array<i32>} : memref<16x128xf32, #tpu.memory_space<vmem>>, vector<16x128xf32>,
    return
  }
  func.func @transform_0(%arg0: i32) -> (i32, i32) {
    %c0_i32 = arith.constant 0 : i32
    %c0_i32_0 = arith.constant 0 : i32
    return %arg0, %c0_i32 : i32, i32
  }
  func.func @transform_1(%arg0: i32) -> (i32, i32) {
    %c0_i32 = arith.constant 0 : i32
    %c0_i32_0 = arith.constant 0 : i32
    %c0_i32_1 = arith.constant 0 : i32
    return %c0_i32, %c0_i32_0 : i32, i32
  }
  func.func @transform_2(%arg0: i32) -> (i32, i32) {
    %c0_i32 = arith.constant 0 : i32
    %c0_i32_0 = arith.constant 0 : i32
    %c0_i32_1 = arith.constant 0 : i32
    return %c0_i32, %c0_i32_0 : i32, i32
  }
  func.func @transform_3(%arg0: i32) -> (i32, i32) {
    %c0_i32 = arith.constant 0 : i32
    %c0_i32_0 = arith.constant 0 : i32
    %c0_i32_1 = arith.constant 0 : i32
    return %c0_i32, %c0_i32_0 : i32, i32
  }
  func.func @transform_4(%arg0: i32) -> (i32, i32) {
    %c0_i32 = arith.constant 0 : i32
    %c0_i32_0 = arith.constant 0 : i32
    %c0_i32_1 = arith.constant 0 : i32
    return %c0_i32, %c0_i32_0 : i32, i32
  }
  func.func @transform_5(%arg0: i32) -> (i32, i32) {
    %c0_i32 = arith.constant 0 : i32
    %c0_i32_0 = arith.constant 0 : i32
    %c0_i32_1 = arith.constant 0 : i32
    return %c0_i32, %c0_i32_0 : i32, i32
  }
  func.func @transform_6(%arg0: i32) -> (i32, i32) {
    %c0_i32 = arith.constant 0 : i32
    %c0_i32_0 = arith.constant 0 : i32
    %c0_i32_1 = arith.constant 0 : i32
    return %c0_i32, %c0_i32_0 : i32, i32
  }
  func.func @transform_7(%arg0: i32) -> (i32, i32) {
    %c0_i32 = arith.constant 0 : i32
    %c0_i32_0 = arith.constant 0 : i32
    %c0_i32_1 = arith.constant 0 : i32
    return %c0_i32, %c0_i32_0 : i32, i32
  }
  func.func @transform_8(%arg0: i32) -> (i32, i32) {
    %c0_i32 = arith.constant 0 : i32
    %c0_i32_0 = arith.constant 0 : i32
    %c0_i32_1 = arith.constant 0 : i32
    return %c0_i32, %c0_i32_0 : i32, i32
  }
  func.func @transform_9(%arg0: i32) -> (i32, i32) {
    %c0_i32 = arith.constant 0 : i32
    %c0_i32_0 = arith.constant 0 : i32
    %c0_i32_1 = arith.constant 0 : i32
    return %c0_i32, %c0_i32_0 : i32, i32
  }
  func.func @transform_10(%arg0: i32) -> (i32, i32) {
    %c0_i32 = arith.constant 0 : i32
    %c0_i32_0 = arith.constant 0 : i32
    %c0_i32_1 = arith.constant 0 : i32
    return %c0_i32, %c0_i32_0 : i32, i32
  }
  func.func @transform_11(%arg0: i32) -> (i32, i32) {
    %c0_i32 = arith.constant 0 : i32
    %c0_i32_0 = arith.constant 0 : i32
    return %arg0, %c0_i32 : i32, i32
  }
}

</mosaic_0001>

<llo_original>
// kernel: tpu_custom_call.1
$region0: #{tpu_custom_call.1}
  #allocation0 [shape = 'u32[]', space=smem, size = 0x4, offset = 0x4, fixed_abs, tag = 'smem constant byte address 0x4 - core index']
  #allocation1 [shape = 'u32[144,128]{1,0:T(1,128)}', space=vmem, size = 0x12000, scoped, tag = 'internal scratch']
  %s0 = inlined_call_operand.hbm [shape: bf16[16,128], index: 0, kind: input, shape index: {}]
  %s1 = inlined_call_operand.hbm [shape: bf16[128,1024], index: 1, kind: input, shape index: {}]
  %s2 = inlined_call_operand.hbm [shape: f32[1,1024], index: 2, kind: input, shape index: {}]
  %s3 = inlined_call_operand.hbm [shape: bf16[1024,512], index: 3, kind: input, shape index: {}]
  %s4 = inlined_call_operand.vmem [shape: f32[1,512], index: 4, kind: input, shape index: {}]
  %s5 = inlined_call_operand.hbm [shape: bf16[512,512], index: 5, kind: input, shape index: {}]
  %s6 = inlined_call_operand.vmem [shape: f32[1,512], index: 6, kind: input, shape index: {}]
  %s7 = inlined_call_operand.hbm [shape: bf16[512,1024], index: 7, kind: input, shape index: {}]
  %s8 = inlined_call_operand.vmem [shape: f32[1,1024], index: 8, kind: input, shape index: {}]
  %s9 = inlined_call_operand.hbm [shape: bf16[1024,128], index: 9, kind: input, shape index: {}]
  %s10 = inlined_call_operand.vmem [shape: f32[1,128], index: 10, kind: input, shape index: {}]
  %s11 = inlined_call_operand.hbm [shape: f32[16,128], index: 11, kind: output, shape index: {}]
  %s12 = sld [smem:[#allocation0]]
  $region82: #{tpu_custom_call.1} parent=0
    _
  %s14 = ssub.s32 1, %s12
  %s15 = scalar_select 0, %s14, %s12
  $region1: #{tpu_custom_call.1} parent=0
    #allocation2 [shape = 'u8[4096]{0}', space=vmem, size = 0x1000, scoped, tag = 'input window, operand 0, single buffered']
    #allocation3 [shape = 's32[1]{0}', space=sflag, size = 0x4, scoped, tag = 'scoped memory for tpu_custom_call.1']
    #allocation4 [shape = 's32[1]{0}', space=sflag, size = 0x4, scoped, tag = 'scoped memory for tpu_custom_call.1']
    #allocation5 [shape = 'u8[262144]{0}', space=vmem, size = 0x40000, scoped, tag = 'input window, operand 1, single buffered']
    #allocation6 [shape = 's32[1]{0}', space=sflag, size = 0x4, scoped, tag = 'scoped memory for tpu_custom_call.1']
    #allocation7 [shape = 'u8[4096]{0}', space=vmem, size = 0x1000, scoped, tag = 'input window, operand 2, single buffered']
    #allocation8 [shape = 'u8[1048576]{0}', space=vmem, size = 0x100000, scoped, tag = 'input window, operand 3, single buffered']
    #allocation9 [shape = 's32[1]{0}', space=sflag, size = 0x4, scoped, tag = 'scoped memory for tpu_custom_call.1']
    #allocation10 [shape = 'u8[524288]{0}', space=vmem, size = 0x80000, scoped, tag = 'input window, operand 5, single buffered']
    #allocation11 [shape = 'u8[1048576]{0}', space=vmem, size = 0x100000, scoped, tag = 'input window, operand 7, single buffered']
    #allocation12 [shape = 's32[1]{0}', space=sflag, size = 0x4, scoped, tag = 'scoped memory for tpu_custom_call.1']
    #allocation13 [shape = 'u8[262144]{0}', space=vmem, size = 0x40000, scoped, tag = 'input window, operand 9, single buffered']
    #allocation14 [shape = 'u8[8192]{0}', space=vmem, size = 0x2000, scoped, tag = 'output window, operand 0, single buffered']
    %16 = vsyncpa [#allocation3], 0
    %17 = vsyncpa [#allocation6], 0
    %18 = vsyncpa [#allocation9], 0
    %19 = vsyncpa [#allocation12], 0
    %20 = vsyncpa [#allocation4], 0
    // Predicated region
    $region2: #{tpu_custom_call.1} parent=1 // pred_check
      _
    $region3: #{tpu_custom_call.1} parent=1 // pred_check_branch
      %22 = sbr.rel (0) target = $region5
    $region4: #{tpu_custom_call.1} parent=1 // pred_region
      %s24 = ssub.s32 128, 128
      %25 = vsyncadd [#allocation3], %s24
      %s26 = sshll.u32 [#allocation2], 4
      %s27 = int_to_ptr.vmem [resolvable:$true] %s26
      %32 = dma.hbm_to_vmem [thread:$0]  %s0, 128, %s27, [#allocation3], 64, 64, 4
    $region5: #{tpu_custom_call.1} parent=1 // pred_fallthru
      _
    // Predicated region
    $region6: #{tpu_custom_call.1} parent=1 // pred_check
      _
    $region7: #{tpu_custom_call.1} parent=1 // pred_check_branch
      %34 = sbr.rel (0) target = $region9
    $region8: #{tpu_custom_call.1} parent=1 // pred_region
      %s36 = ssub.s32 8192, 8192
      %37 = vsyncadd [#allocation6], %s36
      %s38 = sshll.u32 [#allocation5], 4
      %s39 = int_to_ptr.vmem [resolvable:$true] %s38
      %44 = dma.hbm_to_vmem [thread:$0]  %s1, 8192, %s39, [#allocation6], 512, 512, 32
    $region9: #{tpu_custom_call.1} parent=1 // pred_fallthru
      _
    // Predicated region
    $region10: #{tpu_custom_call.1} parent=1 // pred_check
      _
    $region11: #{tpu_custom_call.1} parent=1 // pred_check_branch
      %46 = sbr.rel (0) target = $region13
    $region12: #{tpu_custom_call.1} parent=1 // pred_region
      %s48 = ssub.s32 128, 128
      %49 = vsyncadd [#allocation6], %s48
      %s51 = sshll.u32 [#allocation7], 4
      %s52 = int_to_ptr.vmem [resolvable:$true] %s51
      %54 = dma.hbm_to_vmem [thread:$0]  %s2, 128, %s52, [#allocation6]
    $region13: #{tpu_custom_call.1} parent=1 // pred_fallthru
      _
    // Predicated region
    $region14: #{tpu_custom_call.1} parent=1 // pred_check
      _
    $region15: #{tpu_custom_call.1} parent=1 // pred_check_branch
      %56 = sbr.rel (0) target = $region17
    $region16: #{tpu_custom_call.1} parent=1 // pred_region
      %s58 = ssub.s32 32768, 32768
      %59 = vsyncadd [#allocation9], %s58
      %s60 = sshll.u32 [#allocation8], 4
      %s61 = int_to_ptr.vmem [resolvable:$true] %s60
      %66 = dma.hbm_to_vmem [thread:$0]  %s3, 32768, %s61, [#allocation9], 256, 256, 16
    $region17: #{tpu_custom_call.1} parent=1 // pred_fallthru
      _
    // Predicated region
    $region18: #{tpu_custom_call.1} parent=1 // pred_check
      _
    $region19: #{tpu_custom_call.1} parent=1 // pred_check_branch
      %68 = sbr.rel (0) target = $region21
    $region20: #{tpu_custom_call.1} parent=1 // pred_region
      _
    $region21: #{tpu_custom_call.1} parent=1 // pred_fallthru
      _
    // Predicated region
    $region22: #{tpu_custom_call.1} parent=1 // pred_check
      _
    $region23: #{tpu_custom_call.1} parent=1 // pred_check_branch
      %70 = sbr.rel (0) target = $region25
    $region24: #{tpu_custom_call.1} parent=1 // pred_region
      %s72 = ssub.s32 16384, 16384
      %73 = vsyncadd [#allocation9], %s72
      %s74 = sshll.u32 [#allocation10], 4
      %s75 = int_to_ptr.vmem [resolvable:$true] %s74
      %80 = dma.hbm_to_vmem [thread:$0]  %s5, 16384, %s75, [#allocation9], 256, 256, 16
    $region25: #{tpu_custom_call.1} parent=1 // pred_fallthru
      _
    // Predicated region
    $region26: #{tpu_custom_call.1} parent=1 // pred_check
      _
    $region27: #{tpu_custom_call.1} parent=1 // pred_check_branch
      %82 = sbr.rel (0) target = $region29
    $region28: #{tpu_custom_call.1} parent=1 // pred_region
      _
    $region29: #{tpu_custom_call.1} parent=1 // pred_fallthru
      _
    // Predicated region
    $region30: #{tpu_custom_call.1} parent=1 // pred_check
      _
    $region31: #{tpu_custom_call.1} parent=1 // pred_check_branch
      %84 = sbr.rel (0) target = $region33
    $region32: #{tpu_custom_call.1} parent=1 // pred_region
      %s86 = ssub.s32 32768, 32768
      %87 = vsyncadd [#allocation12], %s86
      %s88 = sshll.u32 [#allocation11], 4
      %s89 = int_to_ptr.vmem [resolvable:$true] %s88
      %94 = dma.hbm_to_vmem [thread:$0]  %s7, 32768, %s89, [#allocation12], 512, 512, 32
    $region33: #{tpu_custom_call.1} parent=1 // pred_fallthru
      _
    // Predicated region
    $region34: #{tpu_custom_call.1} parent=1 // pred_check
      _
    $region35: #{tpu_custom_call.1} parent=1 // pred_check_branch
      %96 = sbr.rel (0) target = $region37
    $region36: #{tpu_custom_call.1} parent=1 // pred_region
      _
    $region37: #{tpu_custom_call.1} parent=1 // pred_fallthru
      _
    // Predicated region
    $region38: #{tpu_custom_call.1} parent=1 // pred_check
      _
    $region39: #{tpu_custom_call.1} parent=1 // pred_check_branch
      %98 = sbr.rel (0) target = $region41
    $region40: #{tpu_custom_call.1} parent=1 // pred_region
      %s100 = ssub.s32 8192, 8192
      %101 = vsyncadd [#allocation12], %s100
      %s102 = sshll.u32 [#allocation13], 4
      %s103 = int_to_ptr.vmem [resolvable:$true] %s102
      %108 = dma.hbm_to_vmem [thread:$0]  %s9, 8192, %s103, [#allocation12], 64, 64, 4
    $region41: #{tpu_custom_call.1} parent=1 // pred_fallthru
      _
    // Predicated region
    $region42: #{tpu_custom_call.1} parent=1 // pred_check
      _
    $region43: #{tpu_custom_call.1} parent=1 // pred_check_branch
      %110 = sbr.rel (0) target = $region45
    $region44: #{tpu_custom_call.1} parent=1 // pred_region
      _
    $region45: #{tpu_custom_call.1} parent=1 // pred_fallthru
      _
    // Predicated region
    $region46: #{tpu_custom_call.1} parent=1 // pred_check
      _
    $region47: #{tpu_custom_call.1} parent=1 // pred_check_branch
      %112 = sbr.rel (0) target = $region49
    $region48: #{tpu_custom_call.1} parent=1 // pred_region
      %113 = dma.done [#allocation3], 128
    $region49: #{tpu_custom_call.1} parent=1 // pred_fallthru
      _
    // Predicated region
    $region50: #{tpu_custom_call.1} parent=1 // pred_check
      _
    $region51: #{tpu_custom_call.1} parent=1 // pred_check_branch
      %115 = sbr.rel (0) target = $region53
    $region52: #{tpu_custom_call.1} parent=1 // pred_region
      %116 = dma.done [#allocation6], 8192
    $region53: #{tpu_custom_call.1} parent=1 // pred_fallthru
      _
    // Predicated region
    $region54: #{tpu_custom_call.1} parent=1 // pred_check
      _
    $region55: #{tpu_custom_call.1} parent=1 // pred_check_branch
      %118 = sbr.rel (0) target = $region57
    $region56: #{tpu_custom_call.1} parent=1 // pred_region
      %119 = dma.done [#allocation6], 128
    $region57: #{tpu_custom_call.1} parent=1 // pred_fallthru
      _
    // Predicated region
    $region58: #{tpu_custom_call.1} parent=1 // pred_check
      _
    $region59: #{tpu_custom_call.1} parent=1 // pred_check_branch
      %121 = sbr.rel (0) target = $region61
    $region60: #{tpu_custom_call.1} parent=1 // pred_region
      %122 = dma.done [#allocation9], 32768
    $region61: #{tpu_custom_call.1} parent=1 // pred_fallthru
      _
    // Predicated region
    $region62: #{tpu_custom_call.1} parent=1 // pred_check
      _
    $region63: #{tpu_custom_call.1} parent=1 // pred_check_branch
      %124 = sbr.rel (0) target = $region65
    $region64: #{tpu_custom_call.1} parent=1 // pred_region
      %125 = dma.done [#allocation9], 16384
    $region65: #{tpu_custom_call.1} parent=1 // pred_fallthru
      _
    // Predicated region
    $region66: #{tpu_custom_call.1} parent=1 // pred_check
      _
    $region67: #{tpu_custom_call.1} parent=1 // pred_check_branch
      %127 = sbr.rel (0) target = $region69
    $region68: #{tpu_custom_call.1} parent=1 // pred_region
      %128 = dma.done [#allocation12], 32768
    $region69: #{tpu_custom_call.1} parent=1 // pred_fallthru
      _
    // Predicated region
    $region70: #{tpu_custom_call.1} parent=1 // pred_check
      _
    $region71: #{tpu_custom_call.1} parent=1 // pred_check_branch
      %130 = sbr.rel (0) target = $region73
    $region72: #{tpu_custom_call.1} parent=1 // pred_region
      %131 = dma.done [#allocation12], 8192
    $region73: #{tpu_custom_call.1} parent=1 // pred_fallthru
      _
    %v133 = vld [vmem:[#allocation2] sm:$0xf]
    %v134 = vld [vmem:[#allocation2 + $0x4] sm:$0xf]
    %v135 = vld [vmem:[#allocation5] sm:$0xff]
    %v136 = vld [vmem:[#allocation5 + $0x8] sm:$0xff]
    %v137 = vld [vmem:[#allocation5 + $0x10] sm:$0xff]
    %v138 = vld [vmem:[#allocation5 + $0x18] sm:$0xff]
    %v139 = vld [vmem:[#allocation5 + $0x20] sm:$0xff]
    %v140 = vld [vmem:[#allocation5 + $0x28] sm:$0xff]
    %v141 = vld [vmem:[#allocation5 + $0x30] sm:$0xff]
    %v142 = vld [vmem:[#allocation5 + $0x38] sm:$0xff]
    %v143 = vld [vmem:[#allocation5 + $0x40] sm:$0xff]
    %v144 = vld [vmem:[#allocation5 + $0x48] sm:$0xff]
    %v145 = vld [vmem:[#allocation5 + $0x50] sm:$0xff]
    %v146 = vld [vmem:[#allocation5 + $0x58] sm:$0xff]
    %v147 = vld [vmem:[#allocation5 + $0x60] sm:$0xff]
    %v148 = vld [vmem:[#allocation5 + $0x68] sm:$0xff]
    %v149 = vld [vmem:[#allocation5 + $0x70] sm:$0xff]
    %v150 = vld [vmem:[#allocation5 + $0x78] sm:$0xff]
    %v151 = vld [vmem:[#allocation5 + $0x80] sm:$0xff]
    %v152 = vld [vmem:[#allocation5 + $0x88] sm:$0xff]
    %v153 = vld [vmem:[#allocation5 + $0x90] sm:$0xff]
    %v154 = vld [vmem:[#allocation5 + $0x98] sm:$0xff]
    %v155 = vld [vmem:[#allocation5 + $0xa0] sm:$0xff]
    %v156 = vld [vmem:[#allocation5 + $0xa8] sm:$0xff]
    %v157 = vld [vmem:[#allocation5 + $0xb0] sm:$0xff]
    %v158 = vld [vmem:[#allocation5 + $0xb8] sm:$0xff]
    %v159 = vld [vmem:[#allocation5 + $0xc0] sm:$0xff]
    %v160 = vld [vmem:[#allocation5 + $0xc8] sm:$0xff]
    %v161 = vld [vmem:[#allocation5 + $0xd0] sm:$0xff]
    %v162 = vld [vmem:[#allocation5 + $0xd8] sm:$0xff]
    %v163 = vld [vmem:[#allocation5 + $0xe0] sm:$0xff]
    %v164 = vld [vmem:[#allocation5 + $0xe8] sm:$0xff]
    %v165 = vld [vmem:[#allocation5 + $0xf0] sm:$0xff]
    %v166 = vld [vmem:[#allocation5 + $0xf8] sm:$0xff]
    %v167 = vld [vmem:[#allocation5 + $0x100] sm:$0xff]
    %v168 = vld [vmem:[#allocation5 + $0x108] sm:$0xff]
    %v169 = vld [vmem:[#allocation5 + $0x110] sm:$0xff]
    %v170 = vld [vmem:[#allocation5 + $0x118] sm:$0xff]
    %v171 = vld [vmem:[#allocation5 + $0x120] sm:$0xff]
    %v172 = vld [vmem:[#allocation5 + $0x128] sm:$0xff]
    %v173 = vld [vmem:[#allocation5 + $0x130] sm:$0xff]
    %v174 = vld [vmem:[#allocation5 + $0x138] sm:$0xff]
    %v175 = vld [vmem:[#allocation5 + $0x140] sm:$0xff]
    %v176 = vld [vmem:[#allocation5 + $0x148] sm:$0xff]
    %v177 = vld [vmem:[#allocation5 + $0x150] sm:$0xff]
    %v178 = vld [vmem:[#allocation5 + $0x158] sm:$0xff]
    %v179 = vld [vmem:[#allocation5 + $0x160] sm:$0xff]
    %v180 = vld [vmem:[#allocation5 + $0x168] sm:$0xff]
    %v181 = vld [vmem:[#allocation5 + $0x170] sm:$0xff]
    %v182 = vld [vmem:[#allocation5 + $0x178] sm:$0xff]
    %v183 = vld [vmem:[#allocation5 + $0x180] sm:$0xff]
    %v184 = vld [vmem:[#allocation5 + $0x188] sm:$0xff]
    %v185 = vld [vmem:[#allocation5 + $0x190] sm:$0xff]
    %v186 = vld [vmem:[#allocation5 + $0x198] sm:$0xff]
    %v187 = vld [vmem:[#allocation5 + $0x1a0] sm:$0xff]
    %v188 = vld [vmem:[#allocation5 + $0x1a8] sm:$0xff]
    %v189 = vld [vmem:[#allocation5 + $0x1b0] sm:$0xff]
    %v190 = vld [vmem:[#allocation5 + $0x1b8] sm:$0xff]
    %v191 = vld [vmem:[#allocation5 + $0x1c0] sm:$0xff]
    %v192 = vld [vmem:[#allocation5 + $0x1c8] sm:$0xff]
    %v193 = vld [vmem:[#allocation5 + $0x1d0] sm:$0xff]
    %v194 = vld [vmem:[#allocation5 + $0x1d8] sm:$0xff]
    %v195 = vld [vmem:[#allocation5 + $0x1e0] sm:$0xff]
    %v196 = vld [vmem:[#allocation5 + $0x1e8] sm:$0xff]
    %v197 = vld [vmem:[#allocation5 + $0x1f0] sm:$0xff]
    %v198 = vld [vmem:[#allocation5 + $0x1f8] sm:$0xff]
    %v199 = vld [vmem:[#allocation7] sm:$0xff]
    %v201 = vlaneseq
    %v202 = vshrl.u32 %v201, 7
    %v203 = vsub.s32 0, %v202
    %v204 = vrot.slane %v199, %v203
    %v205 = vlaneseq
    %v206 = vshrl.u32 %v205, 7
    %v207 = vsub.s32 1, %v206
    %v208 = vrot.slane %v199, %v207
    %v209 = vlaneseq
    %v210 = vshrl.u32 %v209, 7
    %v211 = vsub.s32 2, %v210
    %v212 = vrot.slane %v199, %v211
    %v213 = vlaneseq
    %v214 = vshrl.u32 %v213, 7
    %v215 = vsub.s32 3, %v214
    %v216 = vrot.slane %v199, %v215
    %v217 = vlaneseq
    %v218 = vshrl.u32 %v217, 7
    %v219 = vsub.s32 4, %v218
    %v220 = vrot.slane %v199, %v219
    %v221 = vlaneseq
    %v222 = vshrl.u32 %v221, 7
    %v223 = vsub.s32 5, %v222
    %v224 = vrot.slane %v199, %v223
    %v225 = vlaneseq
    %v226 = vshrl.u32 %v225, 7
    %v227 = vsub.s32 6, %v226
    %v228 = vrot.slane %v199, %v227
    %v229 = vlaneseq
    %v230 = vshrl.u32 %v229, 7
    %v231 = vsub.s32 7, %v230
    %v232 = vrot.slane %v199, %v231
    %v243 = vunpack.c.l.b16 %v133
    %v244 = vunpack.c.l.b16 %v134
    %v245 = vpack.c.b16 %v244, %v243
    %v311 = vunpack.c.l.b16 %v135
    %v312 = vunpack.c.h.b16 %v135
    %v313 = vunpack.c.l.b16 %v136
    %v314 = vunpack.c.h.b16 %v136
    %v315 = vunpack.c.l.b16 %v137
    %v316 = vunpack.c.h.b16 %v137
    %v317 = vunpack.c.l.b16 %v138
    %v318 = vunpack.c.h.b16 %v138
    %v319 = vunpack.c.l.b16 %v139
    %v320 = vunpack.c.h.b16 %v139
    %v321 = vunpack.c.l.b16 %v140
    %v322 = vunpack.c.h.b16 %v140
    %v323 = vunpack.c.l.b16 %v141
    %v324 = vunpack.c.h.b16 %v141
    %v325 = vunpack.c.l.b16 %v142
    %v326 = vunpack.c.h.b16 %v142
    %v327 = vunpack.c.l.b16 %v143
    %v328 = vunpack.c.h.b16 %v143
    %v329 = vunpack.c.l.b16 %v144
    %v330 = vunpack.c.h.b16 %v144
    %v331 = vunpack.c.l.b16 %v145
    %v332 = vunpack.c.h.b16 %v145
    %v333 = vunpack.c.l.b16 %v146
    %v334 = vunpack.c.h.b16 %v146
    %v335 = vunpack.c.l.b16 %v147
    %v336 = vunpack.c.h.b16 %v147
    %v337 = vunpack.c.l.b16 %v148
    %v338 = vunpack.c.h.b16 %v148
    %v339 = vunpack.c.l.b16 %v149
    %v340 = vunpack.c.h.b16 %v149
    %v341 = vunpack.c.l.b16 %v150
    %v342 = vunpack.c.h.b16 %v150
    %v343 = vunpack.c.l.b16 %v151
    %v344 = vunpack.c.h.b16 %v151
    %v345 = vunpack.c.l.b16 %v152
    %v346 = vunpack.c.h.b16 %v152
    %v347 = vunpack.c.l.b16 %v153
    %v348 = vunpack.c.h.b16 %v153
    %v349 = vunpack.c.l.b16 %v154
    %v350 = vunpack.c.h.b16 %v154
    %v351 = vunpack.c.l.b16 %v155
    %v352 = vunpack.c.h.b16 %v155
    %v353 = vunpack.c.l.b16 %v156
    %v354 = vunpack.c.h.b16 %v156
    %v355 = vunpack.c.l.b16 %v157
    %v356 = vunpack.c.h.b16 %v157
    %v357 = vunpack.c.l.b16 %v158
    %v358 = vunpack.c.h.b16 %v158
    %v359 = vunpack.c.l.b16 %v159
    %v360 = vunpack.c.h.b16 %v159
    %v361 = vunpack.c.l.b16 %v160
    %v362 = vunpack.c.h.b16 %v160
    %v363 = vunpack.c.l.b16 %v161
    %v364 = vunpack.c.h.b16 %v161
    %v365 = vunpack.c.l.b16 %v162
    %v366 = vunpack.c.h.b16 %v162
    %v367 = vunpack.c.l.b16 %v163
    %v368 = vunpack.c.h.b16 %v163
    %v369 = vunpack.c.l.b16 %v164
    %v370 = vunpack.c.h.b16 %v164
    %v371 = vunpack.c.l.b16 %v165
    %v372 = vunpack.c.h.b16 %v165
    %v373 = vunpack.c.l.b16 %v166
    %v374 = vunpack.c.h.b16 %v166
    %v375 = vunpack.c.l.b16 %v167
    %v376 = vunpack.c.h.b16 %v167
    %v377 = vunpack.c.l.b16 %v168
    %v378 = vunpack.c.h.b16 %v168
    %v379 = vunpack.c.l.b16 %v169
    %v380 = vunpack.c.h.b16 %v169
    %v381 = vunpack.c.l.b16 %v170
    %v382 = vunpack.c.h.b16 %v170
    %v383 = vunpack.c.l.b16 %v171
    %v384 = vunpack.c.h.b16 %v171
    %v385 = vunpack.c.l.b16 %v172
    %v386 = vunpack.c.h.b16 %v172
    %v387 = vunpack.c.l.b16 %v173
    %v388 = vunpack.c.h.b16 %v173
    %v389 = vunpack.c.l.b16 %v174
    %v390 = vunpack.c.h.b16 %v174
    %v391 = vunpack.c.l.b16 %v175
    %v392 = vunpack.c.h.b16 %v175
    %v393 = vunpack.c.l.b16 %v176
    %v394 = vunpack.c.h.b16 %v176
    %v395 = vunpack.c.l.b16 %v177
    %v396 = vunpack.c.h.b16 %v177
    %v397 = vunpack.c.l.b16 %v178
    %v398 = vunpack.c.h.b16 %v178
    %v399 = vunpack.c.l.b16 %v179
    %v400 = vunpack.c.h.b16 %v179
    %v401 = vunpack.c.l.b16 %v180
    %v402 = vunpack.c.h.b16 %v180
    %v403 = vunpack.c.l.b16 %v181
    %v404 = vunpack.c.h.b16 %v181
    %v405 = vunpack.c.l.b16 %v182
    %v406 = vunpack.c.h.b16 %v182
    %v407 = vunpack.c.l.b16 %v183
    %v408 = vunpack.c.h.b16 %v183
    %v409 = vunpack.c.l.b16 %v184
    %v410 = vunpack.c.h.b16 %v184
    %v411 = vunpack.c.l.b16 %v185
    %v412 = vunpack.c.h.b16 %v185
    %v413 = vunpack.c.l.b16 %v186
    %v414 = vunpack.c.h.b16 %v186
    %v415 = vunpack.c.l.b16 %v187
    %v416 = vunpack.c.h.b16 %v187
    %v417 = vunpack.c.l.b16 %v188
    %v418 = vunpack.c.h.b16 %v188
    %v419 = vunpack.c.l.b16 %v189
    %v420 = vunpack.c.h.b16 %v189
    %v421 = vunpack.c.l.b16 %v190
    %v422 = vunpack.c.h.b16 %v190
    %v423 = vunpack.c.l.b16 %v191
    %v424 = vunpack.c.h.b16 %v191
    %v425 = vunpack.c.l.b16 %v192
    %v426 = vunpack.c.h.b16 %v192
    %v427 = vunpack.c.l.b16 %v193
    %v428 = vunpack.c.h.b16 %v193
    %v429 = vunpack.c.l.b16 %v194
    %v430 = vunpack.c.h.b16 %v194
    %v431 = vunpack.c.l.b16 %v195
    %v432 = vunpack.c.h.b16 %v195
    %v433 = vunpack.c.l.b16 %v196
    %v434 = vunpack.c.h.b16 %v196
    %v435 = vunpack.c.l.b16 %v197
    %v436 = vunpack.c.h.b16 %v197
    %v437 = vunpack.c.l.b16 %v198
    %v438 = vunpack.c.h.b16 %v198
    %v439 = vpack.c.b16 %v319, %v311
    %v440 = vpack.c.b16 %v320, %v312
    %v441 = vpack.c.b16 %v321, %v313
    %v442 = vpack.c.b16 %v322, %v314
    %v443 = vpack.c.b16 %v323, %v315
    %v444 = vpack.c.b16 %v324, %v316
    %v445 = vpack.c.b16 %v325, %v317
    %v446 = vpack.c.b16 %v326, %v318
    %v447 = vpack.c.b16 %v335, %v327
    %v448 = vpack.c.b16 %v336, %v328
    %v449 = vpack.c.b16 %v337, %v329
    %v450 = vpack.c.b16 %v338, %v330
    %v451 = vpack.c.b16 %v339, %v331
    %v452 = vpack.c.b16 %v340, %v332
    %v453 = vpack.c.b16 %v341, %v333
    %v454 = vpack.c.b16 %v342, %v334
    %v455 = vpack.c.b16 %v351, %v343
    %v456 = vpack.c.b16 %v352, %v344
    %v457 = vpack.c.b16 %v353, %v345
    %v458 = vpack.c.b16 %v354, %v346
    %v459 = vpack.c.b16 %v355, %v347
    %v460 = vpack.c.b16 %v356, %v348
    %v461 = vpack.c.b16 %v357, %v349
    %v462 = vpack.c.b16 %v358, %v350
    %v463 = vpack.c.b16 %v367, %v359
    %v464 = vpack.c.b16 %v368, %v360
    %v465 = vpack.c.b16 %v369, %v361
    %v466 = vpack.c.b16 %v370, %v362
    %v467 = vpack.c.b16 %v371, %v363
    %v468 = vpack.c.b16 %v372, %v364
    %v469 = vpack.c.b16 %v373, %v365
    %v470 = vpack.c.b16 %v374, %v366
    %v471 = vpack.c.b16 %v383, %v375
    %v472 = vpack.c.b16 %v384, %v376
    %v473 = vpack.c.b16 %v385, %v377
    %v474 = vpack.c.b16 %v386, %v378
    %v475 = vpack.c.b16 %v387, %v379
    %v476 = vpack.c.b16 %v388, %v380
    %v477 = vpack.c.b16 %v389, %v381
    %v478 = vpack.c.b16 %v390, %v382
    %v479 = vpack.c.b16 %v399, %v391
    %v480 = vpack.c.b16 %v400, %v392
    %v481 = vpack.c.b16 %v401, %v393
    %v482 = vpack.c.b16 %v402, %v394
    %v483 = vpack.c.b16 %v403, %v395
    %v484 = vpack.c.b16 %v404, %v396
    %v485 = vpack.c.b16 %v405, %v397
    %v486 = vpack.c.b16 %v406, %v398
    %v487 = vpack.c.b16 %v415, %v407
    %v488 = vpack.c.b16 %v416, %v408
    %v489 = vpack.c.b16 %v417, %v409
    %v490 = vpack.c.b16 %v418, %v410
    %v491 = vpack.c.b16 %v419, %v411
    %v492 = vpack.c.b16 %v420, %v412
    %v493 = vpack.c.b16 %v421, %v413
    %v494 = vpack.c.b16 %v422, %v414
    %v495 = vpack.c.b16 %v431, %v423
    %v496 = vpack.c.b16 %v432, %v424
    %v497 = vpack.c.b16 %v433, %v425
    %v498 = vpack.c.b16 %v434, %v426
    %v499 = vpack.c.b16 %v435, %v427
    %v500 = vpack.c.b16 %v436, %v428
    %v501 = vpack.c.b16 %v437, %v429
    %v502 = vpack.c.b16 %v438, %v430
    %567 = vmatprep.subr.bf16.mxu0 %v440
    %568 = vmatpush1.bf16.msra.mxu0 %v439
    %569 = vmatprep.subr.bf16.mxu0 %v448
    %570 = vmatpush1.bf16.msra.mxu0 %v447
    %571 = vmatprep.subr.bf16.mxu0 %v456
    %572 = vmatpush1.bf16.msra.mxu0 %v455
    %573 = vmatprep.subr.bf16.mxu0 %v464
    %574 = vmatpush1.bf16.msra.mxu0 %v463
    %575 = vmatprep.subr.bf16.mxu0 %v472
    %576 = vmatpush1.bf16.msra.mxu0 %v471
    %577 = vmatprep.subr.bf16.mxu0 %v480
    %578 = vmatpush1.bf16.msra.mxu0 %v479
    %579 = vmatprep.subr.bf16.mxu0 %v488
    %580 = vmatpush1.bf16.msra.mxu0 %v487
    %581 = vmatprep.subr.bf16.mxu0 %v496
    %582 = vmatpush1.bf16.msra.mxu0 %v495
    %583 = vmatprep.subr.bf16.mxu0 0
    %584 = vmatpush1.bf16.msra.mxu0 0
    %585 = vmatprep.subr.bf16.mxu0 0
    %586 = vmatpush1.bf16.msra.mxu0 0
    %587 = vmatprep.subr.bf16.mxu0 0
    %588 = vmatpush1.bf16.msra.mxu0 0
    %589 = vmatprep.subr.bf16.mxu0 0
    %590 = vmatpush1.bf16.msra.mxu0 0
    %591 = vmatprep.subr.bf16.mxu0 0
    %592 = vmatpush1.bf16.msra.mxu0 0
    %593 = vmatprep.subr.bf16.mxu0 0
    %594 = vmatpush1.bf16.msra.mxu0 0
    %595 = vmatprep.subr.bf16.mxu0 0
    %596 = vmatpush1.bf16.msra.mxu0 0
    %597 = vmatprep.subr.bf16.mxu0 0
    %598 = vmatpush1.bf16.msra.mxu0 0
    %599 = vmatprep.mubr.bf16.mxu0 0
    %600 = vmatmul.mubr.bf16.gmra.mrb[0].mxu0 %v245
    %v601 = vpop.f32.mrb[0].mxu0
    %v602 = vadd.f32 %v204, %v601
    %v603 = vpop.f32.mrb[0].mxu0
    %v604 = vadd.f32 %v208, %v603
    %v605 = vpop.f32.mrb[0].mxu0
    %v606 = vadd.f32 %v204, %v605
    %v607 = vpop.f32.mrb[0].mxu0
    %v608 = vadd.f32 %v208, %v607
    %609 = vdwg.mxu0
    %610 = vmatprep.subr.bf16.mxu0 %v442
    %611 = vmatpush1.bf16.msra.mxu0 %v441
    %612 = vmatprep.subr.bf16.mxu0 %v450
    %613 = vmatpush1.bf16.msra.mxu0 %v449
    %614 = vmatprep.subr.bf16.mxu0 %v458
    %615 = vmatpush1.bf16.msra.mxu0 %v457
    %616 = vmatprep.subr.bf16.mxu0 %v466
    %617 = vmatpush1.bf16.msra.mxu0 %v465
    %618 = vmatprep.subr.bf16.mxu0 %v474
    %619 = vmatpush1.bf16.msra.mxu0 %v473
    %620 = vmatprep.subr.bf16.mxu0 %v482
    %621 = vmatpush1.bf16.msra.mxu0 %v481
    %622 = vmatprep.subr.bf16.mxu0 %v490
    %623 = vmatpush1.bf16.msra.mxu0 %v489
    %624 = vmatprep.subr.bf16.mxu0 %v498
    %625 = vmatpush1.bf16.msra.mxu0 %v497
    %626 = vmatprep.subr.bf16.mxu0 0
    %627 = vmatpush1.bf16.msra.mxu0 0
    %628 = vmatprep.subr.bf16.mxu0 0
    %629 = vmatpush1.bf16.msra.mxu0 0
    %630 = vmatprep.subr.bf16.mxu0 0
    %631 = vmatpush1.bf16.msra.mxu0 0
    %632 = vmatprep.subr.bf16.mxu0 0
    %633 = vmatpush1.bf16.msra.mxu0 0
    %634 = vmatprep.subr.bf16.mxu0 0
    %635 = vmatpush1.bf16.msra.mxu0 0
    %636 = vmatprep.subr.bf16.mxu0 0
    %637 = vmatpush1.bf16.msra.mxu0 0
    %638 = vmatprep.subr.bf16.mxu0 0
    %639 = vmatpush1.bf16.msra.mxu0 0
    %640 = vmatprep.subr.bf16.mxu0 0
    %641 = vmatpush1.bf16.msra.mxu0 0
    %642 = vmatprep.mubr.bf16.mxu0 0
    %643 = vmatmul.mubr.bf16.gmra.mrb[0].mxu0 %v245
    %v644 = vpop.f32.mrb[0].mxu0
    %v645 = vadd.f32 %v212, %v644
    %v646 = vpop.f32.mrb[0].mxu0
    %v647 = vadd.f32 %v216, %v646
    %v648 = vpop.f32.mrb[0].mxu0
    %v649 = vadd.f32 %v212, %v648
    %v650 = vpop.f32.mrb[0].mxu0
    %v651 = vadd.f32 %v216, %v650
    %652 = vdwg.mxu0
    %653 = vmatprep.subr.bf16.mxu0 %v444
    %654 = vmatpush1.bf16.msra.mxu0 %v443
    %655 = vmatprep.subr.bf16.mxu0 %v452
    %656 = vmatpush1.bf16.msra.mxu0 %v451
    %657 = vmatprep.subr.bf16.mxu0 %v460
    %658 = vmatpush1.bf16.msra.mxu0 %v459
    %659 = vmatprep.subr.bf16.mxu0 %v468
    %660 = vmatpush1.bf16.msra.mxu0 %v467
    %661 = vmatprep.subr.bf16.mxu0 %v476
    %662 = vmatpush1.bf16.msra.mxu0 %v475
    %663 = vmatprep.subr.bf16.mxu0 %v484
    %664 = vmatpush1.bf16.msra.mxu0 %v483
    %665 = vmatprep.subr.bf16.mxu0 %v492
    %666 = vmatpush1.bf16.msra.mxu0 %v491
    %667 = vmatprep.subr.bf16.mxu0 %v500
    %668 = vmatpush1.bf16.msra.mxu0 %v499
    %669 = vmatprep.subr.bf16.mxu0 0
    %670 = vmatpush1.bf16.msra.mxu0 0
    %671 = vmatprep.subr.bf16.mxu0 0
    %672 = vmatpush1.bf16.msra.mxu0 0
    %673 = vmatprep.subr.bf16.mxu0 0
    %674 = vmatpush1.bf16.msra.mxu0 0
    %675 = vmatprep.subr.bf16.mxu0 0
    %676 = vmatpush1.bf16.msra.mxu0 0
    %677 = vmatprep.subr.bf16.mxu0 0
    %678 = vmatpush1.bf16.msra.mxu0 0
    %679 = vmatprep.subr.bf16.mxu0 0
    %680 = vmatpush1.bf16.msra.mxu0 0
    %681 = vmatprep.subr.bf16.mxu0 0
    %682 = vmatpush1.bf16.msra.mxu0 0
    %683 = vmatprep.subr.bf16.mxu0 0
    %684 = vmatpush1.bf16.msra.mxu0 0
    %685 = vmatprep.mubr.bf16.mxu0 0
    %686 = vmatmul.mubr.bf16.gmra.mrb[0].mxu0 %v245
    %v687 = vpop.f32.mrb[0].mxu0
    %v688 = vadd.f32 %v220, %v687
    %v689 = vpop.f32.mrb[0].mxu0
    %v690 = vadd.f32 %v224, %v689
    %v691 = vpop.f32.mrb[0].mxu0
    %v692 = vadd.f32 %v220, %v691
    %v693 = vpop.f32.mrb[0].mxu0
    %v694 = vadd.f32 %v224, %v693
    %695 = vdwg.mxu0
    %696 = vmatprep.subr.bf16.mxu0 %v446
    %697 = vmatpush1.bf16.msra.mxu0 %v445
    %698 = vmatprep.subr.bf16.mxu0 %v454
    %699 = vmatpush1.bf16.msra.mxu0 %v453
    %700 = vmatprep.subr.bf16.mxu0 %v462
    %701 = vmatpush1.bf16.msra.mxu0 %v461
    %702 = vmatprep.subr.bf16.mxu0 %v470
    %703 = vmatpush1.bf16.msra.mxu0 %v469
    %704 = vmatprep.subr.bf16.mxu0 %v478
    %705 = vmatpush1.bf16.msra.mxu0 %v477
    %706 = vmatprep.subr.bf16.mxu0 %v486
    %707 = vmatpush1.bf16.msra.mxu0 %v485
    %708 = vmatprep.subr.bf16.mxu0 %v494
    %709 = vmatpush1.bf16.msra.mxu0 %v493
    %710 = vmatprep.subr.bf16.mxu0 %v502
    %711 = vmatpush1.bf16.msra.mxu0 %v501
    %712 = vmatprep.subr.bf16.mxu0 0
    %713 = vmatpush1.bf16.msra.mxu0 0
    %714 = vmatprep.subr.bf16.mxu0 0
    %715 = vmatpush1.bf16.msra.mxu0 0
    %716 = vmatprep.subr.bf16.mxu0 0
    %717 = vmatpush1.bf16.msra.mxu0 0
    %718 = vmatprep.subr.bf16.mxu0 0
    %719 = vmatpush1.bf16.msra.mxu0 0
    %720 = vmatprep.subr.bf16.mxu0 0
    %721 = vmatpush1.bf16.msra.mxu0 0
    %722 = vmatprep.subr.bf16.mxu0 0
    %723 = vmatpush1.bf16.msra.mxu0 0
    %724 = vmatprep.subr.bf16.mxu0 0
    %725 = vmatpush1.bf16.msra.mxu0 0
    %726 = vmatprep.subr.bf16.mxu0 0
    %727 = vmatpush1.bf16.msra.mxu0 0
    %728 = vmatprep.mubr.bf16.mxu0 0
    %729 = vmatmul.mubr.bf16.gmra.mrb[0].mxu0 %v245
    %v730 = vpop.f32.mrb[0].mxu0
    %v731 = vadd.f32 %v228, %v730
    %v732 = vpop.f32.mrb[0].mxu0
    %v733 = vadd.f32 %v232, %v732
    %v734 = vpop.f32.mrb[0].mxu0
    %v735 = vadd.f32 %v228, %v734
    %v736 = vpop.f32.mrb[0].mxu0
    %v737 = vadd.f32 %v232, %v736
    %738 = vdwg.mxu0
    %v739 = vmax.f32 %v602, 0.0
    %v740 = vmax.f32 %v604, 0.0
    %v741 = vmax.f32 %v645, 0.0
    %v742 = vmax.f32 %v647, 0.0
    %v743 = vmax.f32 %v688, 0.0
    %v744 = vmax.f32 %v690, 0.0
    %v745 = vmax.f32 %v731, 0.0
    %v746 = vmax.f32 %v733, 0.0
    %v747 = vmax.f32 %v606, 0.0
    %v748 = vmax.f32 %v608, 0.0
    %v749 = vmax.f32 %v649, 0.0
    %v750 = vmax.f32 %v651, 0.0
    %v751 = vmax.f32 %v692, 0.0
    %v752 = vmax.f32 %v694, 0.0
    %v753 = vmax.f32 %v735, 0.0
    %v754 = vmax.f32 %v737, 0.0
    %v755 = vpack.c.bf16 %v747, %v739
    %v756 = vpack.c.bf16 %v748, %v740
    %v757 = vpack.c.bf16 %v749, %v741
    %v758 = vpack.c.bf16 %v750, %v742
    %v759 = vpack.c.bf16 %v751, %v743
    %v760 = vpack.c.bf16 %v752, %v744
    %v761 = vpack.c.bf16 %v753, %v745
    %v762 = vpack.c.bf16 %v754, %v746
    %v763 = vld [vmem:[#allocation8] sm:$0xff]
    %v764 = vld [vmem:[#allocation8 + $0x8] sm:$0xff]
    %v765 = vld [vmem:[#allocation8 + $0x10] sm:$0xff]
    %v766 = vld [vmem:[#allocation8 + $0x18] sm:$0xff]
    %v767 = vld [vmem:[#allocation8 + $0x20] sm:$0xff]
    %v768 = vld [vmem:[#allocation8 + $0x28] sm:$0xff]
    %v769 = vld [vmem:[#allocation8 + $0x30] sm:$0xff]
    %v770 = vld [vmem:[#allocation8 + $0x38] sm:$0xff]
    %v771 = vld [vmem:[#allocation8 + $0x40] sm:$0xff]
    %v772 = vld [vmem:[#allocation8 + $0x48] sm:$0xff]
    %v773 = vld [vmem:[#allocation8 + $0x50] sm:$0xff]
    %v774 = vld [vmem:[#allocation8 + $0x58] sm:$0xff]
    %v775 = vld [vmem:[#allocation8 + $0x60] sm:$0xff]
    %v776 = vld [vmem:[#allocation8 + $0x68] sm:$0xff]
    %v777 = vld [vmem:[#allocation8 + $0x70] sm:$0xff]
    %v778 = vld [vmem:[#allocation8 + $0x78] sm:$0xff]
    %v779 = vld [vmem:[#allocation8 + $0x80] sm:$0xff]
    %v780 = vld [vmem:[#allocation8 + $0x88] sm:$0xff]
    %v781 = vld [vmem:[#allocation8 + $0x90] sm:$0xff]
    %v782 = vld [vmem:[#allocation8 + $0x98] sm:$0xff]
    %v783 = vld [vmem:[#allocation8 + $0xa0] sm:$0xff]
    %v784 = vld [vmem:[#allocation8 + $0xa8] sm:$0xff]
    %v785 = vld [vmem:[#allocation8 + $0xb0] sm:$0xff]
    %v786 = vld [vmem:[#allocation8 + $0xb8] sm:$0xff]
    %v787 = vld [vmem:[#allocation8 + $0xc0] sm:$0xff]
    %v788 = vld [vmem:[#allocation8 + $0xc8] sm:$0xff]
    %v789 = vld [vmem:[#allocation8 + $0xd0] sm:$0xff]
    %v790 = vld [vmem:[#allocation8 + $0xd8] sm:$0xff]
    %v791 = vld [vmem:[#allocation8 + $0xe0] sm:$0xff]
    %v792 = vld [vmem:[#allocation8 + $0xe8] sm:$0xff]
    %v793 = vld [vmem:[#allocation8 + $0xf0] sm:$0xff]
    %v794 = vld [vmem:[#allocation8 + $0xf8] sm:$0xff]
    %v795 = vld [vmem:[#allocation8 + $0x100] sm:$0xff]
    %v796 = vld [vmem:[#allocation8 + $0x108] sm:$0xff]
    %v797 = vld [vmem:[#allocation8 + $0x110] sm:$0xff]
    %v798 = vld [vmem:[#allocation8 + $0x118] sm:$0xff]
    %v799 = vld [vmem:[#allocation8 + $0x120] sm:$0xff]
    %v800 = vld [vmem:[#allocation8 + $0x128] sm:$0xff]
    %v801 = vld [vmem:[#allocation8 + $0x130] sm:$0xff]
    %v802 = vld [vmem:[#allocation8 + $0x138] sm:$0xff]
    %v803 = vld [vmem:[#allocation8 + $0x140] sm:$0xff]
    %v804 = vld [vmem:[#allocation8 + $0x148] sm:$0xff]
    %v805 = vld [vmem:[#allocation8 + $0x150] sm:$0xff]
    %v806 = vld [vmem:[#allocation8 + $0x158] sm:$0xff]
    %v807 = vld [vmem:[#allocation8 + $0x160] sm:$0xff]
    %v808 = vld [vmem:[#allocation8 + $0x168] sm:$0xff]
    %v809 = vld [vmem:[#allocation8 + $0x170] sm:$0xff]
    %v810 = vld [vmem:[#allocation8 + $0x178] sm:$0xff]
    %v811 = vld [vmem:[#allocation8 + $0x180] sm:$0xff]
    %v812 = vld [vmem:[#allocation8 + $0x188] sm:$0xff]
    %v813 = vld [vmem:[#allocation8 + $0x190] sm:$0xff]
    %v814 = vld [vmem:[#allocation8 + $0x198] sm:$0xff]
    %v815 = vld [vmem:[#allocation8 + $0x1a0] sm:$0xff]
    %v816 = vld [vmem:[#allocation8 + $0x1a8] sm:$0xff]
    %v817 = vld [vmem:[#allocation8 + $0x1b0] sm:$0xff]
    %v818 = vld [vmem:[#allocation8 + $0x1b8] sm:$0xff]
    %v819 = vld [vmem:[#allocation8 + $0x1c0] sm:$0xff]
    %v820 = vld [vmem:[#allocation8 + $0x1c8] sm:$0xff]
    %v821 = vld [vmem:[#allocation8 + $0x1d0] sm:$0xff]
    %v822 = vld [vmem:[#allocation8 + $0x1d8] sm:$0xff]
    %v823 = vld [vmem:[#allocation8 + $0x1e0] sm:$0xff]
    %v824 = vld [vmem:[#allocation8 + $0x1e8] sm:$0xff]
    %v825 = vld [vmem:[#allocation8 + $0x1f0] sm:$0xff]
    %v826 = vld [vmem:[#allocation8 + $0x1f8] sm:$0xff]
    %v827 = vld [vmem:[#allocation8 + $0x200] sm:$0xff]
    %v828 = vld [vmem:[#allocation8 + $0x208] sm:$0xff]
    %v829 = vld [vmem:[#allocation8 + $0x210] sm:$0xff]
    %v830 = vld [vmem:[#allocation8 + $0x218] sm:$0xff]
    %v831 = vld [vmem:[#allocation8 + $0x220] sm:$0xff]
    %v832 = vld [vmem:[#allocation8 + $0x228] sm:$0xff]
    %v833 = vld [vmem:[#allocation8 + $0x230] sm:$0xff]
    %v834 = vld [vmem:[#allocation8 + $0x238] sm:$0xff]
    %v835 = vld [vmem:[#allocation8 + $0x240] sm:$0xff]
    %v836 = vld [vmem:[#allocation8 + $0x248] sm:$0xff]
    %v837 = vld [vmem:[#allocation8 + $0x250] sm:$0xff]
    %v838 = vld [vmem:[#allocation8 + $0x258] sm:$0xff]
    %v839 = vld [vmem:[#allocation8 + $0x260] sm:$0xff]
    %v840 = vld [vmem:[#allocation8 + $0x268] sm:$0xff]
    %v841 = vld [vmem:[#allocation8 + $0x270] sm:$0xff]
    %v842 = vld [vmem:[#allocation8 + $0x278] sm:$0xff]
    %v843 = vld [vmem:[#allocation8 + $0x280] sm:$0xff]
    %v844 = vld [vmem:[#allocation8 + $0x288] sm:$0xff]
    %v845 = vld [vmem:[#allocation8 + $0x290] sm:$0xff]
    %v846 = vld [vmem:[#allocation8 + $0x298] sm:$0xff]
    %v847 = vld [vmem:[#allocation8 + $0x2a0] sm:$0xff]
    %v848 = vld [vmem:[#allocation8 + $0x2a8] sm:$0xff]
    %v849 = vld [vmem:[#allocation8 + $0x2b0] sm:$0xff]
    %v850 = vld [vmem:[#allocation8 + $0x2b8] sm:$0xff]
    %v851 = vld [vmem:[#allocation8 + $0x2c0] sm:$0xff]
    %v852 = vld [vmem:[#allocation8 + $0x2c8] sm:$0xff]
    %v853 = vld [vmem:[#allocation8 + $0x2d0] sm:$0xff]
    %v854 = vld [vmem:[#allocation8 + $0x2d8] sm:$0xff]
    %v855 = vld [vmem:[#allocation8 + $0x2e0] sm:$0xff]
    %v856 = vld [vmem:[#allocation8 + $0x2e8] sm:$0xff]
    %v857 = vld [vmem:[#allocation8 + $0x2f0] sm:$0xff]
    %v858 = vld [vmem:[#allocation8 + $0x2f8] sm:$0xff]
    %v859 = vld [vmem:[#allocation8 + $0x300] sm:$0xff]
    %v860 = vld [vmem:[#allocation8 + $0x308] sm:$0xff]
    %v861 = vld [vmem:[#allocation8 + $0x310] sm:$0xff]
    %v862 = vld [vmem:[#allocation8 + $0x318] sm:$0xff]
    %v863 = vld [vmem:[#allocation8 + $0x320] sm:$0xff]
    %v864 = vld [vmem:[#allocation8 + $0x328] sm:$0xff]
    %v865 = vld [vmem:[#allocation8 + $0x330] sm:$0xff]
    %v866 = vld [vmem:[#allocation8 + $0x338] sm:$0xff]
    %v867 = vld [vmem:[#allocation8 + $0x340] sm:$0xff]
    %v868 = vld [vmem:[#allocation8 + $0x348] sm:$0xff]
    %v869 = vld [vmem:[#allocation8 + $0x350] sm:$0xff]
    %v870 = vld [vmem:[#allocation8 + $0x358] sm:$0xff]
    %v871 = vld [vmem:[#allocation8 + $0x360] sm:$0xff]
    %v872 = vld [vmem:[#allocation8 + $0x368] sm:$0xff]
    %v873 = vld [vmem:[#allocation8 + $0x370] sm:$0xff]
    %v874 = vld [vmem:[#allocation8 + $0x378] sm:$0xff]
    %v875 = vld [vmem:[#allocation8 + $0x380] sm:$0xff]
    %v876 = vld [vmem:[#allocation8 + $0x388] sm:$0xff]
    %v877 = vld [vmem:[#allocation8 + $0x390] sm:$0xff]
    %v878 = vld [vmem:[#allocation8 + $0x398] sm:$0xff]
    %v879 = vld [vmem:[#allocation8 + $0x3a0] sm:$0xff]
    %v880 = vld [vmem:[#allocation8 + $0x3a8] sm:$0xff]
    %v881 = vld [vmem:[#allocation8 + $0x3b0] sm:$0xff]
    %v882 = vld [vmem:[#allocation8 + $0x3b8] sm:$0xff]
    %v883 = vld [vmem:[#allocation8 + $0x3c0] sm:$0xff]
    %v884 = vld [vmem:[#allocation8 + $0x3c8] sm:$0xff]
    %v885 = vld [vmem:[#allocation8 + $0x3d0] sm:$0xff]
    %v886 = vld [vmem:[#allocation8 + $0x3d8] sm:$0xff]
    %v887 = vld [vmem:[#allocation8 + $0x3e0] sm:$0xff]
    %v888 = vld [vmem:[#allocation8 + $0x3e8] sm:$0xff]
    %v889 = vld [vmem:[#allocation8 + $0x3f0] sm:$0xff]
    %v890 = vld [vmem:[#allocation8 + $0x3f8] sm:$0xff]
    %v891 = vld [vmem:[#allocation8 + $0x400] sm:$0xff]
    %v892 = vld [vmem:[#allocation8 + $0x408] sm:$0xff]
    %v893 = vld [vmem:[#allocation8 + $0x410] sm:$0xff]
    %v894 = vld [vmem:[#allocation8 + $0x418] sm:$0xff]
    %v895 = vld [vmem:[#allocation8 + $0x420] sm:$0xff]
    %v896 = vld [vmem:[#allocation8 + $0x428] sm:$0xff]
    %v897 = vld [vmem:[#allocation8 + $0x430] sm:$0xff]
    %v898 = vld [vmem:[#allocation8 + $0x438] sm:$0xff]
    %v899 = vld [vmem:[#allocation8 + $0x440] sm:$0xff]
    %v900 = vld [vmem:[#allocation8 + $0x448] sm:$0xff]
    %v901 = vld [vmem:[#allocation8 + $0x450] sm:$0xff]
    %v902 = vld [vmem:[#allocation8 + $0x458] sm:$0xff]
    %v903 = vld [vmem:[#allocation8 + $0x460] sm:$0xff]
    %v904 = vld [vmem:[#allocation8 + $0x468] sm:$0xff]
    %v905 = vld [vmem:[#allocation8 + $0x470] sm:$0xff]
    %v906 = vld [vmem:[#allocation8 + $0x478] sm:$0xff]
    %v907 = vld [vmem:[#allocation8 + $0x480] sm:$0xff]
    %v908 = vld [vmem:[#allocation8 + $0x488] sm:$0xff]
    %v909 = vld [vmem:[#allocation8 + $0x490] sm:$0xff]
    %v910 = vld [vmem:[#allocation8 + $0x498] sm:$0xff]
    %v911 = vld [vmem:[#allocation8 + $0x4a0] sm:$0xff]
    %v912 = vld [vmem:[#allocation8 + $0x4a8] sm:$0xff]
    %v913 = vld [vmem:[#allocation8 + $0x4b0] sm:$0xff]
    %v914 = vld [vmem:[#allocation8 + $0x4b8] sm:$0xff]
    %v915 = vld [vmem:[#allocation8 + $0x4c0] sm:$0xff]
    %v916 = vld [vmem:[#allocation8 + $0x4c8] sm:$0xff]
    %v917 = vld [vmem:[#allocation8 + $0x4d0] sm:$0xff]
    %v918 = vld [vmem:[#allocation8 + $0x4d8] sm:$0xff]
    %v919 = vld [vmem:[#allocation8 + $0x4e0] sm:$0xff]
    %v920 = vld [vmem:[#allocation8 + $0x4e8] sm:$0xff]
    %v921 = vld [vmem:[#allocation8 + $0x4f0] sm:$0xff]
    %v922 = vld [vmem:[#allocation8 + $0x4f8] sm:$0xff]
    %v923 = vld [vmem:[#allocation8 + $0x500] sm:$0xff]
    %v924 = vld [vmem:[#allocation8 + $0x508] sm:$0xff]
    %v925 = vld [vmem:[#allocation8 + $0x510] sm:$0xff]
    %v926 = vld [vmem:[#allocation8 + $0x518] sm:$0xff]
    %v927 = vld [vmem:[#allocation8 + $0x520] sm:$0xff]
    %v928 = vld [vmem:[#allocation8 + $0x528] sm:$0xff]
    %v929 = vld [vmem:[#allocation8 + $0x530] sm:$0xff]
    %v930 = vld [vmem:[#allocation8 + $0x538] sm:$0xff]
    %v931 = vld [vmem:[#allocation8 + $0x540] sm:$0xff]
    %v932 = vld [vmem:[#allocation8 + $0x548] sm:$0xff]
    %v933 = vld [vmem:[#allocation8 + $0x550] sm:$0xff]
    %v934 = vld [vmem:[#allocation8 + $0x558] sm:$0xff]
    %v935 = vld [vmem:[#allocation8 + $0x560] sm:$0xff]
    %v936 = vld [vmem:[#allocation8 + $0x568] sm:$0xff]
    %v937 = vld [vmem:[#allocation8 + $0x570] sm:$0xff]
    %v938 = vld [vmem:[#allocation8 + $0x578] sm:$0xff]
    %v939 = vld [vmem:[#allocation8 + $0x580] sm:$0xff]
    %v940 = vld [vmem:[#allocation8 + $0x588] sm:$0xff]
    %v941 = vld [vmem:[#allocation8 + $0x590] sm:$0xff]
    %v942 = vld [vmem:[#allocation8 + $0x598] sm:$0xff]
    %v943 = vld [vmem:[#allocation8 + $0x5a0] sm:$0xff]
    %v944 = vld [vmem:[#allocation8 + $0x5a8] sm:$0xff]
    %v945 = vld [vmem:[#allocation8 + $0x5b0] sm:$0xff]
    %v946 = vld [vmem:[#allocation8 + $0x5b8] sm:$0xff]
    %v947 = vld [vmem:[#allocation8 + $0x5c0] sm:$0xff]
    %v948 = vld [vmem:[#allocation8 + $0x5c8] sm:$0xff]
    %v949 = vld [vmem:[#allocation8 + $0x5d0] sm:$0xff]
    %v950 = vld [vmem:[#allocation8 + $0x5d8] sm:$0xff]
    %v951 = vld [vmem:[#allocation8 + $0x5e0] sm:$0xff]
    %v952 = vld [vmem:[#allocation8 + $0x5e8] sm:$0xff]
    %v953 = vld [vmem:[#allocation8 + $0x5f0] sm:$0xff]
    %v954 = vld [vmem:[#allocation8 + $0x5f8] sm:$0xff]
    %v955 = vld [vmem:[#allocation8 + $0x600] sm:$0xff]
    %v956 = vld [vmem:[#allocation8 + $0x608] sm:$0xff]
    %v957 = vld [vmem:[#allocation8 + $0x610] sm:$0xff]
    %v958 = vld [vmem:[#allocation8 + $0x618] sm:$0xff]
    %v959 = vld [vmem:[#allocation8 + $0x620] sm:$0xff]
    %v960 = vld [vmem:[#allocation8 + $0x628] sm:$0xff]
    %v961 = vld [vmem:[#allocation8 + $0x630] sm:$0xff]
    %v962 = vld [vmem:[#allocation8 + $0x638] sm:$0xff]
    %v963 = vld [vmem:[#allocation8 + $0x640] sm:$0xff]
    %v964 = vld [vmem:[#allocation8 + $0x648] sm:$0xff]
    %v965 = vld [vmem:[#allocation8 + $0x650] sm:$0xff]
    %v966 = vld [vmem:[#allocation8 + $0x658] sm:$0xff]
    %v967 = vld [vmem:[#allocation8 + $0x660] sm:$0xff]
    %v968 = vld [vmem:[#allocation8 + $0x668] sm:$0xff]
    %v969 = vld [vmem:[#allocation8 + $0x670] sm:$0xff]
    %v970 = vld [vmem:[#allocation8 + $0x678] sm:$0xff]
    %v971 = vld [vmem:[#allocation8 + $0x680] sm:$0xff]
    %v972 = vld [vmem:[#allocation8 + $0x688] sm:$0xff]
    %v973 = vld [vmem:[#allocation8 + $0x690] sm:$0xff]
    %v974 = vld [vmem:[#allocation8 + $0x698] sm:$0xff]
    %v975 = vld [vmem:[#allocation8 + $0x6a0] sm:$0xff]
    %v976 = vld [vmem:[#allocation8 + $0x6a8] sm:$0xff]
    %v977 = vld [vmem:[#allocation8 + $0x6b0] sm:$0xff]
    %v978 = vld [vmem:[#allocation8 + $0x6b8] sm:$0xff]
    %v979 = vld [vmem:[#allocation8 + $0x6c0] sm:$0xff]
    %v980 = vld [vmem:[#allocation8 + $0x6c8] sm:$0xff]
    %v981 = vld [vmem:[#allocation8 + $0x6d0] sm:$0xff]
    %v982 = vld [vmem:[#allocation8 + $0x6d8] sm:$0xff]
    %v983 = vld [vmem:[#allocation8 + $0x6e0] sm:$0xff]
    %v984 = vld [vmem:[#allocation8 + $0x6e8] sm:$0xff]
    %v985 = vld [vmem:[#allocation8 + $0x6f0] sm:$0xff]
    %v986 = vld [vmem:[#allocation8 + $0x6f8] sm:$0xff]
    %v987 = vld [vmem:[#allocation8 + $0x700] sm:$0xff]
    %v988 = vld [vmem:[#allocation8 + $0x708] sm:$0xff]
    %v989 = vld [vmem:[#allocation8 + $0x710] sm:$0xff]
    %v990 = vld [vmem:[#allocation8 + $0x718] sm:$0xff]
    %v991 = vld [vmem:[#allocation8 + $0x720] sm:$0xff]
    %v992 = vld [vmem:[#allocation8 + $0x728] sm:$0xff]
    %v993 = vld [vmem:[#allocation8 + $0x730] sm:$0xff]
    %v994 = vld [vmem:[#allocation8 + $0x738] sm:$0xff]
    %v995 = vld [vmem:[#allocation8 + $0x740] sm:$0xff]
    %v996 = vld [vmem:[#allocation8 + $0x748] sm:$0xff]
    %v997 = vld [vmem:[#allocation8 + $0x750] sm:$0xff]
    %v998 = vld [vmem:[#allocation8 + $0x758] sm:$0xff]
    %v999 = vld [vmem:[#allocation8 + $0x760] sm:$0xff]
    %v1000 = vld [vmem:[#allocation8 + $0x768] sm:$0xff]
    %v1001 = vld [vmem:[#allocation8 + $0x770] sm:$0xff]
    %v1002 = vld [vmem:[#allocation8 + $0x778] sm:$0xff]
    %v1003 = vld [vmem:[#allocation8 + $0x780] sm:$0xff]
    %v1004 = vld [vmem:[#allocation8 + $0x788] sm:$0xff]
    %v1005 = vld [vmem:[#allocation8 + $0x790] sm:$0xff]
    %v1006 = vld [vmem:[#allocation8 + $0x798] sm:$0xff]
    %v1007 = vld [vmem:[#allocation8 + $0x7a0] sm:$0xff]
    %v1008 = vld [vmem:[#allocation8 + $0x7a8] sm:$0xff]
    %v1009 = vld [vmem:[#allocation8 + $0x7b0] sm:$0xff]
    %v1010 = vld [vmem:[#allocation8 + $0x7b8] sm:$0xff]
    %v1011 = vld [vmem:[#allocation8 + $0x7c0] sm:$0xff]
    %v1012 = vld [vmem:[#allocation8 + $0x7c8] sm:$0xff]
    %v1013 = vld [vmem:[#allocation8 + $0x7d0] sm:$0xff]
    %v1014 = vld [vmem:[#allocation8 + $0x7d8] sm:$0xff]
    %v1015 = vld [vmem:[#allocation8 + $0x7e0] sm:$0xff]
    %v1016 = vld [vmem:[#allocation8 + $0x7e8] sm:$0xff]
    %v1017 = vld [vmem:[#allocation8 + $0x7f0] sm:$0xff]
    %v1018 = vld [vmem:[#allocation8 + $0x7f8] sm:$0xff]
    %v1019 = vld [vmem:[%s4] sm:$0xf]
    %v1021 = vlaneseq
    %v1022 = vshrl.u32 %v1021, 7
    %v1023 = vsub.s32 0, %v1022
    %v1024 = vrot.slane %v1019, %v1023
    %v1025 = vlaneseq
    %v1026 = vshrl.u32 %v1025, 7
    %v1027 = vsub.s32 1, %v1026
    %v1028 = vrot.slane %v1019, %v1027
    %v1029 = vlaneseq
    %v1030 = vshrl.u32 %v1029, 7
    %v1031 = vsub.s32 2, %v1030
    %v1032 = vrot.slane %v1019, %v1031
    %v1033 = vlaneseq
    %v1034 = vshrl.u32 %v1033, 7
    %v1035 = vsub.s32 3, %v1034
    %v1036 = vrot.slane %v1019, %v1035
    %v1297 = vunpack.c.l.b16 %v763
    %v1298 = vunpack.c.h.b16 %v763
    %v1299 = vunpack.c.l.b16 %v764
    %v1300 = vunpack.c.h.b16 %v764
    %v1301 = vunpack.c.l.b16 %v765
    %v1302 = vunpack.c.h.b16 %v765
    %v1303 = vunpack.c.l.b16 %v766
    %v1304 = vunpack.c.h.b16 %v766
    %v1305 = vunpack.c.l.b16 %v767
    %v1306 = vunpack.c.h.b16 %v767
    %v1307 = vunpack.c.l.b16 %v768
    %v1308 = vunpack.c.h.b16 %v768
    %v1309 = vunpack.c.l.b16 %v769
    %v1310 = vunpack.c.h.b16 %v769
    %v1311 = vunpack.c.l.b16 %v770
    %v1312 = vunpack.c.h.b16 %v770
    %v1313 = vunpack.c.l.b16 %v771
    %v1314 = vunpack.c.h.b16 %v771
    %v1315 = vunpack.c.l.b16 %v772
    %v1316 = vunpack.c.h.b16 %v772
    %v1317 = vunpack.c.l.b16 %v773
    %v1318 = vunpack.c.h.b16 %v773
    %v1319 = vunpack.c.l.b16 %v774
    %v1320 = vunpack.c.h.b16 %v774
    %v1321 = vunpack.c.l.b16 %v775
    %v1322 = vunpack.c.h.b16 %v775
    %v1323 = vunpack.c.l.b16 %v776
    %v1324 = vunpack.c.h.b16 %v776
    %v1325 = vunpack.c.l.b16 %v777
    %v1326 = vunpack.c.h.b16 %v777
    %v1327 = vunpack.c.l.b16 %v778
    %v1328 = vunpack.c.h.b16 %v778
    %v1329 = vunpack.c.l.b16 %v779
    %v1330 = vunpack.c.h.b16 %v779
    %v1331 = vunpack.c.l.b16 %v780
    %v1332 = vunpack.c.h.b16 %v780
    %v1333 = vunpack.c.l.b16 %v781
    %v1334 = vunpack.c.h.b16 %v781
    %v1335 = vunpack.c.l.b16 %v782
    %v1336 = vunpack.c.h.b16 %v782
    %v1337 = vunpack.c.l.b16 %v783
    %v1338 = vunpack.c.h.b16 %v783
    %v1339 = vunpack.c.l.b16 %v784
    %v1340 = vunpack.c.h.b16 %v784
    %v1341 = vunpack.c.l.b16 %v785
    %v1342 = vunpack.c.h.b16 %v785
    %v1343 = vunpack.c.l.b16 %v786
    %v1344 = vunpack.c.h.b16 %v786
    %v1345 = vunpack.c.l.b16 %v787
    %v1346 = vunpack.c.h.b16 %v787
    %v1347 = vunpack.c.l.b16 %v788
    %v1348 = vunpack.c.h.b16 %v788
    %v1349 = vunpack.c.l.b16 %v789
    %v1350 = vunpack.c.h.b16 %v789
    %v1351 = vunpack.c.l.b16 %v790
    %v1352 = vunpack.c.h.b16 %v790
    %v1353 = vunpack.c.l.b16 %v791
    %v1354 = vunpack.c.h.b16 %v791
    %v1355 = vunpack.c.l.b16 %v792
    %v1356 = vunpack.c.h.b16 %v792
    %v1357 = vunpack.c.l.b16 %v793
    %v1358 = vunpack.c.h.b16 %v793
    %v1359 = vunpack.c.l.b16 %v794
    %v1360 = vunpack.c.h.b16 %v794
    %v1361 = vunpack.c.l.b16 %v795
    %v1362 = vunpack.c.h.b16 %v795
    %v1363 = vunpack.c.l.b16 %v796
    %v1364 = vunpack.c.h.b16 %v796
    %v1365 = vunpack.c.l.b16 %v797
    %v1366 = vunpack.c.h.b16 %v797
    %v1367 = vunpack.c.l.b16 %v798
    %v1368 = vunpack.c.h.b16 %v798
    %v1369 = vunpack.c.l.b16 %v799
    %v1370 = vunpack.c.h.b16 %v799
    %v1371 = vunpack.c.l.b16 %v800
    %v1372 = vunpack.c.h.b16 %v800
    %v1373 = vunpack.c.l.b16 %v801
    %v1374 = vunpack.c.h.b16 %v801
    %v1375 = vunpack.c.l.b16 %v802
    %v1376 = vunpack.c.h.b16 %v802
    %v1377 = vunpack.c.l.b16 %v803
    %v1378 = vunpack.c.h.b16 %v803
    %v1379 = vunpack.c.l.b16 %v804
    %v1380 = vunpack.c.h.b16 %v804
    %v1381 = vunpack.c.l.b16 %v805
    %v1382 = vunpack.c.h.b16 %v805
    %v1383 = vunpack.c.l.b16 %v806
    %v1384 = vunpack.c.h.b16 %v806
    %v1385 = vunpack.c.l.b16 %v807
    %v1386 = vunpack.c.h.b16 %v807
    %v1387 = vunpack.c.l.b16 %v808
    %v1388 = vunpack.c.h.b16 %v808
    %v1389 = vunpack.c.l.b16 %v809
    %v1390 = vunpack.c.h.b16 %v809
    %v1391 = vunpack.c.l.b16 %v810
    %v1392 = vunpack.c.h.b16 %v810
    %v1393 = vunpack.c.l.b16 %v811
    %v1394 = vunpack.c.h.b16 %v811
    %v1395 = vunpack.c.l.b16 %v812
    %v1396 = vunpack.c.h.b16 %v812
    %v1397 = vunpack.c.l.b16 %v813
    %v1398 = vunpack.c.h.b16 %v813
    %v1399 = vunpack.c.l.b16 %v814
    %v1400 = vunpack.c.h.b16 %v814
    %v1401 = vunpack.c.l.b16 %v815
    %v1402 = vunpack.c.h.b16 %v815
    %v1403 = vunpack.c.l.b16 %v816
    %v1404 = vunpack.c.h.b16 %v816
    %v1405 = vunpack.c.l.b16 %v817
    %v1406 = vunpack.c.h.b16 %v817
    %v1407 = vunpack.c.l.b16 %v818
    %v1408 = vunpack.c.h.b16 %v818
    %v1409 = vunpack.c.l.b16 %v819
    %v1410 = vunpack.c.h.b16 %v819
    %v1411 = vunpack.c.l.b16 %v820
    %v1412 = vunpack.c.h.b16 %v820
    %v1413 = vunpack.c.l.b16 %v821
    %v1414 = vunpack.c.h.b16 %v821
    %v1415 = vunpack.c.l.b16 %v822
    %v1416 = vunpack.c.h.b16 %v822
    %v1417 = vunpack.c.l.b16 %v823
    %v1418 = vunpack.c.h.b16 %v823
    %v1419 = vunpack.c.l.b16 %v824
    %v1420 = vunpack.c.h.b16 %v824
    %v1421 = vunpack.c.l.b16 %v825
    %v1422 = vunpack.c.h.b16 %v825
    %v1423 = vunpack.c.l.b16 %v826
    %v1424 = vunpack.c.h.b16 %v826
    %v1425 = vunpack.c.l.b16 %v827
    %v1426 = vunpack.c.h.b16 %v827
    %v1427 = vunpack.c.l.b16 %v828
    %v1428 = vunpack.c.h.b16 %v828
    %v1429 = vunpack.c.l.b16 %v829
    %v1430 = vunpack.c.h.b16 %v829
    %v1431 = vunpack.c.l.b16 %v830
    %v1432 = vunpack.c.h.b16 %v830
    %v1433 = vunpack.c.l.b16 %v831
    %v1434 = vunpack.c.h.b16 %v831
    %v1435 = vunpack.c.l.b16 %v832
    %v1436 = vunpack.c.h.b16 %v832
    %v1437 = vunpack.c.l.b16 %v833
    %v1438 = vunpack.c.h.b16 %v833
    %v1439 = vunpack.c.l.b16 %v834
    %v1440 = vunpack.c.h.b16 %v834
    %v1441 = vunpack.c.l.b16 %v835
    %v1442 = vunpack.c.h.b16 %v835
    %v1443 = vunpack.c.l.b16 %v836
    %v1444 = vunpack.c.h.b16 %v836
    %v1445 = vunpack.c.l.b16 %v837
    %v1446 = vunpack.c.h.b16 %v837
    %v1447 = vunpack.c.l.b16 %v838
    %v1448 = vunpack.c.h.b16 %v838
    %v1449 = vunpack.c.l.b16 %v839
    %v1450 = vunpack.c.h.b16 %v839
    %v1451 = vunpack.c.l.b16 %v840
    %v1452 = vunpack.c.h.b16 %v840
    %v1453 = vunpack.c.l.b16 %v841
    %v1454 = vunpack.c.h.b16 %v841
    %v1455 = vunpack.c.l.b16 %v842
    %v1456 = vunpack.c.h.b16 %v842
    %v1457 = vunpack.c.l.b16 %v843
    %v1458 = vunpack.c.h.b16 %v843
    %v1459 = vunpack.c.l.b16 %v844
    %v1460 = vunpack.c.h.b16 %v844
    %v1461 = vunpack.c.l.b16 %v845
    %v1462 = vunpack.c.h.b16 %v845
    %v1463 = vunpack.c.l.b16 %v846
    %v1464 = vunpack.c.h.b16 %v846
    %v1465 = vunpack.c.l.b16 %v847
    %v1466 = vunpack.c.h.b16 %v847
    %v1467 = vunpack.c.l.b16 %v848
    %v1468 = vunpack.c.h.b16 %v848
    %v1469 = vunpack.c.l.b16 %v849
    %v1470 = vunpack.c.h.b16 %v849
    %v1471 = vunpack.c.l.b16 %v850
    %v1472 = vunpack.c.h.b16 %v850
    %v1473 = vunpack.c.l.b16 %v851
    %v1474 = vunpack.c.h.b16 %v851
    %v1475 = vunpack.c.l.b16 %v852
    %v1476 = vunpack.c.h.b16 %v852
    %v1477 = vunpack.c.l.b16 %v853
    %v1478 = vunpack.c.h.b16 %v853
    %v1479 = vunpack.c.l.b16 %v854
    %v1480 = vunpack.c.h.b16 %v854
    %v1481 = vunpack.c.l.b16 %v855
    %v1482 = vunpack.c.h.b16 %v855
    %v1483 = vunpack.c.l.b16 %v856
    %v1484 = vunpack.c.h.b16 %v856
    %v1485 = vunpack.c.l.b16 %v857
    %v1486 = vunpack.c.h.b16 %v857
    %v1487 = vunpack.c.l.b16 %v858
    %v1488 = vunpack.c.h.b16 %v858
    %v1489 = vunpack.c.l.b16 %v859
    %v1490 = vunpack.c.h.b16 %v859
    %v1491 = vunpack.c.l.b16 %v860
    %v1492 = vunpack.c.h.b16 %v860
    %v1493 = vunpack.c.l.b16 %v861
    %v1494 = vunpack.c.h.b16 %v861
    %v1495 = vunpack.c.l.b16 %v862
    %v1496 = vunpack.c.h.b16 %v862
    %v1497 = vunpack.c.l.b16 %v863
    %v1498 = vunpack.c.h.b16 %v863
    %v1499 = vunpack.c.l.b16 %v864
    %v1500 = vunpack.c.h.b16 %v864
    %v1501 = vunpack.c.l.b16 %v865
    %v1502 = vunpack.c.h.b16 %v865
    %v1503 = vunpack.c.l.b16 %v866
    %v1504 = vunpack.c.h.b16 %v866
    %v1505 = vunpack.c.l.b16 %v867
    %v1506 = vunpack.c.h.b16 %v867
    %v1507 = vunpack.c.l.b16 %v868
    %v1508 = vunpack.c.h.b16 %v868
    %v1509 = vunpack.c.l.b16 %v869
    %v1510 = vunpack.c.h.b16 %v869
    %v1511 = vunpack.c.l.b16 %v870
    %v1512 = vunpack.c.h.b16 %v870
    %v1513 = vunpack.c.l.b16 %v871
    %v1514 = vunpack.c.h.b16 %v871
    %v1515 = vunpack.c.l.b16 %v872
    %v1516 = vunpack.c.h.b16 %v872
    %v1517 = vunpack.c.l.b16 %v873
    %v1518 = vunpack.c.h.b16 %v873
    %v1519 = vunpack.c.l.b16 %v874
    %v1520 = vunpack.c.h.b16 %v874
    %v1521 = vunpack.c.l.b16 %v875
    %v1522 = vunpack.c.h.b16 %v875
    %v1523 = vunpack.c.l.b16 %v876
    %v1524 = vunpack.c.h.b16 %v876
    %v1525 = vunpack.c.l.b16 %v877
    %v1526 = vunpack.c.h.b16 %v877
    %v1527 = vunpack.c.l.b16 %v878
    %v1528 = vunpack.c.h.b16 %v878
    %v1529 = vunpack.c.l.b16 %v879
    %v1530 = vunpack.c.h.b16 %v879
    %v1531 = vunpack.c.l.b16 %v880
    %v1532 = vunpack.c.h.b16 %v880
    %v1533 = vunpack.c.l.b16 %v881
    %v1534 = vunpack.c.h.b16 %v881
    %v1535 = vunpack.c.l.b16 %v882
    %v1536 = vunpack.c.h.b16 %v882
    %v1537 = vunpack.c.l.b16 %v883
    %v1538 = vunpack.c.h.b16 %v883
    %v1539 = vunpack.c.l.b16 %v884
    %v1540 = vunpack.c.h.b16 %v884
    %v1541 = vunpack.c.l.b16 %v885
    %v1542 = vunpack.c.h.b16 %v885
    %v1543 = vunpack.c.l.b16 %v886
    %v1544 = vunpack.c.h.b16 %v886
    %v1545 = vunpack.c.l.b16 %v887
    %v1546 = vunpack.c.h.b16 %v887
    %v1547 = vunpack.c.l.b16 %v888
    %v1548 = vunpack.c.h.b16 %v888
    %v1549 = vunpack.c.l.b16 %v889
    %v1550 = vunpack.c.h.b16 %v889
    %v1551 = vunpack.c.l.b16 %v890
    %v1552 = vunpack.c.h.b16 %v890
    %v1553 = vunpack.c.l.b16 %v891
    %v1554 = vunpack.c.h.b16 %v891
    %v1555 = vunpack.c.l.b16 %v892
    %v1556 = vunpack.c.h.b16 %v892
    %v1557 = vunpack.c.l.b16 %v893
    %v1558 = vunpack.c.h.b16 %v893
    %v1559 = vunpack.c.l.b16 %v894
    %v1560 = vunpack.c.h.b16 %v894
    %v1561 = vunpack.c.l.b16 %v895
    %v1562 = vunpack.c.h.b16 %v895
    %v1563 = vunpack.c.l.b16 %v896
    %v1564 = vunpack.c.h.b16 %v896
    %v1565 = vunpack.c.l.b16 %v897
    %v1566 = vunpack.c.h.b16 %v897
    %v1567 = vunpack.c.l.b16 %v898
    %v1568 = vunpack.c.h.b16 %v898
    %v1569 = vunpack.c.l.b16 %v899
    %v1570 = vunpack.c.h.b16 %v899
    %v1571 = vunpack.c.l.b16 %v900
    %v1572 = vunpack.c.h.b16 %v900
    %v1573 = vunpack.c.l.b16 %v901
    %v1574 = vunpack.c.h.b16 %v901
    %v1575 = vunpack.c.l.b16 %v902
    %v1576 = vunpack.c.h.b16 %v902
    %v1577 = vunpack.c.l.b16 %v903
    %v1578 = vunpack.c.h.b16 %v903
    %v1579 = vunpack.c.l.b16 %v904
    %v1580 = vunpack.c.h.b16 %v904
    %v1581 = vunpack.c.l.b16 %v905
    %v1582 = vunpack.c.h.b16 %v905
    %v1583 = vunpack.c.l.b16 %v906
    %v1584 = vunpack.c.h.b16 %v906
    %v1585 = vunpack.c.l.b16 %v907
    %v1586 = vunpack.c.h.b16 %v907
    %v1587 = vunpack.c.l.b16 %v908
    %v1588 = vunpack.c.h.b16 %v908
    %v1589 = vunpack.c.l.b16 %v909
    %v1590 = vunpack.c.h.b16 %v909
    %v1591 = vunpack.c.l.b16 %v910
    %v1592 = vunpack.c.h.b16 %v910
    %v1593 = vunpack.c.l.b16 %v911
    %v1594 = vunpack.c.h.b16 %v911
    %v1595 = vunpack.c.l.b16 %v912
    %v1596 = vunpack.c.h.b16 %v912
    %v1597 = vunpack.c.l.b16 %v913
    %v1598 = vunpack.c.h.b16 %v913
    %v1599 = vunpack.c.l.b16 %v914
    %v1600 = vunpack.c.h.b16 %v914
    %v1601 = vunpack.c.l.b16 %v915
    %v1602 = vunpack.c.h.b16 %v915
    %v1603 = vunpack.c.l.b16 %v916
    %v1604 = vunpack.c.h.b16 %v916
    %v1605 = vunpack.c.l.b16 %v917
    %v1606 = vunpack.c.h.b16 %v917
    %v1607 = vunpack.c.l.b16 %v918
    %v1608 = vunpack.c.h.b16 %v918
    %v1609 = vunpack.c.l.b16 %v919
    %v1610 = vunpack.c.h.b16 %v919
    %v1611 = vunpack.c.l.b16 %v920
    %v1612 = vunpack.c.h.b16 %v920
    %v1613 = vunpack.c.l.b16 %v921
    %v1614 = vunpack.c.h.b16 %v921
    %v1615 = vunpack.c.l.b16 %v922
    %v1616 = vunpack.c.h.b16 %v922
    %v1617 = vunpack.c.l.b16 %v923
    %v1618 = vunpack.c.h.b16 %v923
    %v1619 = vunpack.c.l.b16 %v924
    %v1620 = vunpack.c.h.b16 %v924
    %v1621 = vunpack.c.l.b16 %v925
    %v1622 = vunpack.c.h.b16 %v925
    %v1623 = vunpack.c.l.b16 %v926
    %v1624 = vunpack.c.h.b16 %v926
    %v1625 = vunpack.c.l.b16 %v927
    %v1626 = vunpack.c.h.b16 %v927
    %v1627 = vunpack.c.l.b16 %v928
    %v1628 = vunpack.c.h.b16 %v928
    %v1629 = vunpack.c.l.b16 %v929
    %v1630 = vunpack.c.h.b16 %v929
    %v1631 = vunpack.c.l.b16 %v930
    %v1632 = vunpack.c.h.b16 %v930
    %v1633 = vunpack.c.l.b16 %v931
    %v1634 = vunpack.c.h.b16 %v931
    %v1635 = vunpack.c.l.b16 %v932
    %v1636 = vunpack.c.h.b16 %v932
    %v1637 = vunpack.c.l.b16 %v933
    %v1638 = vunpack.c.h.b16 %v933
    %v1639 = vunpack.c.l.b16 %v934
    %v1640 = vunpack.c.h.b16 %v934
    %v1641 = vunpack.c.l.b16 %v935
    %v1642 = vunpack.c.h.b16 %v935
    %v1643 = vunpack.c.l.b16 %v936
    %v1644 = vunpack.c.h.b16 %v936
    %v1645 = vunpack.c.l.b16 %v937
    %v1646 = vunpack.c.h.b16 %v937
    %v1647 = vunpack.c.l.b16 %v938
    %v1648 = vunpack.c.h.b16 %v938
    %v1649 = vunpack.c.l.b16 %v939
    %v1650 = vunpack.c.h.b16 %v939
    %v1651 = vunpack.c.l.b16 %v940
    %v1652 = vunpack.c.h.b16 %v940
    %v1653 = vunpack.c.l.b16 %v941
    %v1654 = vunpack.c.h.b16 %v941
    %v1655 = vunpack.c.l.b16 %v942
    %v1656 = vunpack.c.h.b16 %v942
    %v1657 = vunpack.c.l.b16 %v943
    %v1658 = vunpack.c.h.b16 %v943
    %v1659 = vunpack.c.l.b16 %v944
    %v1660 = vunpack.c.h.b16 %v944
    %v1661 = vunpack.c.l.b16 %v945
    %v1662 = vunpack.c.h.b16 %v945
    %v1663 = vunpack.c.l.b16 %v946
    %v1664 = vunpack.c.h.b16 %v946
    %v1665 = vunpack.c.l.b16 %v947
    %v1666 = vunpack.c.h.b16 %v947
    %v1667 = vunpack.c.l.b16 %v948
    %v1668 = vunpack.c.h.b16 %v948
    %v1669 = vunpack.c.l.b16 %v949
    %v1670 = vunpack.c.h.b16 %v949
    %v1671 = vunpack.c.l.b16 %v950
    %v1672 = vunpack.c.h.b16 %v950
    %v1673 = vunpack.c.l.b16 %v951
    %v1674 = vunpack.c.h.b16 %v951
    %v1675 = vunpack.c.l.b16 %v952
    %v1676 = vunpack.c.h.b16 %v952
    %v1677 = vunpack.c.l.b16 %v953
    %v1678 = vunpack.c.h.b16 %v953
    %v1679 = vunpack.c.l.b16 %v954
    %v1680 = vunpack.c.h.b16 %v954
    %v1681 = vunpack.c.l.b16 %v955
    %v1682 = vunpack.c.h.b16 %v955
    %v1683 = vunpack.c.l.b16 %v956
    %v1684 = vunpack.c.h.b16 %v956
    %v1685 = vunpack.c.l.b16 %v957
    %v1686 = vunpack.c.h.b16 %v957
    %v1687 = vunpack.c.l.b16 %v958
    %v1688 = vunpack.c.h.b16 %v958
    %v1689 = vunpack.c.l.b16 %v959
    %v1690 = vunpack.c.h.b16 %v959
    %v1691 = vunpack.c.l.b16 %v960
    %v1692 = vunpack.c.h.b16 %v960
    %v1693 = vunpack.c.l.b16 %v961
    %v1694 = vunpack.c.h.b16 %v961
    %v1695 = vunpack.c.l.b16 %v962
    %v1696 = vunpack.c.h.b16 %v962
    %v1697 = vunpack.c.l.b16 %v963
    %v1698 = vunpack.c.h.b16 %v963
    %v1699 = vunpack.c.l.b16 %v964
    %v1700 = vunpack.c.h.b16 %v964
    %v1701 = vunpack.c.l.b16 %v965
    %v1702 = vunpack.c.h.b16 %v965
    %v1703 = vunpack.c.l.b16 %v966
    %v1704 = vunpack.c.h.b16 %v966
    %v1705 = vunpack.c.l.b16 %v967
    %v1706 = vunpack.c.h.b16 %v967
    %v1707 = vunpack.c.l.b16 %v968
    %v1708 = vunpack.c.h.b16 %v968
    %v1709 = vunpack.c.l.b16 %v969
    %v1710 = vunpack.c.h.b16 %v969
    %v1711 = vunpack.c.l.b16 %v970
    %v1712 = vunpack.c.h.b16 %v970
    %v1713 = vunpack.c.l.b16 %v971
    %v1714 = vunpack.c.h.b16 %v971
    %v1715 = vunpack.c.l.b16 %v972
    %v1716 = vunpack.c.h.b16 %v972
    %v1717 = vunpack.c.l.b16 %v973
    %v1718 = vunpack.c.h.b16 %v973
    %v1719 = vunpack.c.l.b16 %v974
    %v1720 = vunpack.c.h.b16 %v974
    %v1721 = vunpack.c.l.b16 %v975
    %v1722 = vunpack.c.h.b16 %v975
    %v1723 = vunpack.c.l.b16 %v976
    %v1724 = vunpack.c.h.b16 %v976
    %v1725 = vunpack.c.l.b16 %v977
    %v1726 = vunpack.c.h.b16 %v977
    %v1727 = vunpack.c.l.b16 %v978
    %v1728 = vunpack.c.h.b16 %v978
    %v1729 = vunpack.c.l.b16 %v979
    %v1730 = vunpack.c.h.b16 %v979
    %v1731 = vunpack.c.l.b16 %v980
    %v1732 = vunpack.c.h.b16 %v980
    %v1733 = vunpack.c.l.b16 %v981
    %v1734 = vunpack.c.h.b16 %v981
    %v1735 = vunpack.c.l.b16 %v982
    %v1736 = vunpack.c.h.b16 %v982
    %v1737 = vunpack.c.l.b16 %v983
    %v1738 = vunpack.c.h.b16 %v983
    %v1739 = vunpack.c.l.b16 %v984
    %v1740 = vunpack.c.h.b16 %v984
    %v1741 = vunpack.c.l.b16 %v985
    %v1742 = vunpack.c.h.b16 %v985
    %v1743 = vunpack.c.l.b16 %v986
    %v1744 = vunpack.c.h.b16 %v986
    %v1745 = vunpack.c.l.b16 %v987
    %v1746 = vunpack.c.h.b16 %v987
    %v1747 = vunpack.c.l.b16 %v988
    %v1748 = vunpack.c.h.b16 %v988
    %v1749 = vunpack.c.l.b16 %v989
    %v1750 = vunpack.c.h.b16 %v989
    %v1751 = vunpack.c.l.b16 %v990
    %v1752 = vunpack.c.h.b16 %v990
    %v1753 = vunpack.c.l.b16 %v991
    %v1754 = vunpack.c.h.b16 %v991
    %v1755 = vunpack.c.l.b16 %v992
    %v1756 = vunpack.c.h.b16 %v992
    %v1757 = vunpack.c.l.b16 %v993
    %v1758 = vunpack.c.h.b16 %v993
    %v1759 = vunpack.c.l.b16 %v994
    %v1760 = vunpack.c.h.b16 %v994
    %v1761 = vunpack.c.l.b16 %v995
    %v1762 = vunpack.c.h.b16 %v995
    %v1763 = vunpack.c.l.b16 %v996
    %v1764 = vunpack.c.h.b16 %v996
    %v1765 = vunpack.c.l.b16 %v997
    %v1766 = vunpack.c.h.b16 %v997
    %v1767 = vunpack.c.l.b16 %v998
    %v1768 = vunpack.c.h.b16 %v998
    %v1769 = vunpack.c.l.b16 %v999
    %v1770 = vunpack.c.h.b16 %v999
    %v1771 = vunpack.c.l.b16 %v1000
    %v1772 = vunpack.c.h.b16 %v1000
    %v1773 = vunpack.c.l.b16 %v1001
    %v1774 = vunpack.c.h.b16 %v1001
    %v1775 = vunpack.c.l.b16 %v1002
    %v1776 = vunpack.c.h.b16 %v1002
    %v1777 = vunpack.c.l.b16 %v1003
    %v1778 = vunpack.c.h.b16 %v1003
    %v1779 = vunpack.c.l.b16 %v1004
    %v1780 = vunpack.c.h.b16 %v1004
    %v1781 = vunpack.c.l.b16 %v1005
    %v1782 = vunpack.c.h.b16 %v1005
    %v1783 = vunpack.c.l.b16 %v1006
    %v1784 = vunpack.c.h.b16 %v1006
    %v1785 = vunpack.c.l.b16 %v1007
    %v1786 = vunpack.c.h.b16 %v1007
    %v1787 = vunpack.c.l.b16 %v1008
    %v1788 = vunpack.c.h.b16 %v1008
    %v1789 = vunpack.c.l.b16 %v1009
    %v1790 = vunpack.c.h.b16 %v1009
    %v1791 = vunpack.c.l.b16 %v1010
    %v1792 = vunpack.c.h.b16 %v1010
    %v1793 = vunpack.c.l.b16 %v1011
    %v1794 = vunpack.c.h.b16 %v1011
    %v1795 = vunpack.c.l.b16 %v1012
    %v1796 = vunpack.c.h.b16 %v1012
    %v1797 = vunpack.c.l.b16 %v1013
    %v1798 = vunpack.c.h.b16 %v1013
    %v1799 = vunpack.c.l.b16 %v1014
    %v1800 = vunpack.c.h.b16 %v1014
    %v1801 = vunpack.c.l.b16 %v1015
    %v1802 = vunpack.c.h.b16 %v1015
    %v1803 = vunpack.c.l.b16 %v1016
    %v1804 = vunpack.c.h.b16 %v1016
    %v1805 = vunpack.c.l.b16 %v1017
    %v1806 = vunpack.c.h.b16 %v1017
    %v1807 = vunpack.c.l.b16 %v1018
    %v1808 = vunpack.c.h.b16 %v1018
    %v1809 = vpack.c.b16 %v1301, %v1297
    %v1810 = vpack.c.b16 %v1302, %v1298
    %v1811 = vpack.c.b16 %v1303, %v1299
    %v1812 = vpack.c.b16 %v1304, %v1300
    %v1813 = vpack.c.b16 %v1309, %v1305
    %v1814 = vpack.c.b16 %v1310, %v1306
    %v1815 = vpack.c.b16 %v1311, %v1307
    %v1816 = vpack.c.b16 %v1312, %v1308
    %v1817 = vpack.c.b16 %v1317, %v1313
    %v1818 = vpack.c.b16 %v1318, %v1314
    %v1819 = vpack.c.b16 %v1319, %v1315
    %v1820 = vpack.c.b16 %v1320, %v1316
    %v1821 = vpack.c.b16 %v1325, %v1321
    %v1822 = vpack.c.b16 %v1326, %v1322
    %v1823 = vpack.c.b16 %v1327, %v1323
    %v1824 = vpack.c.b16 %v1328, %v1324
    %v1825 = vpack.c.b16 %v1333, %v1329
    %v1826 = vpack.c.b16 %v1334, %v1330
    %v1827 = vpack.c.b16 %v1335, %v1331
    %v1828 = vpack.c.b16 %v1336, %v1332
    %v1829 = vpack.c.b16 %v1341, %v1337
    %v1830 = vpack.c.b16 %v1342, %v1338
    %v1831 = vpack.c.b16 %v1343, %v1339
    %v1832 = vpack.c.b16 %v1344, %v1340
    %v1833 = vpack.c.b16 %v1349, %v1345
    %v1834 = vpack.c.b16 %v1350, %v1346
    %v1835 = vpack.c.b16 %v1351, %v1347
    %v1836 = vpack.c.b16 %v1352, %v1348
    %v1837 = vpack.c.b16 %v1357, %v1353
    %v1838 = vpack.c.b16 %v1358, %v1354
    %v1839 = vpack.c.b16 %v1359, %v1355
    %v1840 = vpack.c.b16 %v1360, %v1356
    %v1841 = vpack.c.b16 %v1365, %v1361
    %v1842 = vpack.c.b16 %v1366, %v1362
    %v1843 = vpack.c.b16 %v1367, %v1363
    %v1844 = vpack.c.b16 %v1368, %v1364
    %v1845 = vpack.c.b16 %v1373, %v1369
    %v1846 = vpack.c.b16 %v1374, %v1370
    %v1847 = vpack.c.b16 %v1375, %v1371
    %v1848 = vpack.c.b16 %v1376, %v1372
    %v1849 = vpack.c.b16 %v1381, %v1377
    %v1850 = vpack.c.b16 %v1382, %v1378
    %v1851 = vpack.c.b16 %v1383, %v1379
    %v1852 = vpack.c.b16 %v1384, %v1380
    %v1853 = vpack.c.b16 %v1389, %v1385
    %v1854 = vpack.c.b16 %v1390, %v1386
    %v1855 = vpack.c.b16 %v1391, %v1387
    %v1856 = vpack.c.b16 %v1392, %v1388
    %v1857 = vpack.c.b16 %v1397, %v1393
    %v1858 = vpack.c.b16 %v1398, %v1394
    %v1859 = vpack.c.b16 %v1399, %v1395
    %v1860 = vpack.c.b16 %v1400, %v1396
    %v1861 = vpack.c.b16 %v1405, %v1401
    %v1862 = vpack.c.b16 %v1406, %v1402
    %v1863 = vpack.c.b16 %v1407, %v1403
    %v1864 = vpack.c.b16 %v1408, %v1404
    %v1865 = vpack.c.b16 %v1413, %v1409
    %v1866 = vpack.c.b16 %v1414, %v1410
    %v1867 = vpack.c.b16 %v1415, %v1411
    %v1868 = vpack.c.b16 %v1416, %v1412
    %v1869 = vpack.c.b16 %v1421, %v1417
    %v1870 = vpack.c.b16 %v1422, %v1418
    %v1871 = vpack.c.b16 %v1423, %v1419
    %v1872 = vpack.c.b16 %v1424, %v1420
    %v1873 = vpack.c.b16 %v1429, %v1425
    %v1874 = vpack.c.b16 %v1430, %v1426
    %v1875 = vpack.c.b16 %v1431, %v1427
    %v1876 = vpack.c.b16 %v1432, %v1428
    %v1877 = vpack.c.b16 %v1437, %v1433
    %v1878 = vpack.c.b16 %v1438, %v1434
    %v1879 = vpack.c.b16 %v1439, %v1435
    %v1880 = vpack.c.b16 %v1440, %v1436
    %v1881 = vpack.c.b16 %v1445, %v1441
    %v1882 = vpack.c.b16 %v1446, %v1442
    %v1883 = vpack.c.b16 %v1447, %v1443
    %v1884 = vpack.c.b16 %v1448, %v1444
    %v1885 = vpack.c.b16 %v1453, %v1449
    %v1886 = vpack.c.b16 %v1454, %v1450
    %v1887 = vpack.c.b16 %v1455, %v1451
    %v1888 = vpack.c.b16 %v1456, %v1452
    %v1889 = vpack.c.b16 %v1461, %v1457
    %v1890 = vpack.c.b16 %v1462, %v1458
    %v1891 = vpack.c.b16 %v1463, %v1459
    %v1892 = vpack.c.b16 %v1464, %v1460
    %v1893 = vpack.c.b16 %v1469, %v1465
    %v1894 = vpack.c.b16 %v1470, %v1466
    %v1895 = vpack.c.b16 %v1471, %v1467
    %v1896 = vpack.c.b16 %v1472, %v1468
    %v1897 = vpack.c.b16 %v1477, %v1473
    %v1898 = vpack.c.b16 %v1478, %v1474
    %v1899 = vpack.c.b16 %v1479, %v1475
    %v1900 = vpack.c.b16 %v1480, %v1476
    %v1901 = vpack.c.b16 %v1485, %v1481
    %v1902 = vpack.c.b16 %v1486, %v1482
    %v1903 = vpack.c.b16 %v1487, %v1483
    %v1904 = vpack.c.b16 %v1488, %v1484
    %v1905 = vpack.c.b16 %v1493, %v1489
    %v1906 = vpack.c.b16 %v1494, %v1490
    %v1907 = vpack.c.b16 %v1495, %v1491
    %v1908 = vpack.c.b16 %v1496, %v1492
    %v1909 = vpack.c.b16 %v1501, %v1497
    %v1910 = vpack.c.b16 %v1502, %v1498
    %v1911 = vpack.c.b16 %v1503, %v1499
    %v1912 = vpack.c.b16 %v1504, %v1500
    %v1913 = vpack.c.b16 %v1509, %v1505
    %v1914 = vpack.c.b16 %v1510, %v1506
    %v1915 = vpack.c.b16 %v1511, %v1507
    %v1916 = vpack.c.b16 %v1512, %v1508
    %v1917 = vpack.c.b16 %v1517, %v1513
    %v1918 = vpack.c.b16 %v1518, %v1514
    %v1919 = vpack.c.b16 %v1519, %v1515
    %v1920 = vpack.c.b16 %v1520, %v1516
    %v1921 = vpack.c.b16 %v1525, %v1521
    %v1922 = vpack.c.b16 %v1526, %v1522
    %v1923 = vpack.c.b16 %v1527, %v1523
    %v1924 = vpack.c.b16 %v1528, %v1524
    %v1925 = vpack.c.b16 %v1533, %v1529
    %v1926 = vpack.c.b16 %v1534, %v1530
    %v1927 = vpack.c.b16 %v1535, %v1531
    %v1928 = vpack.c.b16 %v1536, %v1532
    %v1929 = vpack.c.b16 %v1541, %v1537
    %v1930 = vpack.c.b16 %v1542, %v1538
    %v1931 = vpack.c.b16 %v1543, %v1539
    %v1932 = vpack.c.b16 %v1544, %v1540
    %v1933 = vpack.c.b16 %v1549, %v1545
    %v1934 = vpack.c.b16 %v1550, %v1546
    %v1935 = vpack.c.b16 %v1551, %v1547
    %v1936 = vpack.c.b16 %v1552, %v1548
    %v1937 = vpack.c.b16 %v1557, %v1553
    %v1938 = vpack.c.b16 %v1558, %v1554
    %v1939 = vpack.c.b16 %v1559, %v1555
    %v1940 = vpack.c.b16 %v1560, %v1556
    %v1941 = vpack.c.b16 %v1565, %v1561
    %v1942 = vpack.c.b16 %v1566, %v1562
    %v1943 = vpack.c.b16 %v1567, %v1563
    %v1944 = vpack.c.b16 %v1568, %v1564
    %v1945 = vpack.c.b16 %v1573, %v1569
    %v1946 = vpack.c.b16 %v1574, %v1570
    %v1947 = vpack.c.b16 %v1575, %v1571
    %v1948 = vpack.c.b16 %v1576, %v1572
    %v1949 = vpack.c.b16 %v1581, %v1577
    %v1950 = vpack.c.b16 %v1582, %v1578
    %v1951 = vpack.c.b16 %v1583, %v1579
    %v1952 = vpack.c.b16 %v1584, %v1580
    %v1953 = vpack.c.b16 %v1589, %v1585
    %v1954 = vpack.c.b16 %v1590, %v1586
    %v1955 = vpack.c.b16 %v1591, %v1587
    %v1956 = vpack.c.b16 %v1592, %v1588
    %v1957 = vpack.c.b16 %v1597, %v1593
    %v1958 = vpack.c.b16 %v1598, %v1594
    %v1959 = vpack.c.b16 %v1599, %v1595
    %v1960 = vpack.c.b16 %v1600, %v1596
    %v1961 = vpack.c.b16 %v1605, %v1601
    %v1962 = vpack.c.b16 %v1606, %v1602
    %v1963 = vpack.c.b16 %v1607, %v1603
    %v1964 = vpack.c.b16 %v1608, %v1604
    %v1965 = vpack.c.b16 %v1613, %v1609
    %v1966 = vpack.c.b16 %v1614, %v1610
    %v1967 = vpack.c.b16 %v1615, %v1611
    %v1968 = vpack.c.b16 %v1616, %v1612
    %v1969 = vpack.c.b16 %v1621, %v1617
    %v1970 = vpack.c.b16 %v1622, %v1618
    %v1971 = vpack.c.b16 %v1623, %v1619
    %v1972 = vpack.c.b16 %v1624, %v1620
    %v1973 = vpack.c.b16 %v1629, %v1625
    %v1974 = vpack.c.b16 %v1630, %v1626
    %v1975 = vpack.c.b16 %v1631, %v1627
    %v1976 = vpack.c.b16 %v1632, %v1628
    %v1977 = vpack.c.b16 %v1637, %v1633
    %v1978 = vpack.c.b16 %v1638, %v1634
    %v1979 = vpack.c.b16 %v1639, %v1635
    %v1980 = vpack.c.b16 %v1640, %v1636
    %v1981 = vpack.c.b16 %v1645, %v1641
    %v1982 = vpack.c.b16 %v1646, %v1642
    %v1983 = vpack.c.b16 %v1647, %v1643
    %v1984 = vpack.c.b16 %v1648, %v1644
    %v1985 = vpack.c.b16 %v1653, %v1649
    %v1986 = vpack.c.b16 %v1654, %v1650
    %v1987 = vpack.c.b16 %v1655, %v1651
    %v1988 = vpack.c.b16 %v1656, %v1652
    %v1989 = vpack.c.b16 %v1661, %v1657
    %v1990 = vpack.c.b16 %v1662, %v1658
    %v1991 = vpack.c.b16 %v1663, %v1659
    %v1992 = vpack.c.b16 %v1664, %v1660
    %v1993 = vpack.c.b16 %v1669, %v1665
    %v1994 = vpack.c.b16 %v1670, %v1666
    %v1995 = vpack.c.b16 %v1671, %v1667
    %v1996 = vpack.c.b16 %v1672, %v1668
    %v1997 = vpack.c.b16 %v1677, %v1673
    %v1998 = vpack.c.b16 %v1678, %v1674
    %v1999 = vpack.c.b16 %v1679, %v1675
    %v2000 = vpack.c.b16 %v1680, %v1676
    %v2001 = vpack.c.b16 %v1685, %v1681
    %v2002 = vpack.c.b16 %v1686, %v1682
    %v2003 = vpack.c.b16 %v1687, %v1683
    %v2004 = vpack.c.b16 %v1688, %v1684
    %v2005 = vpack.c.b16 %v1693, %v1689
    %v2006 = vpack.c.b16 %v1694, %v1690
    %v2007 = vpack.c.b16 %v1695, %v1691
    %v2008 = vpack.c.b16 %v1696, %v1692
    %v2009 = vpack.c.b16 %v1701, %v1697
    %v2010 = vpack.c.b16 %v1702, %v1698
    %v2011 = vpack.c.b16 %v1703, %v1699
    %v2012 = vpack.c.b16 %v1704, %v1700
    %v2013 = vpack.c.b16 %v1709, %v1705
    %v2014 = vpack.c.b16 %v1710, %v1706
    %v2015 = vpack.c.b16 %v1711, %v1707
    %v2016 = vpack.c.b16 %v1712, %v1708
    %v2017 = vpack.c.b16 %v1717, %v1713
    %v2018 = vpack.c.b16 %v1718, %v1714
    %v2019 = vpack.c.b16 %v1719, %v1715
    %v2020 = vpack.c.b16 %v1720, %v1716
    %v2021 = vpack.c.b16 %v1725, %v1721
    %v2022 = vpack.c.b16 %v1726, %v1722
    %v2023 = vpack.c.b16 %v1727, %v1723
    %v2024 = vpack.c.b16 %v1728, %v1724
    %v2025 = vpack.c.b16 %v1733, %v1729
    %v2026 = vpack.c.b16 %v1734, %v1730
    %v2027 = vpack.c.b16 %v1735, %v1731
    %v2028 = vpack.c.b16 %v1736, %v1732
    %v2029 = vpack.c.b16 %v1741, %v1737
    %v2030 = vpack.c.b16 %v1742, %v1738
    %v2031 = vpack.c.b16 %v1743, %v1739
    %v2032 = vpack.c.b16 %v1744, %v1740
    %v2033 = vpack.c.b16 %v1749, %v1745
    %v2034 = vpack.c.b16 %v1750, %v1746
    %v2035 = vpack.c.b16 %v1751, %v1747
    %v2036 = vpack.c.b16 %v1752, %v1748
    %v2037 = vpack.c.b16 %v1757, %v1753
    %v2038 = vpack.c.b16 %v1758, %v1754
    %v2039 = vpack.c.b16 %v1759, %v1755
    %v2040 = vpack.c.b16 %v1760, %v1756
    %v2041 = vpack.c.b16 %v1765, %v1761
    %v2042 = vpack.c.b16 %v1766, %v1762
    %v2043 = vpack.c.b16 %v1767, %v1763
    %v2044 = vpack.c.b16 %v1768, %v1764
    %v2045 = vpack.c.b16 %v1773, %v1769
    %v2046 = vpack.c.b16 %v1774, %v1770
    %v2047 = vpack.c.b16 %v1775, %v1771
    %v2048 = vpack.c.b16 %v1776, %v1772
    %v2049 = vpack.c.b16 %v1781, %v1777
    %v2050 = vpack.c.b16 %v1782, %v1778
    %v2051 = vpack.c.b16 %v1783, %v1779
    %v2052 = vpack.c.b16 %v1784, %v1780
    %v2053 = vpack.c.b16 %v1789, %v1785
    %v2054 = vpack.c.b16 %v1790, %v1786
    %v2055 = vpack.c.b16 %v1791, %v1787
    %v2056 = vpack.c.b16 %v1792, %v1788
    %v2057 = vpack.c.b16 %v1797, %v1793
    %v2058 = vpack.c.b16 %v1798, %v1794
    %v2059 = vpack.c.b16 %v1799, %v1795
    %v2060 = vpack.c.b16 %v1800, %v1796
    %v2061 = vpack.c.b16 %v1805, %v1801
    %v2062 = vpack.c.b16 %v1806, %v1802
    %v2063 = vpack.c.b16 %v1807, %v1803
    %v2064 = vpack.c.b16 %v1808, %v1804
    %2321 = vmatprep.subr.bf16.mxu0 %v1810
    %2322 = vmatpush1.bf16.msra.mxu0 %v1809
    %2323 = vmatprep.subr.bf16.mxu0 %v1814
    %2324 = vmatpush1.bf16.msra.mxu0 %v1813
    %2325 = vmatprep.subr.bf16.mxu0 %v1818
    %2326 = vmatpush1.bf16.msra.mxu0 %v1817
    %2327 = vmatprep.subr.bf16.mxu0 %v1822
    %2328 = vmatpush1.bf16.msra.mxu0 %v1821
    %2329 = vmatprep.subr.bf16.mxu0 %v1826
    %2330 = vmatpush1.bf16.msra.mxu0 %v1825
    %2331 = vmatprep.subr.bf16.mxu0 %v1830
    %2332 = vmatpush1.bf16.msra.mxu0 %v1829
    %2333 = vmatprep.subr.bf16.mxu0 %v1834
    %2334 = vmatpush1.bf16.msra.mxu0 %v1833
    %2335 = vmatprep.subr.bf16.mxu0 %v1838
    %2336 = vmatpush1.bf16.msra.mxu0 %v1837
    %2337 = vmatprep.subr.bf16.mxu0 %v1842
    %2338 = vmatpush1.bf16.msra.mxu0 %v1841
    %2339 = vmatprep.subr.bf16.mxu0 %v1846
    %2340 = vmatpush1.bf16.msra.mxu0 %v1845
    %2341 = vmatprep.subr.bf16.mxu0 %v1850
    %2342 = vmatpush1.bf16.msra.mxu0 %v1849
    %2343 = vmatprep.subr.bf16.mxu0 %v1854
    %2344 = vmatpush1.bf16.msra.mxu0 %v1853
    %2345 = vmatprep.subr.bf16.mxu0 %v1858
    %2346 = vmatpush1.bf16.msra.mxu0 %v1857
    %2347 = vmatprep.subr.bf16.mxu0 %v1862
    %2348 = vmatpush1.bf16.msra.mxu0 %v1861
    %2349 = vmatprep.subr.bf16.mxu0 %v1866
    %2350 = vmatpush1.bf16.msra.mxu0 %v1865
    %2351 = vmatprep.subr.bf16.mxu0 %v1870
    %2352 = vmatpush1.bf16.msra.mxu0 %v1869
    %2353 = vmatprep.mubr.bf16.mxu0 %v756
    %2354 = vmatmul.mubr.bf16.gmra.mrb[0].mxu0 %v755
    %v2355 = vpop.f32.mrb[0].mxu0
    %v2356 = vadd.f32 %v1024, %v2355
    %v2357 = vpop.f32.mrb[0].mxu0
    %v2358 = vadd.f32 %v1028, %v2357
    %v2359 = vpop.f32.mrb[0].mxu0
    %v2360 = vadd.f32 %v1024, %v2359
    %v2361 = vpop.f32.mrb[0].mxu0
    %v2362 = vadd.f32 %v1028, %v2361
    %2363 = vdwg.mxu0
    %2364 = vmatprep.subr.bf16.mxu0 %v1874
    %2365 = vmatpush1.bf16.msra.mxu0 %v1873
    %2366 = vmatprep.subr.bf16.mxu0 %v1878
    %2367 = vmatpush1.bf16.msra.mxu0 %v1877
    %2368 = vmatprep.subr.bf16.mxu0 %v1882
    %2369 = vmatpush1.bf16.msra.mxu0 %v1881
    %2370 = vmatprep.subr.bf16.mxu0 %v1886
    %2371 = vmatpush1.bf16.msra.mxu0 %v1885
    %2372 = vmatprep.subr.bf16.mxu0 %v1890
    %2373 = vmatpush1.bf16.msra.mxu0 %v1889
    %2374 = vmatprep.subr.bf16.mxu0 %v1894
    %2375 = vmatpush1.bf16.msra.mxu0 %v1893
    %2376 = vmatprep.subr.bf16.mxu0 %v1898
    %2377 = vmatpush1.bf16.msra.mxu0 %v1897
    %2378 = vmatprep.subr.bf16.mxu0 %v1902
    %2379 = vmatpush1.bf16.msra.mxu0 %v1901
    %2380 = vmatprep.subr.bf16.mxu0 %v1906
    %2381 = vmatpush1.bf16.msra.mxu0 %v1905
    %2382 = vmatprep.subr.bf16.mxu0 %v1910
    %2383 = vmatpush1.bf16.msra.mxu0 %v1909
    %2384 = vmatprep.subr.bf16.mxu0 %v1914
    %2385 = vmatpush1.bf16.msra.mxu0 %v1913
    %2386 = vmatprep.subr.bf16.mxu0 %v1918
    %2387 = vmatpush1.bf16.msra.mxu0 %v1917
    %2388 = vmatprep.subr.bf16.mxu0 %v1922
    %2389 = vmatpush1.bf16.msra.mxu0 %v1921
    %2390 = vmatprep.subr.bf16.mxu0 %v1926
    %2391 = vmatpush1.bf16.msra.mxu0 %v1925
    %2392 = vmatprep.subr.bf16.mxu0 %v1930
    %2393 = vmatpush1.bf16.msra.mxu0 %v1929
    %2394 = vmatprep.subr.bf16.mxu0 %v1934
    %2395 = vmatpush1.bf16.msra.mxu0 %v1933
    %2396 = vmatprep.mubr.bf16.mxu0 %v758
    %2397 = vmatmul.mubr.bf16.gmra.mrb[0].mxu0 %v757
    %v2398 = vpop.f32.mrb[0].mxu0
    %v2399 = vadd.f32 %v2356, %v2398
    %v2400 = vpop.f32.mrb[0].mxu0
    %v2401 = vadd.f32 %v2358, %v2400
    %v2402 = vpop.f32.mrb[0].mxu0
    %v2403 = vadd.f32 %v2360, %v2402
    %v2404 = vpop.f32.mrb[0].mxu0
    %v2405 = vadd.f32 %v2362, %v2404
    %2406 = vdwg.mxu0
    %2407 = vmatprep.subr.bf16.mxu0 %v1938
    %2408 = vmatpush1.bf16.msra.mxu0 %v1937
    %2409 = vmatprep.subr.bf16.mxu0 %v1942
    %2410 = vmatpush1.bf16.msra.mxu0 %v1941
    %2411 = vmatprep.subr.bf16.mxu0 %v1946
    %2412 = vmatpush1.bf16.msra.mxu0 %v1945
    %2413 = vmatprep.subr.bf16.mxu0 %v1950
    %2414 = vmatpush1.bf16.msra.mxu0 %v1949
    %2415 = vmatprep.subr.bf16.mxu0 %v1954
    %2416 = vmatpush1.bf16.msra.mxu0 %v1953
    %2417 = vmatprep.subr.bf16.mxu0 %v1958
    %2418 = vmatpush1.bf16.msra.mxu0 %v1957
    %2419 = vmatprep.subr.bf16.mxu0 %v1962
    %2420 = vmatpush1.bf16.msra.mxu0 %v1961
    %2421 = vmatprep.subr.bf16.mxu0 %v1966
    %2422 = vmatpush1.bf16.msra.mxu0 %v1965
    %2423 = vmatprep.subr.bf16.mxu0 %v1970
    %2424 = vmatpush1.bf16.msra.mxu0 %v1969
    %2425 = vmatprep.subr.bf16.mxu0 %v1974
    %2426 = vmatpush1.bf16.msra.mxu0 %v1973
    %2427 = vmatprep.subr.bf16.mxu0 %v1978
    %2428 = vmatpush1.bf16.msra.mxu0 %v1977
    %2429 = vmatprep.subr.bf16.mxu0 %v1982
    %2430 = vmatpush1.bf16.msra.mxu0 %v1981
    %2431 = vmatprep.subr.bf16.mxu0 %v1986
    %2432 = vmatpush1.bf16.msra.mxu0 %v1985
    %2433 = vmatprep.subr.bf16.mxu0 %v1990
    %2434 = vmatpush1.bf16.msra.mxu0 %v1989
    %2435 = vmatprep.subr.bf16.mxu0 %v1994
    %2436 = vmatpush1.bf16.msra.mxu0 %v1993
    %2437 = vmatprep.subr.bf16.mxu0 %v1998
    %2438 = vmatpush1.bf16.msra.mxu0 %v1997
    %2439 = vmatprep.mubr.bf16.mxu0 %v760
    %2440 = vmatmul.mubr.bf16.gmra.mrb[0].mxu0 %v759
    %v2441 = vpop.f32.mrb[0].mxu0
    %v2442 = vadd.f32 %v2399, %v2441
    %v2443 = vpop.f32.mrb[0].mxu0
    %v2444 = vadd.f32 %v2401, %v2443
    %v2445 = vpop.f32.mrb[0].mxu0
    %v2446 = vadd.f32 %v2403, %v2445
    %v2447 = vpop.f32.mrb[0].mxu0
    %v2448 = vadd.f32 %v2405, %v2447
    %2449 = vdwg.mxu0
    %2450 = vmatprep.subr.bf16.mxu0 %v2002
    %2451 = vmatpush1.bf16.msra.mxu0 %v2001
    %2452 = vmatprep.subr.bf16.mxu0 %v2006
    %2453 = vmatpush1.bf16.msra.mxu0 %v2005
    %2454 = vmatprep.subr.bf16.mxu0 %v2010
    %2455 = vmatpush1.bf16.msra.mxu0 %v2009
    %2456 = vmatprep.subr.bf16.mxu0 %v2014
    %2457 = vmatpush1.bf16.msra.mxu0 %v2013
    %2458 = vmatprep.subr.bf16.mxu0 %v2018
    %2459 = vmatpush1.bf16.msra.mxu0 %v2017
    %2460 = vmatprep.subr.bf16.mxu0 %v2022
    %2461 = vmatpush1.bf16.msra.mxu0 %v2021
    %2462 = vmatprep.subr.bf16.mxu0 %v2026
    %2463 = vmatpush1.bf16.msra.mxu0 %v2025
    %2464 = vmatprep.subr.bf16.mxu0 %v2030
    %2465 = vmatpush1.bf16.msra.mxu0 %v2029
    %2466 = vmatprep.subr.bf16.mxu0 %v2034
    %2467 = vmatpush1.bf16.msra.mxu0 %v2033
    %2468 = vmatprep.subr.bf16.mxu0 %v2038
    %2469 = vmatpush1.bf16.msra.mxu0 %v2037
    %2470 = vmatprep.subr.bf16.mxu0 %v2042
    %2471 = vmatpush1.bf16.msra.mxu0 %v2041
    %2472 = vmatprep.subr.bf16.mxu0 %v2046
    %2473 = vmatpush1.bf16.msra.mxu0 %v2045
    %2474 = vmatprep.subr.bf16.mxu0 %v2050
    %2475 = vmatpush1.bf16.msra.mxu0 %v2049
    %2476 = vmatprep.subr.bf16.mxu0 %v2054
    %2477 = vmatpush1.bf16.msra.mxu0 %v2053
    %2478 = vmatprep.subr.bf16.mxu0 %v2058
    %2479 = vmatpush1.bf16.msra.mxu0 %v2057
    %2480 = vmatprep.subr.bf16.mxu0 %v2062
    %2481 = vmatpush1.bf16.msra.mxu0 %v2061
    %2482 = vmatprep.mubr.bf16.mxu0 %v762
    %2483 = vmatmul.mubr.bf16.gmra.mrb[0].mxu0 %v761
    %v2484 = vpop.f32.mrb[0].mxu0
    %v2485 = vadd.f32 %v2442, %v2484
    %v2486 = vpop.f32.mrb[0].mxu0
    %v2487 = vadd.f32 %v2444, %v2486
    %v2488 = vpop.f32.mrb[0].mxu0
    %v2489 = vadd.f32 %v2446, %v2488
    %v2490 = vpop.f32.mrb[0].mxu0
    %v2491 = vadd.f32 %v2448, %v2490
    %2492 = vdwg.mxu0
    %2493 = vmatprep.subr.bf16.mxu0 %v1812
    %2494 = vmatpush1.bf16.msra.mxu0 %v1811
    %2495 = vmatprep.subr.bf16.mxu0 %v1816
    %2496 = vmatpush1.bf16.msra.mxu0 %v1815
    %2497 = vmatprep.subr.bf16.mxu0 %v1820
    %2498 = vmatpush1.bf16.msra.mxu0 %v1819
    %2499 = vmatprep.subr.bf16.mxu0 %v1824
    %2500 = vmatpush1.bf16.msra.mxu0 %v1823
    %2501 = vmatprep.subr.bf16.mxu0 %v1828
    %2502 = vmatpush1.bf16.msra.mxu0 %v1827
    %2503 = vmatprep.subr.bf16.mxu0 %v1832
    %2504 = vmatpush1.bf16.msra.mxu0 %v1831
    %2505 = vmatprep.subr.bf16.mxu0 %v1836
    %2506 = vmatpush1.bf16.msra.mxu0 %v1835
    %2507 = vmatprep.subr.bf16.mxu0 %v1840
    %2508 = vmatpush1.bf16.msra.mxu0 %v1839
    %2509 = vmatprep.subr.bf16.mxu0 %v1844
    %2510 = vmatpush1.bf16.msra.mxu0 %v1843
    %2511 = vmatprep.subr.bf16.mxu0 %v1848
    %2512 = vmatpush1.bf16.msra.mxu0 %v1847
    %2513 = vmatprep.subr.bf16.mxu0 %v1852
    %2514 = vmatpush1.bf16.msra.mxu0 %v1851
    %2515 = vmatprep.subr.bf16.mxu0 %v1856
    %2516 = vmatpush1.bf16.msra.mxu0 %v1855
    %2517 = vmatprep.subr.bf16.mxu0 %v1860
    %2518 = vmatpush1.bf16.msra.mxu0 %v1859
    %2519 = vmatprep.subr.bf16.mxu0 %v1864
    %2520 = vmatpush1.bf16.msra.mxu0 %v1863
    %2521 = vmatprep.subr.bf16.mxu0 %v1868
    %2522 = vmatpush1.bf16.msra.mxu0 %v1867
    %2523 = vmatprep.subr.bf16.mxu0 %v1872
    %2524 = vmatpush1.bf16.msra.mxu0 %v1871
    %2525 = vmatprep.mubr.bf16.mxu0 %v756
    %2526 = vmatmul.mubr.bf16.gmra.mrb[0].mxu0 %v755
    %v2527 = vpop.f32.mrb[0].mxu0
    %v2528 = vadd.f32 %v1032, %v2527
    %v2529 = vpop.f32.mrb[0].mxu0
    %v2530 = vadd.f32 %v1036, %v2529
    %v2531 = vpop.f32.mrb[0].mxu0
    %v2532 = vadd.f32 %v1032, %v2531
    %v2533 = vpop.f32.mrb[0].mxu0
    %v2534 = vadd.f32 %v1036, %v2533
    %2535 = vdwg.mxu0
    %2536 = vmatprep.subr.bf16.mxu0 %v1876
    %2537 = vmatpush1.bf16.msra.mxu0 %v1875
    %2538 = vmatprep.subr.bf16.mxu0 %v1880
    %2539 = vmatpush1.bf16.msra.mxu0 %v1879
    %2540 = vmatprep.subr.bf16.mxu0 %v1884
    %2541 = vmatpush1.bf16.msra.mxu0 %v1883
    %2542 = vmatprep.subr.bf16.mxu0 %v1888
    %2543 = vmatpush1.bf16.msra.mxu0 %v1887
    %2544 = vmatprep.subr.bf16.mxu0 %v1892
    %2545 = vmatpush1.bf16.msra.mxu0 %v1891
    %2546 = vmatprep.subr.bf16.mxu0 %v1896
    %2547 = vmatpush1.bf16.msra.mxu0 %v1895
    %2548 = vmatprep.subr.bf16.mxu0 %v1900
    %2549 = vmatpush1.bf16.msra.mxu0 %v1899
    %2550 = vmatprep.subr.bf16.mxu0 %v1904
    %2551 = vmatpush1.bf16.msra.mxu0 %v1903
    %2552 = vmatprep.subr.bf16.mxu0 %v1908
    %2553 = vmatpush1.bf16.msra.mxu0 %v1907
    %2554 = vmatprep.subr.bf16.mxu0 %v1912
    %2555 = vmatpush1.bf16.msra.mxu0 %v1911
    %2556 = vmatprep.subr.bf16.mxu0 %v1916
    %2557 = vmatpush1.bf16.msra.mxu0 %v1915
    %2558 = vmatprep.subr.bf16.mxu0 %v1920
    %2559 = vmatpush1.bf16.msra.mxu0 %v1919
    %2560 = vmatprep.subr.bf16.mxu0 %v1924
    %2561 = vmatpush1.bf16.msra.mxu0 %v1923
    %2562 = vmatprep.subr.bf16.mxu0 %v1928
    %2563 = vmatpush1.bf16.msra.mxu0 %v1927
    %2564 = vmatprep.subr.bf16.mxu0 %v1932
    %2565 = vmatpush1.bf16.msra.mxu0 %v1931
    %2566 = vmatprep.subr.bf16.mxu0 %v1936
    %2567 = vmatpush1.bf16.msra.mxu0 %v1935
    %2568 = vmatprep.mubr.bf16.mxu0 %v758
    %2569 = vmatmul.mubr.bf16.gmra.mrb[0].mxu0 %v757
    %v2570 = vpop.f32.mrb[0].mxu0
    %v2571 = vadd.f32 %v2528, %v2570
    %v2572 = vpop.f32.mrb[0].mxu0
    %v2573 = vadd.f32 %v2530, %v2572
    %v2574 = vpop.f32.mrb[0].mxu0
    %v2575 = vadd.f32 %v2532, %v2574
    %v2576 = vpop.f32.mrb[0].mxu0
    %v2577 = vadd.f32 %v2534, %v2576
    %2578 = vdwg.mxu0
    %2579 = vmatprep.subr.bf16.mxu0 %v1940
    %2580 = vmatpush1.bf16.msra.mxu0 %v1939
    %2581 = vmatprep.subr.bf16.mxu0 %v1944
    %2582 = vmatpush1.bf16.msra.mxu0 %v1943
    %2583 = vmatprep.subr.bf16.mxu0 %v1948
    %2584 = vmatpush1.bf16.msra.mxu0 %v1947
    %2585 = vmatprep.subr.bf16.mxu0 %v1952
    %2586 = vmatpush1.bf16.msra.mxu0 %v1951
    %2587 = vmatprep.subr.bf16.mxu0 %v1956
    %2588 = vmatpush1.bf16.msra.mxu0 %v1955
    %2589 = vmatprep.subr.bf16.mxu0 %v1960
    %2590 = vmatpush1.bf16.msra.mxu0 %v1959
    %2591 = vmatprep.subr.bf16.mxu0 %v1964
    %2592 = vmatpush1.bf16.msra.mxu0 %v1963
    %2593 = vmatprep.subr.bf16.mxu0 %v1968
    %2594 = vmatpush1.bf16.msra.mxu0 %v1967
    %2595 = vmatprep.subr.bf16.mxu0 %v1972
    %2596 = vmatpush1.bf16.msra.mxu0 %v1971
    %2597 = vmatprep.subr.bf16.mxu0 %v1976
    %2598 = vmatpush1.bf16.msra.mxu0 %v1975
    %2599 = vmatprep.subr.bf16.mxu0 %v1980
    %2600 = vmatpush1.bf16.msra.mxu0 %v1979
    %2601 = vmatprep.subr.bf16.mxu0 %v1984
    %2602 = vmatpush1.bf16.msra.mxu0 %v1983
    %2603 = vmatprep.subr.bf16.mxu0 %v1988
    %2604 = vmatpush1.bf16.msra.mxu0 %v1987
    %2605 = vmatprep.subr.bf16.mxu0 %v1992
    %2606 = vmatpush1.bf16.msra.mxu0 %v1991
    %2607 = vmatprep.subr.bf16.mxu0 %v1996
    %2608 = vmatpush1.bf16.msra.mxu0 %v1995
    %2609 = vmatprep.subr.bf16.mxu0 %v2000
    %2610 = vmatpush1.bf16.msra.mxu0 %v1999
    %2611 = vmatprep.mubr.bf16.mxu0 %v760
    %2612 = vmatmul.mubr.bf16.gmra.mrb[0].mxu0 %v759
    %v2613 = vpop.f32.mrb[0].mxu0
    %v2614 = vadd.f32 %v2571, %v2613
    %v2615 = vpop.f32.mrb[0].mxu0
    %v2616 = vadd.f32 %v2573, %v2615
    %v2617 = vpop.f32.mrb[0].mxu0
    %v2618 = vadd.f32 %v2575, %v2617
    %v2619 = vpop.f32.mrb[0].mxu0
    %v2620 = vadd.f32 %v2577, %v2619
    %2621 = vdwg.mxu0
    %2622 = vmatprep.subr.bf16.mxu0 %v2004
    %2623 = vmatpush1.bf16.msra.mxu0 %v2003
    %2624 = vmatprep.subr.bf16.mxu0 %v2008
    %2625 = vmatpush1.bf16.msra.mxu0 %v2007
    %2626 = vmatprep.subr.bf16.mxu0 %v2012
    %2627 = vmatpush1.bf16.msra.mxu0 %v2011
    %2628 = vmatprep.subr.bf16.mxu0 %v2016
    %2629 = vmatpush1.bf16.msra.mxu0 %v2015
    %2630 = vmatprep.subr.bf16.mxu0 %v2020
    %2631 = vmatpush1.bf16.msra.mxu0 %v2019
    %2632 = vmatprep.subr.bf16.mxu0 %v2024
    %2633 = vmatpush1.bf16.msra.mxu0 %v2023
    %2634 = vmatprep.subr.bf16.mxu0 %v2028
    %2635 = vmatpush1.bf16.msra.mxu0 %v2027
    %2636 = vmatprep.subr.bf16.mxu0 %v2032
    %2637 = vmatpush1.bf16.msra.mxu0 %v2031
    %2638 = vmatprep.subr.bf16.mxu0 %v2036
    %2639 = vmatpush1.bf16.msra.mxu0 %v2035
    %2640 = vmatprep.subr.bf16.mxu0 %v2040
    %2641 = vmatpush1.bf16.msra.mxu0 %v2039
    %2642 = vmatprep.subr.bf16.mxu0 %v2044
    %2643 = vmatpush1.bf16.msra.mxu0 %v2043
    %2644 = vmatprep.subr.bf16.mxu0 %v2048
    %2645 = vmatpush1.bf16.msra.mxu0 %v2047
    %2646 = vmatprep.subr.bf16.mxu0 %v2052
    %2647 = vmatpush1.bf16.msra.mxu0 %v2051
    %2648 = vmatprep.subr.bf16.mxu0 %v2056
    %2649 = vmatpush1.bf16.msra.mxu0 %v2055
    %2650 = vmatprep.subr.bf16.mxu0 %v2060
    %2651 = vmatpush1.bf16.msra.mxu0 %v2059
    %2652 = vmatprep.subr.bf16.mxu0 %v2064
    %2653 = vmatpush1.bf16.msra.mxu0 %v2063
    %2654 = vmatprep.mubr.bf16.mxu0 %v762
    %2655 = vmatmul.mubr.bf16.gmra.mrb[0].mxu0 %v761
    %v2656 = vpop.f32.mrb[0].mxu0
    %v2657 = vadd.f32 %v2614, %v2656
    %v2658 = vpop.f32.mrb[0].mxu0
    %v2659 = vadd.f32 %v2616, %v2658
    %v2660 = vpop.f32.mrb[0].mxu0
    %v2661 = vadd.f32 %v2618, %v2660
    %v2662 = vpop.f32.mrb[0].mxu0
    %v2663 = vadd.f32 %v2620, %v2662
    %2664 = vdwg.mxu0
    %v2665 = vmax.f32 %v2485, 0.0
    %v2666 = vmax.f32 %v2487, 0.0
    %v2667 = vmax.f32 %v2657, 0.0
    %v2668 = vmax.f32 %v2659, 0.0
    %v2669 = vmax.f32 %v2489, 0.0
    %v2670 = vmax.f32 %v2491, 0.0
    %v2671 = vmax.f32 %v2661, 0.0
    %v2672 = vmax.f32 %v2663, 0.0
    %v2673 = vpack.c.bf16 %v2669, %v2665
    %v2674 = vpack.c.bf16 %v2670, %v2666
    %v2675 = vpack.c.bf16 %v2671, %v2667
    %v2676 = vpack.c.bf16 %v2672, %v2668
    %v2677 = vld [vmem:[#allocation10] sm:$0xff]
    %v2678 = vld [vmem:[#allocation10 + $0x8] sm:$0xff]
    %v2679 = vld [vmem:[#allocation10 + $0x10] sm:$0xff]
    %v2680 = vld [vmem:[#allocation10 + $0x18] sm:$0xff]
    %v2681 = vld [vmem:[#allocation10 + $0x20] sm:$0xff]
    %v2682 = vld [vmem:[#allocation10 + $0x28] sm:$0xff]
    %v2683 = vld [vmem:[#allocation10 + $0x30] sm:$0xff]
    %v2684 = vld [vmem:[#allocation10 + $0x38] sm:$0xff]
    %v2685 = vld [vmem:[#allocation10 + $0x40] sm:$0xff]
    %v2686 = vld [vmem:[#allocation10 + $0x48] sm:$0xff]
    %v2687 = vld [vmem:[#allocation10 + $0x50] sm:$0xff]
    %v2688 = vld [vmem:[#allocation10 + $0x58] sm:$0xff]
    %v2689 = vld [vmem:[#allocation10 + $0x60] sm:$0xff]
    %v2690 = vld [vmem:[#allocation10 + $0x68] sm:$0xff]
    %v2691 = vld [vmem:[#allocation10 + $0x70] sm:$0xff]
    %v2692 = vld [vmem:[#allocation10 + $0x78] sm:$0xff]
    %v2693 = vld [vmem:[#allocation10 + $0x80] sm:$0xff]
    %v2694 = vld [vmem:[#allocation10 + $0x88] sm:$0xff]
    %v2695 = vld [vmem:[#allocation10 + $0x90] sm:$0xff]
    %v2696 = vld [vmem:[#allocation10 + $0x98] sm:$0xff]
    %v2697 = vld [vmem:[#allocation10 + $0xa0] sm:$0xff]
    %v2698 = vld [vmem:[#allocation10 + $0xa8] sm:$0xff]
    %v2699 = vld [vmem:[#allocation10 + $0xb0] sm:$0xff]
    %v2700 = vld [vmem:[#allocation10 + $0xb8] sm:$0xff]
    %v2701 = vld [vmem:[#allocation10 + $0xc0] sm:$0xff]
    %v2702 = vld [vmem:[#allocation10 + $0xc8] sm:$0xff]
    %v2703 = vld [vmem:[#allocation10 + $0xd0] sm:$0xff]
    %v2704 = vld [vmem:[#allocation10 + $0xd8] sm:$0xff]
    %v2705 = vld [vmem:[#allocation10 + $0xe0] sm:$0xff]
    %v2706 = vld [vmem:[#allocation10 + $0xe8] sm:$0xff]
    %v2707 = vld [vmem:[#allocation10 + $0xf0] sm:$0xff]
    %v2708 = vld [vmem:[#allocation10 + $0xf8] sm:$0xff]
    %v2709 = vld [vmem:[#allocation10 + $0x100] sm:$0xff]
    %v2710 = vld [vmem:[#allocation10 + $0x108] sm:$0xff]
    %v2711 = vld [vmem:[#allocation10 + $0x110] sm:$0xff]
    %v2712 = vld [vmem:[#allocation10 + $0x118] sm:$0xff]
    %v2713 = vld [vmem:[#allocation10 + $0x120] sm:$0xff]
    %v2714 = vld [vmem:[#allocation10 + $0x128] sm:$0xff]
    %v2715 = vld [vmem:[#allocation10 + $0x130] sm:$0xff]
    %v2716 = vld [vmem:[#allocation10 + $0x138] sm:$0xff]
    %v2717 = vld [vmem:[#allocation10 + $0x140] sm:$0xff]
    %v2718 = vld [vmem:[#allocation10 + $0x148] sm:$0xff]
    %v2719 = vld [vmem:[#allocation10 + $0x150] sm:$0xff]
    %v2720 = vld [vmem:[#allocation10 + $0x158] sm:$0xff]
    %v2721 = vld [vmem:[#allocation10 + $0x160] sm:$0xff]
    %v2722 = vld [vmem:[#allocation10 + $0x168] sm:$0xff]
    %v2723 = vld [vmem:[#allocation10 + $0x170] sm:$0xff]
    %v2724 = vld [vmem:[#allocation10 + $0x178] sm:$0xff]
    %v2725 = vld [vmem:[#allocation10 + $0x180] sm:$0xff]
    %v2726 = vld [vmem:[#allocation10 + $0x188] sm:$0xff]
    %v2727 = vld [vmem:[#allocation10 + $0x190] sm:$0xff]
    %v2728 = vld [vmem:[#allocation10 + $0x198] sm:$0xff]
    %v2729 = vld [vmem:[#allocation10 + $0x1a0] sm:$0xff]
    %v2730 = vld [vmem:[#allocation10 + $0x1a8] sm:$0xff]
    %v2731 = vld [vmem:[#allocation10 + $0x1b0] sm:$0xff]
    %v2732 = vld [vmem:[#allocation10 + $0x1b8] sm:$0xff]
    %v2733 = vld [vmem:[#allocation10 + $0x1c0] sm:$0xff]
    %v2734 = vld [vmem:[#allocation10 + $0x1c8] sm:$0xff]
    %v2735 = vld [vmem:[#allocation10 + $0x1d0] sm:$0xff]
    %v2736 = vld [vmem:[#allocation10 + $0x1d8] sm:$0xff]
    %v2737 = vld [vmem:[#allocation10 + $0x1e0] sm:$0xff]
    %v2738 = vld [vmem:[#allocation10 + $0x1e8] sm:$0xff]
    %v2739 = vld [vmem:[#allocation10 + $0x1f0] sm:$0xff]
    %v2740 = vld [vmem:[#allocation10 + $0x1f8] sm:$0xff]
    %v2741 = vld [vmem:[#allocation10 + $0x200] sm:$0xff]
    %v2742 = vld [vmem:[#allocation10 + $0x208] sm:$0xff]
    %v2743 = vld [vmem:[#allocation10 + $0x210] sm:$0xff]
    %v2744 = vld [vmem:[#allocation10 + $0x218] sm:$0xff]
    %v2745 = vld [vmem:[#allocation10 + $0x220] sm:$0xff]
    %v2746 = vld [vmem:[#allocation10 + $0x228] sm:$0xff]
    %v2747 = vld [vmem:[#allocation10 + $0x230] sm:$0xff]
    %v2748 = vld [vmem:[#allocation10 + $0x238] sm:$0xff]
    %v2749 = vld [vmem:[#allocation10 + $0x240] sm:$0xff]
    %v2750 = vld [vmem:[#allocation10 + $0x248] sm:$0xff]
    %v2751 = vld [vmem:[#allocation10 + $0x250] sm:$0xff]
    %v2752 = vld [vmem:[#allocation10 + $0x258] sm:$0xff]
    %v2753 = vld [vmem:[#allocation10 + $0x260] sm:$0xff]
    %v2754 = vld [vmem:[#allocation10 + $0x268] sm:$0xff]
    %v2755 = vld [vmem:[#allocation10 + $0x270] sm:$0xff]
    %v2756 = vld [vmem:[#allocation10 + $0x278] sm:$0xff]
    %v2757 = vld [vmem:[#allocation10 + $0x280] sm:$0xff]
    %v2758 = vld [vmem:[#allocation10 + $0x288] sm:$0xff]
    %v2759 = vld [vmem:[#allocation10 + $0x290] sm:$0xff]
    %v2760 = vld [vmem:[#allocation10 + $0x298] sm:$0xff]
    %v2761 = vld [vmem:[#allocation10 + $0x2a0] sm:$0xff]
    %v2762 = vld [vmem:[#allocation10 + $0x2a8] sm:$0xff]
    %v2763 = vld [vmem:[#allocation10 + $0x2b0] sm:$0xff]
    %v2764 = vld [vmem:[#allocation10 + $0x2b8] sm:$0xff]
    %v2765 = vld [vmem:[#allocation10 + $0x2c0] sm:$0xff]
    %v2766 = vld [vmem:[#allocation10 + $0x2c8] sm:$0xff]
    %v2767 = vld [vmem:[#allocation10 + $0x2d0] sm:$0xff]
    %v2768 = vld [vmem:[#allocation10 + $0x2d8] sm:$0xff]
    %v2769 = vld [vmem:[#allocation10 + $0x2e0] sm:$0xff]
    %v2770 = vld [vmem:[#allocation10 + $0x2e8] sm:$0xff]
    %v2771 = vld [vmem:[#allocation10 + $0x2f0] sm:$0xff]
    %v2772 = vld [vmem:[#allocation10 + $0x2f8] sm:$0xff]
    %v2773 = vld [vmem:[#allocation10 + $0x300] sm:$0xff]
    %v2774 = vld [vmem:[#allocation10 + $0x308] sm:$0xff]
    %v2775 = vld [vmem:[#allocation10 + $0x310] sm:$0xff]
    %v2776 = vld [vmem:[#allocation10 + $0x318] sm:$0xff]
    %v2777 = vld [vmem:[#allocation10 + $0x320] sm:$0xff]
    %v2778 = vld [vmem:[#allocation10 + $0x328] sm:$0xff]
    %v2779 = vld [vmem:[#allocation10 + $0x330] sm:$0xff]
    %v2780 = vld [vmem:[#allocation10 + $0x338] sm:$0xff]
    %v2781 = vld [vmem:[#allocation10 + $0x340] sm:$0xff]
    %v2782 = vld [vmem:[#allocation10 + $0x348] sm:$0xff]
    %v2783 = vld [vmem:[#allocation10 + $0x350] sm:$0xff]
    %v2784 = vld [vmem:[#allocation10 + $0x358] sm:$0xff]
    %v2785 = vld [vmem:[#allocation10 + $0x360] sm:$0xff]
    %v2786 = vld [vmem:[#allocation10 + $0x368] sm:$0xff]
    %v2787 = vld [vmem:[#allocation10 + $0x370] sm:$0xff]
    %v2788 = vld [vmem:[#allocation10 + $0x378] sm:$0xff]
    %v2789 = vld [vmem:[#allocation10 + $0x380] sm:$0xff]
    %v2790 = vld [vmem:[#allocation10 + $0x388] sm:$0xff]
    %v2791 = vld [vmem:[#allocation10 + $0x390] sm:$0xff]
    %v2792 = vld [vmem:[#allocation10 + $0x398] sm:$0xff]
    %v2793 = vld [vmem:[#allocation10 + $0x3a0] sm:$0xff]
    %v2794 = vld [vmem:[#allocation10 + $0x3a8] sm:$0xff]
    %v2795 = vld [vmem:[#allocation10 + $0x3b0] sm:$0xff]
    %v2796 = vld [vmem:[#allocation10 + $0x3b8] sm:$0xff]
    %v2797 = vld [vmem:[#allocation10 + $0x3c0] sm:$0xff]
    %v2798 = vld [vmem:[#allocation10 + $0x3c8] sm:$0xff]
    %v2799 = vld [vmem:[#allocation10 + $0x3d0] sm:$0xff]
    %v2800 = vld [vmem:[#allocation10 + $0x3d8] sm:$0xff]
    %v2801 = vld [vmem:[#allocation10 + $0x3e0] sm:$0xff]
    %v2802 = vld [vmem:[#allocation10 + $0x3e8] sm:$0xff]
    %v2803 = vld [vmem:[#allocation10 + $0x3f0] sm:$0xff]
    %v2804 = vld [vmem:[#allocation10 + $0x3f8] sm:$0xff]
    %v2805 = vld [vmem:[%s6] sm:$0xf]
    %v2807 = vlaneseq
    %v2808 = vshrl.u32 %v2807, 7
    %v2809 = vsub.s32 0, %v2808
    %v2810 = vrot.slane %v2805, %v2809
    %v2811 = vlaneseq
    %v2812 = vshrl.u32 %v2811, 7
    %v2813 = vsub.s32 1, %v2812
    %v2814 = vrot.slane %v2805, %v2813
    %v2815 = vlaneseq
    %v2816 = vshrl.u32 %v2815, 7
    %v2817 = vsub.s32 2, %v2816
    %v2818 = vrot.slane %v2805, %v2817
    %v2819 = vlaneseq
    %v2820 = vshrl.u32 %v2819, 7
    %v2821 = vsub.s32 3, %v2820
    %v2822 = vrot.slane %v2805, %v2821
    %v2955 = vunpack.c.l.b16 %v2677
    %v2956 = vunpack.c.h.b16 %v2677
    %v2957 = vunpack.c.l.b16 %v2678
    %v2958 = vunpack.c.h.b16 %v2678
    %v2959 = vunpack.c.l.b16 %v2679
    %v2960 = vunpack.c.h.b16 %v2679
    %v2961 = vunpack.c.l.b16 %v2680
    %v2962 = vunpack.c.h.b16 %v2680
    %v2963 = vunpack.c.l.b16 %v2681
    %v2964 = vunpack.c.h.b16 %v2681
    %v2965 = vunpack.c.l.b16 %v2682
    %v2966 = vunpack.c.h.b16 %v2682
    %v2967 = vunpack.c.l.b16 %v2683
    %v2968 = vunpack.c.h.b16 %v2683
    %v2969 = vunpack.c.l.b16 %v2684
    %v2970 = vunpack.c.h.b16 %v2684
    %v2971 = vunpack.c.l.b16 %v2685
    %v2972 = vunpack.c.h.b16 %v2685
    %v2973 = vunpack.c.l.b16 %v2686
    %v2974 = vunpack.c.h.b16 %v2686
    %v2975 = vunpack.c.l.b16 %v2687
    %v2976 = vunpack.c.h.b16 %v2687
    %v2977 = vunpack.c.l.b16 %v2688
    %v2978 = vunpack.c.h.b16 %v2688
    %v2979 = vunpack.c.l.b16 %v2689
    %v2980 = vunpack.c.h.b16 %v2689
    %v2981 = vunpack.c.l.b16 %v2690
    %v2982 = vunpack.c.h.b16 %v2690
    %v2983 = vunpack.c.l.b16 %v2691
    %v2984 = vunpack.c.h.b16 %v2691
    %v2985 = vunpack.c.l.b16 %v2692
    %v2986 = vunpack.c.h.b16 %v2692
    %v2987 = vunpack.c.l.b16 %v2693
    %v2988 = vunpack.c.h.b16 %v2693
    %v2989 = vunpack.c.l.b16 %v2694
    %v2990 = vunpack.c.h.b16 %v2694
    %v2991 = vunpack.c.l.b16 %v2695
    %v2992 = vunpack.c.h.b16 %v2695
    %v2993 = vunpack.c.l.b16 %v2696
    %v2994 = vunpack.c.h.b16 %v2696
    %v2995 = vunpack.c.l.b16 %v2697
    %v2996 = vunpack.c.h.b16 %v2697
    %v2997 = vunpack.c.l.b16 %v2698
    %v2998 = vunpack.c.h.b16 %v2698
    %v2999 = vunpack.c.l.b16 %v2699
    %v3000 = vunpack.c.h.b16 %v2699
    %v3001 = vunpack.c.l.b16 %v2700
    %v3002 = vunpack.c.h.b16 %v2700
    %v3003 = vunpack.c.l.b16 %v2701
    %v3004 = vunpack.c.h.b16 %v2701
    %v3005 = vunpack.c.l.b16 %v2702
    %v3006 = vunpack.c.h.b16 %v2702
    %v3007 = vunpack.c.l.b16 %v2703
    %v3008 = vunpack.c.h.b16 %v2703
    %v3009 = vunpack.c.l.b16 %v2704
    %v3010 = vunpack.c.h.b16 %v2704
    %v3011 = vunpack.c.l.b16 %v2705
    %v3012 = vunpack.c.h.b16 %v2705
    %v3013 = vunpack.c.l.b16 %v2706
    %v3014 = vunpack.c.h.b16 %v2706
    %v3015 = vunpack.c.l.b16 %v2707
    %v3016 = vunpack.c.h.b16 %v2707
    %v3017 = vunpack.c.l.b16 %v2708
    %v3018 = vunpack.c.h.b16 %v2708
    %v3019 = vunpack.c.l.b16 %v2709
    %v3020 = vunpack.c.h.b16 %v2709
    %v3021 = vunpack.c.l.b16 %v2710
    %v3022 = vunpack.c.h.b16 %v2710
    %v3023 = vunpack.c.l.b16 %v2711
    %v3024 = vunpack.c.h.b16 %v2711
    %v3025 = vunpack.c.l.b16 %v2712
    %v3026 = vunpack.c.h.b16 %v2712
    %v3027 = vunpack.c.l.b16 %v2713
    %v3028 = vunpack.c.h.b16 %v2713
    %v3029 = vunpack.c.l.b16 %v2714
    %v3030 = vunpack.c.h.b16 %v2714
    %v3031 = vunpack.c.l.b16 %v2715
    %v3032 = vunpack.c.h.b16 %v2715
    %v3033 = vunpack.c.l.b16 %v2716
    %v3034 = vunpack.c.h.b16 %v2716
    %v3035 = vunpack.c.l.b16 %v2717
    %v3036 = vunpack.c.h.b16 %v2717
    %v3037 = vunpack.c.l.b16 %v2718
    %v3038 = vunpack.c.h.b16 %v2718
    %v3039 = vunpack.c.l.b16 %v2719
    %v3040 = vunpack.c.h.b16 %v2719
    %v3041 = vunpack.c.l.b16 %v2720
    %v3042 = vunpack.c.h.b16 %v2720
    %v3043 = vunpack.c.l.b16 %v2721
    %v3044 = vunpack.c.h.b16 %v2721
    %v3045 = vunpack.c.l.b16 %v2722
    %v3046 = vunpack.c.h.b16 %v2722
    %v3047 = vunpack.c.l.b16 %v2723
    %v3048 = vunpack.c.h.b16 %v2723
    %v3049 = vunpack.c.l.b16 %v2724
    %v3050 = vunpack.c.h.b16 %v2724
    %v3051 = vunpack.c.l.b16 %v2725
    %v3052 = vunpack.c.h.b16 %v2725
    %v3053 = vunpack.c.l.b16 %v2726
    %v3054 = vunpack.c.h.b16 %v2726
    %v3055 = vunpack.c.l.b16 %v2727
    %v3056 = vunpack.c.h.b16 %v2727
    %v3057 = vunpack.c.l.b16 %v2728
    %v3058 = vunpack.c.h.b16 %v2728
    %v3059 = vunpack.c.l.b16 %v2729
    %v3060 = vunpack.c.h.b16 %v2729
    %v3061 = vunpack.c.l.b16 %v2730
    %v3062 = vunpack.c.h.b16 %v2730
    %v3063 = vunpack.c.l.b16 %v2731
    %v3064 = vunpack.c.h.b16 %v2731
    %v3065 = vunpack.c.l.b16 %v2732
    %v3066 = vunpack.c.h.b16 %v2732
    %v3067 = vunpack.c.l.b16 %v2733
    %v3068 = vunpack.c.h.b16 %v2733
    %v3069 = vunpack.c.l.b16 %v2734
    %v3070 = vunpack.c.h.b16 %v2734
    %v3071 = vunpack.c.l.b16 %v2735
    %v3072 = vunpack.c.h.b16 %v2735
    %v3073 = vunpack.c.l.b16 %v2736
    %v3074 = vunpack.c.h.b16 %v2736
    %v3075 = vunpack.c.l.b16 %v2737
    %v3076 = vunpack.c.h.b16 %v2737
    %v3077 = vunpack.c.l.b16 %v2738
    %v3078 = vunpack.c.h.b16 %v2738
    %v3079 = vunpack.c.l.b16 %v2739
    %v3080 = vunpack.c.h.b16 %v2739
    %v3081 = vunpack.c.l.b16 %v2740
    %v3082 = vunpack.c.h.b16 %v2740
    %v3083 = vunpack.c.l.b16 %v2741
    %v3084 = vunpack.c.h.b16 %v2741
    %v3085 = vunpack.c.l.b16 %v2742
    %v3086 = vunpack.c.h.b16 %v2742
    %v3087 = vunpack.c.l.b16 %v2743
    %v3088 = vunpack.c.h.b16 %v2743
    %v3089 = vunpack.c.l.b16 %v2744
    %v3090 = vunpack.c.h.b16 %v2744
    %v3091 = vunpack.c.l.b16 %v2745
    %v3092 = vunpack.c.h.b16 %v2745
    %v3093 = vunpack.c.l.b16 %v2746
    %v3094 = vunpack.c.h.b16 %v2746
    %v3095 = vunpack.c.l.b16 %v2747
    %v3096 = vunpack.c.h.b16 %v2747
    %v3097 = vunpack.c.l.b16 %v2748
    %v3098 = vunpack.c.h.b16 %v2748
    %v3099 = vunpack.c.l.b16 %v2749
    %v3100 = vunpack.c.h.b16 %v2749
    %v3101 = vunpack.c.l.b16 %v2750
    %v3102 = vunpack.c.h.b16 %v2750
    %v3103 = vunpack.c.l.b16 %v2751
    %v3104 = vunpack.c.h.b16 %v2751
    %v3105 = vunpack.c.l.b16 %v2752
    %v3106 = vunpack.c.h.b16 %v2752
    %v3107 = vunpack.c.l.b16 %v2753
    %v3108 = vunpack.c.h.b16 %v2753
    %v3109 = vunpack.c.l.b16 %v2754
    %v3110 = vunpack.c.h.b16 %v2754
    %v3111 = vunpack.c.l.b16 %v2755
    %v3112 = vunpack.c.h.b16 %v2755
    %v3113 = vunpack.c.l.b16 %v2756
    %v3114 = vunpack.c.h.b16 %v2756
    %v3115 = vunpack.c.l.b16 %v2757
    %v3116 = vunpack.c.h.b16 %v2757
    %v3117 = vunpack.c.l.b16 %v2758
    %v3118 = vunpack.c.h.b16 %v2758
    %v3119 = vunpack.c.l.b16 %v2759
    %v3120 = vunpack.c.h.b16 %v2759
    %v3121 = vunpack.c.l.b16 %v2760
    %v3122 = vunpack.c.h.b16 %v2760
    %v3123 = vunpack.c.l.b16 %v2761
    %v3124 = vunpack.c.h.b16 %v2761
    %v3125 = vunpack.c.l.b16 %v2762
    %v3126 = vunpack.c.h.b16 %v2762
    %v3127 = vunpack.c.l.b16 %v2763
    %v3128 = vunpack.c.h.b16 %v2763
    %v3129 = vunpack.c.l.b16 %v2764
    %v3130 = vunpack.c.h.b16 %v2764
    %v3131 = vunpack.c.l.b16 %v2765
    %v3132 = vunpack.c.h.b16 %v2765
    %v3133 = vunpack.c.l.b16 %v2766
    %v3134 = vunpack.c.h.b16 %v2766
    %v3135 = vunpack.c.l.b16 %v2767
    %v3136 = vunpack.c.h.b16 %v2767
    %v3137 = vunpack.c.l.b16 %v2768
    %v3138 = vunpack.c.h.b16 %v2768
    %v3139 = vunpack.c.l.b16 %v2769
    %v3140 = vunpack.c.h.b16 %v2769
    %v3141 = vunpack.c.l.b16 %v2770
    %v3142 = vunpack.c.h.b16 %v2770
    %v3143 = vunpack.c.l.b16 %v2771
    %v3144 = vunpack.c.h.b16 %v2771
    %v3145 = vunpack.c.l.b16 %v2772
    %v3146 = vunpack.c.h.b16 %v2772
    %v3147 = vunpack.c.l.b16 %v2773
    %v3148 = vunpack.c.h.b16 %v2773
    %v3149 = vunpack.c.l.b16 %v2774
    %v3150 = vunpack.c.h.b16 %v2774
    %v3151 = vunpack.c.l.b16 %v2775
    %v3152 = vunpack.c.h.b16 %v2775
    %v3153 = vunpack.c.l.b16 %v2776
    %v3154 = vunpack.c.h.b16 %v2776
    %v3155 = vunpack.c.l.b16 %v2777
    %v3156 = vunpack.c.h.b16 %v2777
    %v3157 = vunpack.c.l.b16 %v2778
    %v3158 = vunpack.c.h.b16 %v2778
    %v3159 = vunpack.c.l.b16 %v2779
    %v3160 = vunpack.c.h.b16 %v2779
    %v3161 = vunpack.c.l.b16 %v2780
    %v3162 = vunpack.c.h.b16 %v2780
    %v3163 = vunpack.c.l.b16 %v2781
    %v3164 = vunpack.c.h.b16 %v2781
    %v3165 = vunpack.c.l.b16 %v2782
    %v3166 = vunpack.c.h.b16 %v2782
    %v3167 = vunpack.c.l.b16 %v2783
    %v3168 = vunpack.c.h.b16 %v2783
    %v3169 = vunpack.c.l.b16 %v2784
    %v3170 = vunpack.c.h.b16 %v2784
    %v3171 = vunpack.c.l.b16 %v2785
    %v3172 = vunpack.c.h.b16 %v2785
    %v3173 = vunpack.c.l.b16 %v2786
    %v3174 = vunpack.c.h.b16 %v2786
    %v3175 = vunpack.c.l.b16 %v2787
    %v3176 = vunpack.c.h.b16 %v2787
    %v3177 = vunpack.c.l.b16 %v2788
    %v3178 = vunpack.c.h.b16 %v2788
    %v3179 = vunpack.c.l.b16 %v2789
    %v3180 = vunpack.c.h.b16 %v2789
    %v3181 = vunpack.c.l.b16 %v2790
    %v3182 = vunpack.c.h.b16 %v2790
    %v3183 = vunpack.c.l.b16 %v2791
    %v3184 = vunpack.c.h.b16 %v2791
    %v3185 = vunpack.c.l.b16 %v2792
    %v3186 = vunpack.c.h.b16 %v2792
    %v3187 = vunpack.c.l.b16 %v2793
    %v3188 = vunpack.c.h.b16 %v2793
    %v3189 = vunpack.c.l.b16 %v2794
    %v3190 = vunpack.c.h.b16 %v2794
    %v3191 = vunpack.c.l.b16 %v2795
    %v3192 = vunpack.c.h.b16 %v2795
    %v3193 = vunpack.c.l.b16 %v2796
    %v3194 = vunpack.c.h.b16 %v2796
    %v3195 = vunpack.c.l.b16 %v2797
    %v3196 = vunpack.c.h.b16 %v2797
    %v3197 = vunpack.c.l.b16 %v2798
    %v3198 = vunpack.c.h.b16 %v2798
    %v3199 = vunpack.c.l.b16 %v2799
    %v3200 = vunpack.c.h.b16 %v2799
    %v3201 = vunpack.c.l.b16 %v2800
    %v3202 = vunpack.c.h.b16 %v2800
    %v3203 = vunpack.c.l.b16 %v2801
    %v3204 = vunpack.c.h.b16 %v2801
    %v3205 = vunpack.c.l.b16 %v2802
    %v3206 = vunpack.c.h.b16 %v2802
    %v3207 = vunpack.c.l.b16 %v2803
    %v3208 = vunpack.c.h.b16 %v2803
    %v3209 = vunpack.c.l.b16 %v2804
    %v3210 = vunpack.c.h.b16 %v2804
    %v3211 = vpack.c.b16 %v2959, %v2955
    %v3212 = vpack.c.b16 %v2960, %v2956
    %v3213 = vpack.c.b16 %v2961, %v2957
    %v3214 = vpack.c.b16 %v2962, %v2958
    %v3215 = vpack.c.b16 %v2967, %v2963
    %v3216 = vpack.c.b16 %v2968, %v2964
    %v3217 = vpack.c.b16 %v2969, %v2965
    %v3218 = vpack.c.b16 %v2970, %v2966
    %v3219 = vpack.c.b16 %v2975, %v2971
    %v3220 = vpack.c.b16 %v2976, %v2972
    %v3221 = vpack.c.b16 %v2977, %v2973
    %v3222 = vpack.c.b16 %v2978, %v2974
    %v3223 = vpack.c.b16 %v2983, %v2979
    %v3224 = vpack.c.b16 %v2984, %v2980
    %v3225 = vpack.c.b16 %v2985, %v2981
    %v3226 = vpack.c.b16 %v2986, %v2982
    %v3227 = vpack.c.b16 %v2991, %v2987
    %v3228 = vpack.c.b16 %v2992, %v2988
    %v3229 = vpack.c.b16 %v2993, %v2989
    %v3230 = vpack.c.b16 %v2994, %v2990
    %v3231 = vpack.c.b16 %v2999, %v2995
    %v3232 = vpack.c.b16 %v3000, %v2996
    %v3233 = vpack.c.b16 %v3001, %v2997
    %v3234 = vpack.c.b16 %v3002, %v2998
    %v3235 = vpack.c.b16 %v3007, %v3003
    %v3236 = vpack.c.b16 %v3008, %v3004
    %v3237 = vpack.c.b16 %v3009, %v3005
    %v3238 = vpack.c.b16 %v3010, %v3006
    %v3239 = vpack.c.b16 %v3015, %v3011
    %v3240 = vpack.c.b16 %v3016, %v3012
    %v3241 = vpack.c.b16 %v3017, %v3013
    %v3242 = vpack.c.b16 %v3018, %v3014
    %v3243 = vpack.c.b16 %v3023, %v3019
    %v3244 = vpack.c.b16 %v3024, %v3020
    %v3245 = vpack.c.b16 %v3025, %v3021
    %v3246 = vpack.c.b16 %v3026, %v3022
    %v3247 = vpack.c.b16 %v3031, %v3027
    %v3248 = vpack.c.b16 %v3032, %v3028
    %v3249 = vpack.c.b16 %v3033, %v3029
    %v3250 = vpack.c.b16 %v3034, %v3030
    %v3251 = vpack.c.b16 %v3039, %v3035
    %v3252 = vpack.c.b16 %v3040, %v3036
    %v3253 = vpack.c.b16 %v3041, %v3037
    %v3254 = vpack.c.b16 %v3042, %v3038
    %v3255 = vpack.c.b16 %v3047, %v3043
    %v3256 = vpack.c.b16 %v3048, %v3044
    %v3257 = vpack.c.b16 %v3049, %v3045
    %v3258 = vpack.c.b16 %v3050, %v3046
    %v3259 = vpack.c.b16 %v3055, %v3051
    %v3260 = vpack.c.b16 %v3056, %v3052
    %v3261 = vpack.c.b16 %v3057, %v3053
    %v3262 = vpack.c.b16 %v3058, %v3054
    %v3263 = vpack.c.b16 %v3063, %v3059
    %v3264 = vpack.c.b16 %v3064, %v3060
    %v3265 = vpack.c.b16 %v3065, %v3061
    %v3266 = vpack.c.b16 %v3066, %v3062
    %v3267 = vpack.c.b16 %v3071, %v3067
    %v3268 = vpack.c.b16 %v3072, %v3068
    %v3269 = vpack.c.b16 %v3073, %v3069
    %v3270 = vpack.c.b16 %v3074, %v3070
    %v3271 = vpack.c.b16 %v3079, %v3075
    %v3272 = vpack.c.b16 %v3080, %v3076
    %v3273 = vpack.c.b16 %v3081, %v3077
    %v3274 = vpack.c.b16 %v3082, %v3078
    %v3275 = vpack.c.b16 %v3087, %v3083
    %v3276 = vpack.c.b16 %v3088, %v3084
    %v3277 = vpack.c.b16 %v3089, %v3085
    %v3278 = vpack.c.b16 %v3090, %v3086
    %v3279 = vpack.c.b16 %v3095, %v3091
    %v3280 = vpack.c.b16 %v3096, %v3092
    %v3281 = vpack.c.b16 %v3097, %v3093
    %v3282 = vpack.c.b16 %v3098, %v3094
    %v3283 = vpack.c.b16 %v3103, %v3099
    %v3284 = vpack.c.b16 %v3104, %v3100
    %v3285 = vpack.c.b16 %v3105, %v3101
    %v3286 = vpack.c.b16 %v3106, %v3102
    %v3287 = vpack.c.b16 %v3111, %v3107
    %v3288 = vpack.c.b16 %v3112, %v3108
    %v3289 = vpack.c.b16 %v3113, %v3109
    %v3290 = vpack.c.b16 %v3114, %v3110
    %v3291 = vpack.c.b16 %v3119, %v3115
    %v3292 = vpack.c.b16 %v3120, %v3116
    %v3293 = vpack.c.b16 %v3121, %v3117
    %v3294 = vpack.c.b16 %v3122, %v3118
    %v3295 = vpack.c.b16 %v3127, %v3123
    %v3296 = vpack.c.b16 %v3128, %v3124
    %v3297 = vpack.c.b16 %v3129, %v3125
    %v3298 = vpack.c.b16 %v3130, %v3126
    %v3299 = vpack.c.b16 %v3135, %v3131
    %v3300 = vpack.c.b16 %v3136, %v3132
    %v3301 = vpack.c.b16 %v3137, %v3133
    %v3302 = vpack.c.b16 %v3138, %v3134
    %v3303 = vpack.c.b16 %v3143, %v3139
    %v3304 = vpack.c.b16 %v3144, %v3140
    %v3305 = vpack.c.b16 %v3145, %v3141
    %v3306 = vpack.c.b16 %v3146, %v3142
    %v3307 = vpack.c.b16 %v3151, %v3147
    %v3308 = vpack.c.b16 %v3152, %v3148
    %v3309 = vpack.c.b16 %v3153, %v3149
    %v3310 = vpack.c.b16 %v3154, %v3150
    %v3311 = vpack.c.b16 %v3159, %v3155
    %v3312 = vpack.c.b16 %v3160, %v3156
    %v3313 = vpack.c.b16 %v3161, %v3157
    %v3314 = vpack.c.b16 %v3162, %v3158
    %v3315 = vpack.c.b16 %v3167, %v3163
    %v3316 = vpack.c.b16 %v3168, %v3164
    %v3317 = vpack.c.b16 %v3169, %v3165
    %v3318 = vpack.c.b16 %v3170, %v3166
    %v3319 = vpack.c.b16 %v3175, %v3171
    %v3320 = vpack.c.b16 %v3176, %v3172
    %v3321 = vpack.c.b16 %v3177, %v3173
    %v3322 = vpack.c.b16 %v3178, %v3174
    %v3323 = vpack.c.b16 %v3183, %v3179
    %v3324 = vpack.c.b16 %v3184, %v3180
    %v3325 = vpack.c.b16 %v3185, %v3181
    %v3326 = vpack.c.b16 %v3186, %v3182
    %v3327 = vpack.c.b16 %v3191, %v3187
    %v3328 = vpack.c.b16 %v3192, %v3188
    %v3329 = vpack.c.b16 %v3193, %v3189
    %v3330 = vpack.c.b16 %v3194, %v3190
    %v3331 = vpack.c.b16 %v3199, %v3195
    %v3332 = vpack.c.b16 %v3200, %v3196
    %v3333 = vpack.c.b16 %v3201, %v3197
    %v3334 = vpack.c.b16 %v3202, %v3198
    %v3335 = vpack.c.b16 %v3207, %v3203
    %v3336 = vpack.c.b16 %v3208, %v3204
    %v3337 = vpack.c.b16 %v3209, %v3205
    %v3338 = vpack.c.b16 %v3210, %v3206
    %3467 = vmatprep.subr.bf16.mxu0 %v3212
    %3468 = vmatpush1.bf16.msra.mxu0 %v3211
    %3469 = vmatprep.subr.bf16.mxu0 %v3216
    %3470 = vmatpush1.bf16.msra.mxu0 %v3215
    %3471 = vmatprep.subr.bf16.mxu0 %v3220
    %3472 = vmatpush1.bf16.msra.mxu0 %v3219
    %3473 = vmatprep.subr.bf16.mxu0 %v3224
    %3474 = vmatpush1.bf16.msra.mxu0 %v3223
    %3475 = vmatprep.subr.bf16.mxu0 %v3228
    %3476 = vmatpush1.bf16.msra.mxu0 %v3227
    %3477 = vmatprep.subr.bf16.mxu0 %v3232
    %3478 = vmatpush1.bf16.msra.mxu0 %v3231
    %3479 = vmatprep.subr.bf16.mxu0 %v3236
    %3480 = vmatpush1.bf16.msra.mxu0 %v3235
    %3481 = vmatprep.subr.bf16.mxu0 %v3240
    %3482 = vmatpush1.bf16.msra.mxu0 %v3239
    %3483 = vmatprep.subr.bf16.mxu0 %v3244
    %3484 = vmatpush1.bf16.msra.mxu0 %v3243
    %3485 = vmatprep.subr.bf16.mxu0 %v3248
    %3486 = vmatpush1.bf16.msra.mxu0 %v3247
    %3487 = vmatprep.subr.bf16.mxu0 %v3252
    %3488 = vmatpush1.bf16.msra.mxu0 %v3251
    %3489 = vmatprep.subr.bf16.mxu0 %v3256
    %3490 = vmatpush1.bf16.msra.mxu0 %v3255
    %3491 = vmatprep.subr.bf16.mxu0 %v3260
    %3492 = vmatpush1.bf16.msra.mxu0 %v3259
    %3493 = vmatprep.subr.bf16.mxu0 %v3264
    %3494 = vmatpush1.bf16.msra.mxu0 %v3263
    %3495 = vmatprep.subr.bf16.mxu0 %v3268
    %3496 = vmatpush1.bf16.msra.mxu0 %v3267
    %3497 = vmatprep.subr.bf16.mxu0 %v3272
    %3498 = vmatpush1.bf16.msra.mxu0 %v3271
    %3499 = vmatprep.mubr.bf16.mxu0 %v2674
    %3500 = vmatmul.mubr.bf16.gmra.mrb[0].mxu0 %v2673
    %v3501 = vpop.f32.mrb[0].mxu0
    %v3502 = vadd.f32 %v2810, %v3501
    %v3503 = vpop.f32.mrb[0].mxu0
    %v3504 = vadd.f32 %v2814, %v3503
    %v3505 = vpop.f32.mrb[0].mxu0
    %v3506 = vadd.f32 %v2810, %v3505
    %v3507 = vpop.f32.mrb[0].mxu0
    %v3508 = vadd.f32 %v2814, %v3507
    %3509 = vdwg.mxu0
    %3510 = vmatprep.subr.bf16.mxu0 %v3276
    %3511 = vmatpush1.bf16.msra.mxu0 %v3275
    %3512 = vmatprep.subr.bf16.mxu0 %v3280
    %3513 = vmatpush1.bf16.msra.mxu0 %v3279
    %3514 = vmatprep.subr.bf16.mxu0 %v3284
    %3515 = vmatpush1.bf16.msra.mxu0 %v3283
    %3516 = vmatprep.subr.bf16.mxu0 %v3288
    %3517 = vmatpush1.bf16.msra.mxu0 %v3287
    %3518 = vmatprep.subr.bf16.mxu0 %v3292
    %3519 = vmatpush1.bf16.msra.mxu0 %v3291
    %3520 = vmatprep.subr.bf16.mxu0 %v3296
    %3521 = vmatpush1.bf16.msra.mxu0 %v3295
    %3522 = vmatprep.subr.bf16.mxu0 %v3300
    %3523 = vmatpush1.bf16.msra.mxu0 %v3299
    %3524 = vmatprep.subr.bf16.mxu0 %v3304
    %3525 = vmatpush1.bf16.msra.mxu0 %v3303
    %3526 = vmatprep.subr.bf16.mxu0 %v3308
    %3527 = vmatpush1.bf16.msra.mxu0 %v3307
    %3528 = vmatprep.subr.bf16.mxu0 %v3312
    %3529 = vmatpush1.bf16.msra.mxu0 %v3311
    %3530 = vmatprep.subr.bf16.mxu0 %v3316
    %3531 = vmatpush1.bf16.msra.mxu0 %v3315
    %3532 = vmatprep.subr.bf16.mxu0 %v3320
    %3533 = vmatpush1.bf16.msra.mxu0 %v3319
    %3534 = vmatprep.subr.bf16.mxu0 %v3324
    %3535 = vmatpush1.bf16.msra.mxu0 %v3323
    %3536 = vmatprep.subr.bf16.mxu0 %v3328
    %3537 = vmatpush1.bf16.msra.mxu0 %v3327
    %3538 = vmatprep.subr.bf16.mxu0 %v3332
    %3539 = vmatpush1.bf16.msra.mxu0 %v3331
    %3540 = vmatprep.subr.bf16.mxu0 %v3336
    %3541 = vmatpush1.bf16.msra.mxu0 %v3335
    %3542 = vmatprep.mubr.bf16.mxu0 %v2676
    %3543 = vmatmul.mubr.bf16.gmra.mrb[0].mxu0 %v2675
    %v3544 = vpop.f32.mrb[0].mxu0
    %v3545 = vadd.f32 %v3502, %v3544
    %v3546 = vpop.f32.mrb[0].mxu0
    %v3547 = vadd.f32 %v3504, %v3546
    %v3548 = vpop.f32.mrb[0].mxu0
    %v3549 = vadd.f32 %v3506, %v3548
    %v3550 = vpop.f32.mrb[0].mxu0
    %v3551 = vadd.f32 %v3508, %v3550
    %3552 = vdwg.mxu0
    %3553 = vmatprep.subr.bf16.mxu0 %v3214
    %3554 = vmatpush1.bf16.msra.mxu0 %v3213
    %3555 = vmatprep.subr.bf16.mxu0 %v3218
    %3556 = vmatpush1.bf16.msra.mxu0 %v3217
    %3557 = vmatprep.subr.bf16.mxu0 %v3222
    %3558 = vmatpush1.bf16.msra.mxu0 %v3221
    %3559 = vmatprep.subr.bf16.mxu0 %v3226
    %3560 = vmatpush1.bf16.msra.mxu0 %v3225
    %3561 = vmatprep.subr.bf16.mxu0 %v3230
    %3562 = vmatpush1.bf16.msra.mxu0 %v3229
    %3563 = vmatprep.subr.bf16.mxu0 %v3234
    %3564 = vmatpush1.bf16.msra.mxu0 %v3233
    %3565 = vmatprep.subr.bf16.mxu0 %v3238
    %3566 = vmatpush1.bf16.msra.mxu0 %v3237
    %3567 = vmatprep.subr.bf16.mxu0 %v3242
    %3568 = vmatpush1.bf16.msra.mxu0 %v3241
    %3569 = vmatprep.subr.bf16.mxu0 %v3246
    %3570 = vmatpush1.bf16.msra.mxu0 %v3245
    %3571 = vmatprep.subr.bf16.mxu0 %v3250
    %3572 = vmatpush1.bf16.msra.mxu0 %v3249
    %3573 = vmatprep.subr.bf16.mxu0 %v3254
    %3574 = vmatpush1.bf16.msra.mxu0 %v3253
    %3575 = vmatprep.subr.bf16.mxu0 %v3258
    %3576 = vmatpush1.bf16.msra.mxu0 %v3257
    %3577 = vmatprep.subr.bf16.mxu0 %v3262
    %3578 = vmatpush1.bf16.msra.mxu0 %v3261
    %3579 = vmatprep.subr.bf16.mxu0 %v3266
    %3580 = vmatpush1.bf16.msra.mxu0 %v3265
    %3581 = vmatprep.subr.bf16.mxu0 %v3270
    %3582 = vmatpush1.bf16.msra.mxu0 %v3269
    %3583 = vmatprep.subr.bf16.mxu0 %v3274
    %3584 = vmatpush1.bf16.msra.mxu0 %v3273
    %3585 = vmatprep.mubr.bf16.mxu0 %v2674
    %3586 = vmatmul.mubr.bf16.gmra.mrb[0].mxu0 %v2673
    %v3587 = vpop.f32.mrb[0].mxu0
    %v3588 = vadd.f32 %v2818, %v3587
    %v3589 = vpop.f32.mrb[0].mxu0
    %v3590 = vadd.f32 %v2822, %v3589
    %v3591 = vpop.f32.mrb[0].mxu0
    %v3592 = vadd.f32 %v2818, %v3591
    %v3593 = vpop.f32.mrb[0].mxu0
    %v3594 = vadd.f32 %v2822, %v3593
    %3595 = vdwg.mxu0
    %3596 = vmatprep.subr.bf16.mxu0 %v3278
    %3597 = vmatpush1.bf16.msra.mxu0 %v3277
    %3598 = vmatprep.subr.bf16.mxu0 %v3282
    %3599 = vmatpush1.bf16.msra.mxu0 %v3281
    %3600 = vmatprep.subr.bf16.mxu0 %v3286
    %3601 = vmatpush1.bf16.msra.mxu0 %v3285
    %3602 = vmatprep.subr.bf16.mxu0 %v3290
    %3603 = vmatpush1.bf16.msra.mxu0 %v3289
    %3604 = vmatprep.subr.bf16.mxu0 %v3294
    %3605 = vmatpush1.bf16.msra.mxu0 %v3293
    %3606 = vmatprep.subr.bf16.mxu0 %v3298
    %3607 = vmatpush1.bf16.msra.mxu0 %v3297
    %3608 = vmatprep.subr.bf16.mxu0 %v3302
    %3609 = vmatpush1.bf16.msra.mxu0 %v3301
    %3610 = vmatprep.subr.bf16.mxu0 %v3306
    %3611 = vmatpush1.bf16.msra.mxu0 %v3305
    %3612 = vmatprep.subr.bf16.mxu0 %v3310
    %3613 = vmatpush1.bf16.msra.mxu0 %v3309
    %3614 = vmatprep.subr.bf16.mxu0 %v3314
    %3615 = vmatpush1.bf16.msra.mxu0 %v3313
    %3616 = vmatprep.subr.bf16.mxu0 %v3318
    %3617 = vmatpush1.bf16.msra.mxu0 %v3317
    %3618 = vmatprep.subr.bf16.mxu0 %v3322
    %3619 = vmatpush1.bf16.msra.mxu0 %v3321
    %3620 = vmatprep.subr.bf16.mxu0 %v3326
    %3621 = vmatpush1.bf16.msra.mxu0 %v3325
    %3622 = vmatprep.subr.bf16.mxu0 %v3330
    %3623 = vmatpush1.bf16.msra.mxu0 %v3329
    %3624 = vmatprep.subr.bf16.mxu0 %v3334
    %3625 = vmatpush1.bf16.msra.mxu0 %v3333
    %3626 = vmatprep.subr.bf16.mxu0 %v3338
    %3627 = vmatpush1.bf16.msra.mxu0 %v3337
    %3628 = vmatprep.mubr.bf16.mxu0 %v2676
    %3629 = vmatmul.mubr.bf16.gmra.mrb[0].mxu0 %v2675
    %v3630 = vpop.f32.mrb[0].mxu0
    %v3631 = vadd.f32 %v3588, %v3630
    %v3632 = vpop.f32.mrb[0].mxu0
    %v3633 = vadd.f32 %v3590, %v3632
    %v3634 = vpop.f32.mrb[0].mxu0
    %v3635 = vadd.f32 %v3592, %v3634
    %v3636 = vpop.f32.mrb[0].mxu0
    %v3637 = vadd.f32 %v3594, %v3636
    %3638 = vdwg.mxu0
    %v3639 = vmax.f32 %v3545, 0.0
    %v3640 = vmax.f32 %v3547, 0.0
    %v3641 = vmax.f32 %v3631, 0.0
    %v3642 = vmax.f32 %v3633, 0.0
    %v3643 = vmax.f32 %v3549, 0.0
    %v3644 = vmax.f32 %v3551, 0.0
    %v3645 = vmax.f32 %v3635, 0.0
    %v3646 = vmax.f32 %v3637, 0.0
    %v3647 = vpack.c.bf16 %v3643, %v3639
    %v3648 = vpack.c.bf16 %v3644, %v3640
    %v3649 = vpack.c.bf16 %v3645, %v3641
    %v3650 = vpack.c.bf16 %v3646, %v3642
    %v3651 = vld [vmem:[#allocation11] sm:$0xff]
    %v3652 = vld [vmem:[#allocation11 + $0x8] sm:$0xff]
    %v3653 = vld [vmem:[#allocation11 + $0x10] sm:$0xff]
    %v3654 = vld [vmem:[#allocation11 + $0x18] sm:$0xff]
    %v3655 = vld [vmem:[#allocation11 + $0x20] sm:$0xff]
    %v3656 = vld [vmem:[#allocation11 + $0x28] sm:$0xff]
    %v3657 = vld [vmem:[#allocation11 + $0x30] sm:$0xff]
    %v3658 = vld [vmem:[#allocation11 + $0x38] sm:$0xff]
    %v3659 = vld [vmem:[#allocation11 + $0x40] sm:$0xff]
    %v3660 = vld [vmem:[#allocation11 + $0x48] sm:$0xff]
    %v3661 = vld [vmem:[#allocation11 + $0x50] sm:$0xff]
    %v3662 = vld [vmem:[#allocation11 + $0x58] sm:$0xff]
    %v3663 = vld [vmem:[#allocation11 + $0x60] sm:$0xff]
    %v3664 = vld [vmem:[#allocation11 + $0x68] sm:$0xff]
    %v3665 = vld [vmem:[#allocation11 + $0x70] sm:$0xff]
    %v3666 = vld [vmem:[#allocation11 + $0x78] sm:$0xff]
    %v3667 = vld [vmem:[#allocation11 + $0x80] sm:$0xff]
    %v3668 = vld [vmem:[#allocation11 + $0x88] sm:$0xff]
    %v3669 = vld [vmem:[#allocation11 + $0x90] sm:$0xff]
    %v3670 = vld [vmem:[#allocation11 + $0x98] sm:$0xff]
    %v3671 = vld [vmem:[#allocation11 + $0xa0] sm:$0xff]
    %v3672 = vld [vmem:[#allocation11 + $0xa8] sm:$0xff]
    %v3673 = vld [vmem:[#allocation11 + $0xb0] sm:$0xff]
    %v3674 = vld [vmem:[#allocation11 + $0xb8] sm:$0xff]
    %v3675 = vld [vmem:[#allocation11 + $0xc0] sm:$0xff]
    %v3676 = vld [vmem:[#allocation11 + $0xc8] sm:$0xff]
    %v3677 = vld [vmem:[#allocation11 + $0xd0] sm:$0xff]
    %v3678 = vld [vmem:[#allocation11 + $0xd8] sm:$0xff]
    %v3679 = vld [vmem:[#allocation11 + $0xe0] sm:$0xff]
    %v3680 = vld [vmem:[#allocation11 + $0xe8] sm:$0xff]
    %v3681 = vld [vmem:[#allocation11 + $0xf0] sm:$0xff]
    %v3682 = vld [vmem:[#allocation11 + $0xf8] sm:$0xff]
    %v3683 = vld [vmem:[#allocation11 + $0x100] sm:$0xff]
    %v3684 = vld [vmem:[#allocation11 + $0x108] sm:$0xff]
    %v3685 = vld [vmem:[#allocation11 + $0x110] sm:$0xff]
    %v3686 = vld [vmem:[#allocation11 + $0x118] sm:$0xff]
    %v3687 = vld [vmem:[#allocation11 + $0x120] sm:$0xff]
    %v3688 = vld [vmem:[#allocation11 + $0x128] sm:$0xff]
    %v3689 = vld [vmem:[#allocation11 + $0x130] sm:$0xff]
    %v3690 = vld [vmem:[#allocation11 + $0x138] sm:$0xff]
    %v3691 = vld [vmem:[#allocation11 + $0x140] sm:$0xff]
    %v3692 = vld [vmem:[#allocation11 + $0x148] sm:$0xff]
    %v3693 = vld [vmem:[#allocation11 + $0x150] sm:$0xff]
    %v3694 = vld [vmem:[#allocation11 + $0x158] sm:$0xff]
    %v3695 = vld [vmem:[#allocation11 + $0x160] sm:$0xff]
    %v3696 = vld [vmem:[#allocation11 + $0x168] sm:$0xff]
    %v3697 = vld [vmem:[#allocation11 + $0x170] sm:$0xff]
    %v3698 = vld [vmem:[#allocation11 + $0x178] sm:$0xff]
    %v3699 = vld [vmem:[#allocation11 + $0x180] sm:$0xff]
    %v3700 = vld [vmem:[#allocation11 + $0x188] sm:$0xff]
    %v3701 = vld [vmem:[#allocation11 + $0x190] sm:$0xff]
    %v3702 = vld [vmem:[#allocation11 + $0x198] sm:$0xff]
    %v3703 = vld [vmem:[#allocation11 + $0x1a0] sm:$0xff]
    %v3704 = vld [vmem:[#allocation11 + $0x1a8] sm:$0xff]
    %v3705 = vld [vmem:[#allocation11 + $0x1b0] sm:$0xff]
    %v3706 = vld [vmem:[#allocation11 + $0x1b8] sm:$0xff]
    %v3707 = vld [vmem:[#allocation11 + $0x1c0] sm:$0xff]
    %v3708 = vld [vmem:[#allocation11 + $0x1c8] sm:$0xff]
    %v3709 = vld [vmem:[#allocation11 + $0x1d0] sm:$0xff]
    %v3710 = vld [vmem:[#allocation11 + $0x1d8] sm:$0xff]
    %v3711 = vld [vmem:[#allocation11 + $0x1e0] sm:$0xff]
    %v3712 = vld [vmem:[#allocation11 + $0x1e8] sm:$0xff]
    %v3713 = vld [vmem:[#allocation11 + $0x1f0] sm:$0xff]
    %v3714 = vld [vmem:[#allocation11 + $0x1f8] sm:$0xff]
    %v3715 = vld [vmem:[#allocation11 + $0x200] sm:$0xff]
    %v3716 = vld [vmem:[#allocation11 + $0x208] sm:$0xff]
    %v3717 = vld [vmem:[#allocation11 + $0x210] sm:$0xff]
    %v3718 = vld [vmem:[#allocation11 + $0x218] sm:$0xff]
    %v3719 = vld [vmem:[#allocation11 + $0x220] sm:$0xff]
    %v3720 = vld [vmem:[#allocation11 + $0x228] sm:$0xff]
    %v3721 = vld [vmem:[#allocation11 + $0x230] sm:$0xff]
    %v3722 = vld [vmem:[#allocation11 + $0x238] sm:$0xff]
    %v3723 = vld [vmem:[#allocation11 + $0x240] sm:$0xff]
    %v3724 = vld [vmem:[#allocation11 + $0x248] sm:$0xff]
    %v3725 = vld [vmem:[#allocation11 + $0x250] sm:$0xff]
    %v3726 = vld [vmem:[#allocation11 + $0x258] sm:$0xff]
    %v3727 = vld [vmem:[#allocation11 + $0x260] sm:$0xff]
    %v3728 = vld [vmem:[#allocation11 + $0x268] sm:$0xff]
    %v3729 = vld [vmem:[#allocation11 + $0x270] sm:$0xff]
    %v3730 = vld [vmem:[#allocation11 + $0x278] sm:$0xff]
    %v3731 = vld [vmem:[#allocation11 + $0x280] sm:$0xff]
    %v3732 = vld [vmem:[#allocation11 + $0x288] sm:$0xff]
    %v3733 = vld [vmem:[#allocation11 + $0x290] sm:$0xff]
    %v3734 = vld [vmem:[#allocation11 + $0x298] sm:$0xff]
    %v3735 = vld [vmem:[#allocation11 + $0x2a0] sm:$0xff]
    %v3736 = vld [vmem:[#allocation11 + $0x2a8] sm:$0xff]
    %v3737 = vld [vmem:[#allocation11 + $0x2b0] sm:$0xff]
    %v3738 = vld [vmem:[#allocation11 + $0x2b8] sm:$0xff]
    %v3739 = vld [vmem:[#allocation11 + $0x2c0] sm:$0xff]
    %v3740 = vld [vmem:[#allocation11 + $0x2c8] sm:$0xff]
    %v3741 = vld [vmem:[#allocation11 + $0x2d0] sm:$0xff]
    %v3742 = vld [vmem:[#allocation11 + $0x2d8] sm:$0xff]
    %v3743 = vld [vmem:[#allocation11 + $0x2e0] sm:$0xff]
    %v3744 = vld [vmem:[#allocation11 + $0x2e8] sm:$0xff]
    %v3745 = vld [vmem:[#allocation11 + $0x2f0] sm:$0xff]
    %v3746 = vld [vmem:[#allocation11 + $0x2f8] sm:$0xff]
    %v3747 = vld [vmem:[#allocation11 + $0x300] sm:$0xff]
    %v3748 = vld [vmem:[#allocation11 + $0x308] sm:$0xff]
    %v3749 = vld [vmem:[#allocation11 + $0x310] sm:$0xff]
    %v3750 = vld [vmem:[#allocation11 + $0x318] sm:$0xff]
    %v3751 = vld [vmem:[#allocation11 + $0x320] sm:$0xff]
    %v3752 = vld [vmem:[#allocation11 + $0x328] sm:$0xff]
    %v3753 = vld [vmem:[#allocation11 + $0x330] sm:$0xff]
    %v3754 = vld [vmem:[#allocation11 + $0x338] sm:$0xff]
    %v3755 = vld [vmem:[#allocation11 + $0x340] sm:$0xff]
    %v3756 = vld [vmem:[#allocation11 + $0x348] sm:$0xff]
    %v3757 = vld [vmem:[#allocation11 + $0x350] sm:$0xff]
    %v3758 = vld [vmem:[#allocation11 + $0x358] sm:$0xff]
    %v3759 = vld [vmem:[#allocation11 + $0x360] sm:$0xff]
    %v3760 = vld [vmem:[#allocation11 + $0x368] sm:$0xff]
    %v3761 = vld [vmem:[#allocation11 + $0x370] sm:$0xff]
    %v3762 = vld [vmem:[#allocation11 + $0x378] sm:$0xff]
    %v3763 = vld [vmem:[#allocation11 + $0x380] sm:$0xff]
    %v3764 = vld [vmem:[#allocation11 + $0x388] sm:$0xff]
    %v3765 = vld [vmem:[#allocation11 + $0x390] sm:$0xff]
    %v3766 = vld [vmem:[#allocation11 + $0x398] sm:$0xff]
    %v3767 = vld [vmem:[#allocation11 + $0x3a0] sm:$0xff]
    %v3768 = vld [vmem:[#allocation11 + $0x3a8] sm:$0xff]
    %v3769 = vld [vmem:[#allocation11 + $0x3b0] sm:$0xff]
    %v3770 = vld [vmem:[#allocation11 + $0x3b8] sm:$0xff]
    %v3771 = vld [vmem:[#allocation11 + $0x3c0] sm:$0xff]
    %v3772 = vld [vmem:[#allocation11 + $0x3c8] sm:$0xff]
    %v3773 = vld [vmem:[#allocation11 + $0x3d0] sm:$0xff]
    %v3774 = vld [vmem:[#allocation11 + $0x3d8] sm:$0xff]
    %v3775 = vld [vmem:[#allocation11 + $0x3e0] sm:$0xff]
    %v3776 = vld [vmem:[#allocation11 + $0x3e8] sm:$0xff]
    %v3777 = vld [vmem:[#allocation11 + $0x3f0] sm:$0xff]
    %v3778 = vld [vmem:[#allocation11 + $0x3f8] sm:$0xff]
    %v3779 = vld [vmem:[#allocation11 + $0x400] sm:$0xff]
    %v3780 = vld [vmem:[#allocation11 + $0x408] sm:$0xff]
    %v3781 = vld [vmem:[#allocation11 + $0x410] sm:$0xff]
    %v3782 = vld [vmem:[#allocation11 + $0x418] sm:$0xff]
    %v3783 = vld [vmem:[#allocation11 + $0x420] sm:$0xff]
    %v3784 = vld [vmem:[#allocation11 + $0x428] sm:$0xff]
    %v3785 = vld [vmem:[#allocation11 + $0x430] sm:$0xff]
    %v3786 = vld [vmem:[#allocation11 + $0x438] sm:$0xff]
    %v3787 = vld [vmem:[#allocation11 + $0x440] sm:$0xff]
    %v3788 = vld [vmem:[#allocation11 + $0x448] sm:$0xff]
    %v3789 = vld [vmem:[#allocation11 + $0x450] sm:$0xff]
    %v3790 = vld [vmem:[#allocation11 + $0x458] sm:$0xff]
    %v3791 = vld [vmem:[#allocation11 + $0x460] sm:$0xff]
    %v3792 = vld [vmem:[#allocation11 + $0x468] sm:$0xff]
    %v3793 = vld [vmem:[#allocation11 + $0x470] sm:$0xff]
    %v3794 = vld [vmem:[#allocation11 + $0x478] sm:$0xff]
    %v3795 = vld [vmem:[#allocation11 + $0x480] sm:$0xff]
    %v3796 = vld [vmem:[#allocation11 + $0x488] sm:$0xff]
    %v3797 = vld [vmem:[#allocation11 + $0x490] sm:$0xff]
    %v3798 = vld [vmem:[#allocation11 + $0x498] sm:$0xff]
    %v3799 = vld [vmem:[#allocation11 + $0x4a0] sm:$0xff]
    %v3800 = vld [vmem:[#allocation11 + $0x4a8] sm:$0xff]
    %v3801 = vld [vmem:[#allocation11 + $0x4b0] sm:$0xff]
    %v3802 = vld [vmem:[#allocation11 + $0x4b8] sm:$0xff]
    %v3803 = vld [vmem:[#allocation11 + $0x4c0] sm:$0xff]
    %v3804 = vld [vmem:[#allocation11 + $0x4c8] sm:$0xff]
    %v3805 = vld [vmem:[#allocation11 + $0x4d0] sm:$0xff]
    %v3806 = vld [vmem:[#allocation11 + $0x4d8] sm:$0xff]
    %v3807 = vld [vmem:[#allocation11 + $0x4e0] sm:$0xff]
    %v3808 = vld [vmem:[#allocation11 + $0x4e8] sm:$0xff]
    %v3809 = vld [vmem:[#allocation11 + $0x4f0] sm:$0xff]
    %v3810 = vld [vmem:[#allocation11 + $0x4f8] sm:$0xff]
    %v3811 = vld [vmem:[#allocation11 + $0x500] sm:$0xff]
    %v3812 = vld [vmem:[#allocation11 + $0x508] sm:$0xff]
    %v3813 = vld [vmem:[#allocation11 + $0x510] sm:$0xff]
    %v3814 = vld [vmem:[#allocation11 + $0x518] sm:$0xff]
    %v3815 = vld [vmem:[#allocation11 + $0x520] sm:$0xff]
    %v3816 = vld [vmem:[#allocation11 + $0x528] sm:$0xff]
    %v3817 = vld [vmem:[#allocation11 + $0x530] sm:$0xff]
    %v3818 = vld [vmem:[#allocation11 + $0x538] sm:$0xff]
    %v3819 = vld [vmem:[#allocation11 + $0x540] sm:$0xff]
    %v3820 = vld [vmem:[#allocation11 + $0x548] sm:$0xff]
    %v3821 = vld [vmem:[#allocation11 + $0x550] sm:$0xff]
    %v3822 = vld [vmem:[#allocation11 + $0x558] sm:$0xff]
    %v3823 = vld [vmem:[#allocation11 + $0x560] sm:$0xff]
    %v3824 = vld [vmem:[#allocation11 + $0x568] sm:$0xff]
    %v3825 = vld [vmem:[#allocation11 + $0x570] sm:$0xff]
    %v3826 = vld [vmem:[#allocation11 + $0x578] sm:$0xff]
    %v3827 = vld [vmem:[#allocation11 + $0x580] sm:$0xff]
    %v3828 = vld [vmem:[#allocation11 + $0x588] sm:$0xff]
    %v3829 = vld [vmem:[#allocation11 + $0x590] sm:$0xff]
    %v3830 = vld [vmem:[#allocation11 + $0x598] sm:$0xff]
    %v3831 = vld [vmem:[#allocation11 + $0x5a0] sm:$0xff]
    %v3832 = vld [vmem:[#allocation11 + $0x5a8] sm:$0xff]
    %v3833 = vld [vmem:[#allocation11 + $0x5b0] sm:$0xff]
    %v3834 = vld [vmem:[#allocation11 + $0x5b8] sm:$0xff]
    %v3835 = vld [vmem:[#allocation11 + $0x5c0] sm:$0xff]
    %v3836 = vld [vmem:[#allocation11 + $0x5c8] sm:$0xff]
    %v3837 = vld [vmem:[#allocation11 + $0x5d0] sm:$0xff]
    %v3838 = vld [vmem:[#allocation11 + $0x5d8] sm:$0xff]
    %v3839 = vld [vmem:[#allocation11 + $0x5e0] sm:$0xff]
    %v3840 = vld [vmem:[#allocation11 + $0x5e8] sm:$0xff]
    %v3841 = vld [vmem:[#allocation11 + $0x5f0] sm:$0xff]
    %v3842 = vld [vmem:[#allocation11 + $0x5f8] sm:$0xff]
    %v3843 = vld [vmem:[#allocation11 + $0x600] sm:$0xff]
    %v3844 = vld [vmem:[#allocation11 + $0x608] sm:$0xff]
    %v3845 = vld [vmem:[#allocation11 + $0x610] sm:$0xff]
    %v3846 = vld [vmem:[#allocation11 + $0x618] sm:$0xff]
    %v3847 = vld [vmem:[#allocation11 + $0x620] sm:$0xff]
    %v3848 = vld [vmem:[#allocation11 + $0x628] sm:$0xff]
    %v3849 = vld [vmem:[#allocation11 + $0x630] sm:$0xff]
    %v3850 = vld [vmem:[#allocation11 + $0x638] sm:$0xff]
    %v3851 = vld [vmem:[#allocation11 + $0x640] sm:$0xff]
    %v3852 = vld [vmem:[#allocation11 + $0x648] sm:$0xff]
    %v3853 = vld [vmem:[#allocation11 + $0x650] sm:$0xff]
    %v3854 = vld [vmem:[#allocation11 + $0x658] sm:$0xff]
    %v3855 = vld [vmem:[#allocation11 + $0x660] sm:$0xff]
    %v3856 = vld [vmem:[#allocation11 + $0x668] sm:$0xff]
    %v3857 = vld [vmem:[#allocation11 + $0x670] sm:$0xff]
    %v3858 = vld [vmem:[#allocation11 + $0x678] sm:$0xff]
    %v3859 = vld [vmem:[#allocation11 + $0x680] sm:$0xff]
    %v3860 = vld [vmem:[#allocation11 + $0x688] sm:$0xff]
    %v3861 = vld [vmem:[#allocation11 + $0x690] sm:$0xff]
    %v3862 = vld [vmem:[#allocation11 + $0x698] sm:$0xff]
    %v3863 = vld [vmem:[#allocation11 + $0x6a0] sm:$0xff]
    %v3864 = vld [vmem:[#allocation11 + $0x6a8] sm:$0xff]
    %v3865 = vld [vmem:[#allocation11 + $0x6b0] sm:$0xff]
    %v3866 = vld [vmem:[#allocation11 + $0x6b8] sm:$0xff]
    %v3867 = vld [vmem:[#allocation11 + $0x6c0] sm:$0xff]
    %v3868 = vld [vmem:[#allocation11 + $0x6c8] sm:$0xff]
    %v3869 = vld [vmem:[#allocation11 + $0x6d0] sm:$0xff]
    %v3870 = vld [vmem:[#allocation11 + $0x6d8] sm:$0xff]
    %v3871 = vld [vmem:[#allocation11 + $0x6e0] sm:$0xff]
    %v3872 = vld [vmem:[#allocation11 + $0x6e8] sm:$0xff]
    %v3873 = vld [vmem:[#allocation11 + $0x6f0] sm:$0xff]
    %v3874 = vld [vmem:[#allocation11 + $0x6f8] sm:$0xff]
    %v3875 = vld [vmem:[#allocation11 + $0x700] sm:$0xff]
    %v3876 = vld [vmem:[#allocation11 + $0x708] sm:$0xff]
    %v3877 = vld [vmem:[#allocation11 + $0x710] sm:$0xff]
    %v3878 = vld [vmem:[#allocation11 + $0x718] sm:$0xff]
    %v3879 = vld [vmem:[#allocation11 + $0x720] sm:$0xff]
    %v3880 = vld [vmem:[#allocation11 + $0x728] sm:$0xff]
    %v3881 = vld [vmem:[#allocation11 + $0x730] sm:$0xff]
    %v3882 = vld [vmem:[#allocation11 + $0x738] sm:$0xff]
    %v3883 = vld [vmem:[#allocation11 + $0x740] sm:$0xff]
    %v3884 = vld [vmem:[#allocation11 + $0x748] sm:$0xff]
    %v3885 = vld [vmem:[#allocation11 + $0x750] sm:$0xff]
    %v3886 = vld [vmem:[#allocation11 + $0x758] sm:$0xff]
    %v3887 = vld [vmem:[#allocation11 + $0x760] sm:$0xff]
    %v3888 = vld [vmem:[#allocation11 + $0x768] sm:$0xff]
    %v3889 = vld [vmem:[#allocation11 + $0x770] sm:$0xff]
    %v3890 = vld [vmem:[#allocation11 + $0x778] sm:$0xff]
    %v3891 = vld [vmem:[#allocation11 + $0x780] sm:$0xff]
    %v3892 = vld [vmem:[#allocation11 + $0x788] sm:$0xff]
    %v3893 = vld [vmem:[#allocation11 + $0x790] sm:$0xff]
    %v3894 = vld [vmem:[#allocation11 + $0x798] sm:$0xff]
    %v3895 = vld [vmem:[#allocation11 + $0x7a0] sm:$0xff]
    %v3896 = vld [vmem:[#allocation11 + $0x7a8] sm:$0xff]
    %v3897 = vld [vmem:[#allocation11 + $0x7b0] sm:$0xff]
    %v3898 = vld [vmem:[#allocation11 + $0x7b8] sm:$0xff]
    %v3899 = vld [vmem:[#allocation11 + $0x7c0] sm:$0xff]
    %v3900 = vld [vmem:[#allocation11 + $0x7c8] sm:$0xff]
    %v3901 = vld [vmem:[#allocation11 + $0x7d0] sm:$0xff]
    %v3902 = vld [vmem:[#allocation11 + $0x7d8] sm:$0xff]
    %v3903 = vld [vmem:[#allocation11 + $0x7e0] sm:$0xff]
    %v3904 = vld [vmem:[#allocation11 + $0x7e8] sm:$0xff]
    %v3905 = vld [vmem:[#allocation11 + $0x7f0] sm:$0xff]
    %v3906 = vld [vmem:[#allocation11 + $0x7f8] sm:$0xff]
    %v3907 = vld [vmem:[%s8] sm:$0xff]
    %v3909 = vlaneseq
    %v3910 = vshrl.u32 %v3909, 7
    %v3911 = vsub.s32 0, %v3910
    %v3912 = vrot.slane %v3907, %v3911
    %v3913 = vlaneseq
    %v3914 = vshrl.u32 %v3913, 7
    %v3915 = vsub.s32 1, %v3914
    %v3916 = vrot.slane %v3907, %v3915
    %v3917 = vlaneseq
    %v3918 = vshrl.u32 %v3917, 7
    %v3919 = vsub.s32 2, %v3918
    %v3920 = vrot.slane %v3907, %v3919
    %v3921 = vlaneseq
    %v3922 = vshrl.u32 %v3921, 7
    %v3923 = vsub.s32 3, %v3922
    %v3924 = vrot.slane %v3907, %v3923
    %v3925 = vlaneseq
    %v3926 = vshrl.u32 %v3925, 7
    %v3927 = vsub.s32 4, %v3926
    %v3928 = vrot.slane %v3907, %v3927
    %v3929 = vlaneseq
    %v3930 = vshrl.u32 %v3929, 7
    %v3931 = vsub.s32 5, %v3930
    %v3932 = vrot.slane %v3907, %v3931
    %v3933 = vlaneseq
    %v3934 = vshrl.u32 %v3933, 7
    %v3935 = vsub.s32 6, %v3934
    %v3936 = vrot.slane %v3907, %v3935
    %v3937 = vlaneseq
    %v3938 = vshrl.u32 %v3937, 7
    %v3939 = vsub.s32 7, %v3938
    %v3940 = vrot.slane %v3907, %v3939
    %v4205 = vunpack.c.l.b16 %v3651
    %v4206 = vunpack.c.h.b16 %v3651
    %v4207 = vunpack.c.l.b16 %v3652
    %v4208 = vunpack.c.h.b16 %v3652
    %v4209 = vunpack.c.l.b16 %v3653
    %v4210 = vunpack.c.h.b16 %v3653
    %v4211 = vunpack.c.l.b16 %v3654
    %v4212 = vunpack.c.h.b16 %v3654
    %v4213 = vunpack.c.l.b16 %v3655
    %v4214 = vunpack.c.h.b16 %v3655
    %v4215 = vunpack.c.l.b16 %v3656
    %v4216 = vunpack.c.h.b16 %v3656
    %v4217 = vunpack.c.l.b16 %v3657
    %v4218 = vunpack.c.h.b16 %v3657
    %v4219 = vunpack.c.l.b16 %v3658
    %v4220 = vunpack.c.h.b16 %v3658
    %v4221 = vunpack.c.l.b16 %v3659
    %v4222 = vunpack.c.h.b16 %v3659
    %v4223 = vunpack.c.l.b16 %v3660
    %v4224 = vunpack.c.h.b16 %v3660
    %v4225 = vunpack.c.l.b16 %v3661
    %v4226 = vunpack.c.h.b16 %v3661
    %v4227 = vunpack.c.l.b16 %v3662
    %v4228 = vunpack.c.h.b16 %v3662
    %v4229 = vunpack.c.l.b16 %v3663
    %v4230 = vunpack.c.h.b16 %v3663
    %v4231 = vunpack.c.l.b16 %v3664
    %v4232 = vunpack.c.h.b16 %v3664
    %v4233 = vunpack.c.l.b16 %v3665
    %v4234 = vunpack.c.h.b16 %v3665
    %v4235 = vunpack.c.l.b16 %v3666
    %v4236 = vunpack.c.h.b16 %v3666
    %v4237 = vunpack.c.l.b16 %v3667
    %v4238 = vunpack.c.h.b16 %v3667
    %v4239 = vunpack.c.l.b16 %v3668
    %v4240 = vunpack.c.h.b16 %v3668
    %v4241 = vunpack.c.l.b16 %v3669
    %v4242 = vunpack.c.h.b16 %v3669
    %v4243 = vunpack.c.l.b16 %v3670
    %v4244 = vunpack.c.h.b16 %v3670
    %v4245 = vunpack.c.l.b16 %v3671
    %v4246 = vunpack.c.h.b16 %v3671
    %v4247 = vunpack.c.l.b16 %v3672
    %v4248 = vunpack.c.h.b16 %v3672
    %v4249 = vunpack.c.l.b16 %v3673
    %v4250 = vunpack.c.h.b16 %v3673
    %v4251 = vunpack.c.l.b16 %v3674
    %v4252 = vunpack.c.h.b16 %v3674
    %v4253 = vunpack.c.l.b16 %v3675
    %v4254 = vunpack.c.h.b16 %v3675
    %v4255 = vunpack.c.l.b16 %v3676
    %v4256 = vunpack.c.h.b16 %v3676
    %v4257 = vunpack.c.l.b16 %v3677
    %v4258 = vunpack.c.h.b16 %v3677
    %v4259 = vunpack.c.l.b16 %v3678
    %v4260 = vunpack.c.h.b16 %v3678
    %v4261 = vunpack.c.l.b16 %v3679
    %v4262 = vunpack.c.h.b16 %v3679
    %v4263 = vunpack.c.l.b16 %v3680
    %v4264 = vunpack.c.h.b16 %v3680
    %v4265 = vunpack.c.l.b16 %v3681
    %v4266 = vunpack.c.h.b16 %v3681
    %v4267 = vunpack.c.l.b16 %v3682
    %v4268 = vunpack.c.h.b16 %v3682
    %v4269 = vunpack.c.l.b16 %v3683
    %v4270 = vunpack.c.h.b16 %v3683
    %v4271 = vunpack.c.l.b16 %v3684
    %v4272 = vunpack.c.h.b16 %v3684
    %v4273 = vunpack.c.l.b16 %v3685
    %v4274 = vunpack.c.h.b16 %v3685
    %v4275 = vunpack.c.l.b16 %v3686
    %v4276 = vunpack.c.h.b16 %v3686
    %v4277 = vunpack.c.l.b16 %v3687
    %v4278 = vunpack.c.h.b16 %v3687
    %v4279 = vunpack.c.l.b16 %v3688
    %v4280 = vunpack.c.h.b16 %v3688
    %v4281 = vunpack.c.l.b16 %v3689
    %v4282 = vunpack.c.h.b16 %v3689
    %v4283 = vunpack.c.l.b16 %v3690
    %v4284 = vunpack.c.h.b16 %v3690
    %v4285 = vunpack.c.l.b16 %v3691
    %v4286 = vunpack.c.h.b16 %v3691
    %v4287 = vunpack.c.l.b16 %v3692
    %v4288 = vunpack.c.h.b16 %v3692
    %v4289 = vunpack.c.l.b16 %v3693
    %v4290 = vunpack.c.h.b16 %v3693
    %v4291 = vunpack.c.l.b16 %v3694
    %v4292 = vunpack.c.h.b16 %v3694
    %v4293 = vunpack.c.l.b16 %v3695
    %v4294 = vunpack.c.h.b16 %v3695
    %v4295 = vunpack.c.l.b16 %v3696
    %v4296 = vunpack.c.h.b16 %v3696
    %v4297 = vunpack.c.l.b16 %v3697
    %v4298 = vunpack.c.h.b16 %v3697
    %v4299 = vunpack.c.l.b16 %v3698
    %v4300 = vunpack.c.h.b16 %v3698
    %v4301 = vunpack.c.l.b16 %v3699
    %v4302 = vunpack.c.h.b16 %v3699
    %v4303 = vunpack.c.l.b16 %v3700
    %v4304 = vunpack.c.h.b16 %v3700
    %v4305 = vunpack.c.l.b16 %v3701
    %v4306 = vunpack.c.h.b16 %v3701
    %v4307 = vunpack.c.l.b16 %v3702
    %v4308 = vunpack.c.h.b16 %v3702
    %v4309 = vunpack.c.l.b16 %v3703
    %v4310 = vunpack.c.h.b16 %v3703
    %v4311 = vunpack.c.l.b16 %v3704
    %v4312 = vunpack.c.h.b16 %v3704
    %v4313 = vunpack.c.l.b16 %v3705
    %v4314 = vunpack.c.h.b16 %v3705
    %v4315 = vunpack.c.l.b16 %v3706
    %v4316 = vunpack.c.h.b16 %v3706
    %v4317 = vunpack.c.l.b16 %v3707
    %v4318 = vunpack.c.h.b16 %v3707
    %v4319 = vunpack.c.l.b16 %v3708
    %v4320 = vunpack.c.h.b16 %v3708
    %v4321 = vunpack.c.l.b16 %v3709
    %v4322 = vunpack.c.h.b16 %v3709
    %v4323 = vunpack.c.l.b16 %v3710
    %v4324 = vunpack.c.h.b16 %v3710
    %v4325 = vunpack.c.l.b16 %v3711
    %v4326 = vunpack.c.h.b16 %v3711
    %v4327 = vunpack.c.l.b16 %v3712
    %v4328 = vunpack.c.h.b16 %v3712
    %v4329 = vunpack.c.l.b16 %v3713
    %v4330 = vunpack.c.h.b16 %v3713
    %v4331 = vunpack.c.l.b16 %v3714
    %v4332 = vunpack.c.h.b16 %v3714
    %v4333 = vunpack.c.l.b16 %v3715
    %v4334 = vunpack.c.h.b16 %v3715
    %v4335 = vunpack.c.l.b16 %v3716
    %v4336 = vunpack.c.h.b16 %v3716
    %v4337 = vunpack.c.l.b16 %v3717
    %v4338 = vunpack.c.h.b16 %v3717
    %v4339 = vunpack.c.l.b16 %v3718
    %v4340 = vunpack.c.h.b16 %v3718
    %v4341 = vunpack.c.l.b16 %v3719
    %v4342 = vunpack.c.h.b16 %v3719
    %v4343 = vunpack.c.l.b16 %v3720
    %v4344 = vunpack.c.h.b16 %v3720
    %v4345 = vunpack.c.l.b16 %v3721
    %v4346 = vunpack.c.h.b16 %v3721
    %v4347 = vunpack.c.l.b16 %v3722
    %v4348 = vunpack.c.h.b16 %v3722
    %v4349 = vunpack.c.l.b16 %v3723
    %v4350 = vunpack.c.h.b16 %v3723
    %v4351 = vunpack.c.l.b16 %v3724
    %v4352 = vunpack.c.h.b16 %v3724
    %v4353 = vunpack.c.l.b16 %v3725
    %v4354 = vunpack.c.h.b16 %v3725
    %v4355 = vunpack.c.l.b16 %v3726
    %v4356 = vunpack.c.h.b16 %v3726
    %v4357 = vunpack.c.l.b16 %v3727
    %v4358 = vunpack.c.h.b16 %v3727
    %v4359 = vunpack.c.l.b16 %v3728
    %v4360 = vunpack.c.h.b16 %v3728
    %v4361 = vunpack.c.l.b16 %v3729
    %v4362 = vunpack.c.h.b16 %v3729
    %v4363 = vunpack.c.l.b16 %v3730
    %v4364 = vunpack.c.h.b16 %v3730
    %v4365 = vunpack.c.l.b16 %v3731
    %v4366 = vunpack.c.h.b16 %v3731
    %v4367 = vunpack.c.l.b16 %v3732
    %v4368 = vunpack.c.h.b16 %v3732
    %v4369 = vunpack.c.l.b16 %v3733
    %v4370 = vunpack.c.h.b16 %v3733
    %v4371 = vunpack.c.l.b16 %v3734
    %v4372 = vunpack.c.h.b16 %v3734
    %v4373 = vunpack.c.l.b16 %v3735
    %v4374 = vunpack.c.h.b16 %v3735
    %v4375 = vunpack.c.l.b16 %v3736
    %v4376 = vunpack.c.h.b16 %v3736
    %v4377 = vunpack.c.l.b16 %v3737
    %v4378 = vunpack.c.h.b16 %v3737
    %v4379 = vunpack.c.l.b16 %v3738
    %v4380 = vunpack.c.h.b16 %v3738
    %v4381 = vunpack.c.l.b16 %v3739
    %v4382 = vunpack.c.h.b16 %v3739
    %v4383 = vunpack.c.l.b16 %v3740
    %v4384 = vunpack.c.h.b16 %v3740
    %v4385 = vunpack.c.l.b16 %v3741
    %v4386 = vunpack.c.h.b16 %v3741
    %v4387 = vunpack.c.l.b16 %v3742
    %v4388 = vunpack.c.h.b16 %v3742
    %v4389 = vunpack.c.l.b16 %v3743
    %v4390 = vunpack.c.h.b16 %v3743
    %v4391 = vunpack.c.l.b16 %v3744
    %v4392 = vunpack.c.h.b16 %v3744
    %v4393 = vunpack.c.l.b16 %v3745
    %v4394 = vunpack.c.h.b16 %v3745
    %v4395 = vunpack.c.l.b16 %v3746
    %v4396 = vunpack.c.h.b16 %v3746
    %v4397 = vunpack.c.l.b16 %v3747
    %v4398 = vunpack.c.h.b16 %v3747
    %v4399 = vunpack.c.l.b16 %v3748
    %v4400 = vunpack.c.h.b16 %v3748
    %v4401 = vunpack.c.l.b16 %v3749
    %v4402 = vunpack.c.h.b16 %v3749
    %v4403 = vunpack.c.l.b16 %v3750
    %v4404 = vunpack.c.h.b16 %v3750
    %v4405 = vunpack.c.l.b16 %v3751
    %v4406 = vunpack.c.h.b16 %v3751
    %v4407 = vunpack.c.l.b16 %v3752
    %v4408 = vunpack.c.h.b16 %v3752
    %v4409 = vunpack.c.l.b16 %v3753
    %v4410 = vunpack.c.h.b16 %v3753
    %v4411 = vunpack.c.l.b16 %v3754
    %v4412 = vunpack.c.h.b16 %v3754
    %v4413 = vunpack.c.l.b16 %v3755
    %v4414 = vunpack.c.h.b16 %v3755
    %v4415 = vunpack.c.l.b16 %v3756
    %v4416 = vunpack.c.h.b16 %v3756
    %v4417 = vunpack.c.l.b16 %v3757
    %v4418 = vunpack.c.h.b16 %v3757
    %v4419 = vunpack.c.l.b16 %v3758
    %v4420 = vunpack.c.h.b16 %v3758
    %v4421 = vunpack.c.l.b16 %v3759
    %v4422 = vunpack.c.h.b16 %v3759
    %v4423 = vunpack.c.l.b16 %v3760
    %v4424 = vunpack.c.h.b16 %v3760
    %v4425 = vunpack.c.l.b16 %v3761
    %v4426 = vunpack.c.h.b16 %v3761
    %v4427 = vunpack.c.l.b16 %v3762
    %v4428 = vunpack.c.h.b16 %v3762
    %v4429 = vunpack.c.l.b16 %v3763
    %v4430 = vunpack.c.h.b16 %v3763
    %v4431 = vunpack.c.l.b16 %v3764
    %v4432 = vunpack.c.h.b16 %v3764
    %v4433 = vunpack.c.l.b16 %v3765
    %v4434 = vunpack.c.h.b16 %v3765
    %v4435 = vunpack.c.l.b16 %v3766
    %v4436 = vunpack.c.h.b16 %v3766
    %v4437 = vunpack.c.l.b16 %v3767
    %v4438 = vunpack.c.h.b16 %v3767
    %v4439 = vunpack.c.l.b16 %v3768
    %v4440 = vunpack.c.h.b16 %v3768
    %v4441 = vunpack.c.l.b16 %v3769
    %v4442 = vunpack.c.h.b16 %v3769
    %v4443 = vunpack.c.l.b16 %v3770
    %v4444 = vunpack.c.h.b16 %v3770
    %v4445 = vunpack.c.l.b16 %v3771
    %v4446 = vunpack.c.h.b16 %v3771
    %v4447 = vunpack.c.l.b16 %v3772
    %v4448 = vunpack.c.h.b16 %v3772
    %v4449 = vunpack.c.l.b16 %v3773
    %v4450 = vunpack.c.h.b16 %v3773
    %v4451 = vunpack.c.l.b16 %v3774
    %v4452 = vunpack.c.h.b16 %v3774
    %v4453 = vunpack.c.l.b16 %v3775
    %v4454 = vunpack.c.h.b16 %v3775
    %v4455 = vunpack.c.l.b16 %v3776
    %v4456 = vunpack.c.h.b16 %v3776
    %v4457 = vunpack.c.l.b16 %v3777
    %v4458 = vunpack.c.h.b16 %v3777
    %v4459 = vunpack.c.l.b16 %v3778
    %v4460 = vunpack.c.h.b16 %v3778
    %v4461 = vunpack.c.l.b16 %v3779
    %v4462 = vunpack.c.h.b16 %v3779
    %v4463 = vunpack.c.l.b16 %v3780
    %v4464 = vunpack.c.h.b16 %v3780
    %v4465 = vunpack.c.l.b16 %v3781
    %v4466 = vunpack.c.h.b16 %v3781
    %v4467 = vunpack.c.l.b16 %v3782
    %v4468 = vunpack.c.h.b16 %v3782
    %v4469 = vunpack.c.l.b16 %v3783
    %v4470 = vunpack.c.h.b16 %v3783
    %v4471 = vunpack.c.l.b16 %v3784
    %v4472 = vunpack.c.h.b16 %v3784
    %v4473 = vunpack.c.l.b16 %v3785
    %v4474 = vunpack.c.h.b16 %v3785
    %v4475 = vunpack.c.l.b16 %v3786
    %v4476 = vunpack.c.h.b16 %v3786
    %v4477 = vunpack.c.l.b16 %v3787
    %v4478 = vunpack.c.h.b16 %v3787
    %v4479 = vunpack.c.l.b16 %v3788
    %v4480 = vunpack.c.h.b16 %v3788
    %v4481 = vunpack.c.l.b16 %v3789
    %v4482 = vunpack.c.h.b16 %v3789
    %v4483 = vunpack.c.l.b16 %v3790
    %v4484 = vunpack.c.h.b16 %v3790
    %v4485 = vunpack.c.l.b16 %v3791
    %v4486 = vunpack.c.h.b16 %v3791
    %v4487 = vunpack.c.l.b16 %v3792
    %v4488 = vunpack.c.h.b16 %v3792
    %v4489 = vunpack.c.l.b16 %v3793
    %v4490 = vunpack.c.h.b16 %v3793
    %v4491 = vunpack.c.l.b16 %v3794
    %v4492 = vunpack.c.h.b16 %v3794
    %v4493 = vunpack.c.l.b16 %v3795
    %v4494 = vunpack.c.h.b16 %v3795
    %v4495 = vunpack.c.l.b16 %v3796
    %v4496 = vunpack.c.h.b16 %v3796
    %v4497 = vunpack.c.l.b16 %v3797
    %v4498 = vunpack.c.h.b16 %v3797
    %v4499 = vunpack.c.l.b16 %v3798
    %v4500 = vunpack.c.h.b16 %v3798
    %v4501 = vunpack.c.l.b16 %v3799
    %v4502 = vunpack.c.h.b16 %v3799
    %v4503 = vunpack.c.l.b16 %v3800
    %v4504 = vunpack.c.h.b16 %v3800
    %v4505 = vunpack.c.l.b16 %v3801
    %v4506 = vunpack.c.h.b16 %v3801
    %v4507 = vunpack.c.l.b16 %v3802
    %v4508 = vunpack.c.h.b16 %v3802
    %v4509 = vunpack.c.l.b16 %v3803
    %v4510 = vunpack.c.h.b16 %v3803
    %v4511 = vunpack.c.l.b16 %v3804
    %v4512 = vunpack.c.h.b16 %v3804
    %v4513 = vunpack.c.l.b16 %v3805
    %v4514 = vunpack.c.h.b16 %v3805
    %v4515 = vunpack.c.l.b16 %v3806
    %v4516 = vunpack.c.h.b16 %v3806
    %v4517 = vunpack.c.l.b16 %v3807
    %v4518 = vunpack.c.h.b16 %v3807
    %v4519 = vunpack.c.l.b16 %v3808
    %v4520 = vunpack.c.h.b16 %v3808
    %v4521 = vunpack.c.l.b16 %v3809
    %v4522 = vunpack.c.h.b16 %v3809
    %v4523 = vunpack.c.l.b16 %v3810
    %v4524 = vunpack.c.h.b16 %v3810
    %v4525 = vunpack.c.l.b16 %v3811
    %v4526 = vunpack.c.h.b16 %v3811
    %v4527 = vunpack.c.l.b16 %v3812
    %v4528 = vunpack.c.h.b16 %v3812
    %v4529 = vunpack.c.l.b16 %v3813
    %v4530 = vunpack.c.h.b16 %v3813
    %v4531 = vunpack.c.l.b16 %v3814
    %v4532 = vunpack.c.h.b16 %v3814
    %v4533 = vunpack.c.l.b16 %v3815
    %v4534 = vunpack.c.h.b16 %v3815
    %v4535 = vunpack.c.l.b16 %v3816
    %v4536 = vunpack.c.h.b16 %v3816
    %v4537 = vunpack.c.l.b16 %v3817
    %v4538 = vunpack.c.h.b16 %v3817
    %v4539 = vunpack.c.l.b16 %v3818
    %v4540 = vunpack.c.h.b16 %v3818
    %v4541 = vunpack.c.l.b16 %v3819
    %v4542 = vunpack.c.h.b16 %v3819
    %v4543 = vunpack.c.l.b16 %v3820
    %v4544 = vunpack.c.h.b16 %v3820
    %v4545 = vunpack.c.l.b16 %v3821
    %v4546 = vunpack.c.h.b16 %v3821
    %v4547 = vunpack.c.l.b16 %v3822
    %v4548 = vunpack.c.h.b16 %v3822
    %v4549 = vunpack.c.l.b16 %v3823
    %v4550 = vunpack.c.h.b16 %v3823
    %v4551 = vunpack.c.l.b16 %v3824
    %v4552 = vunpack.c.h.b16 %v3824
    %v4553 = vunpack.c.l.b16 %v3825
    %v4554 = vunpack.c.h.b16 %v3825
    %v4555 = vunpack.c.l.b16 %v3826
    %v4556 = vunpack.c.h.b16 %v3826
    %v4557 = vunpack.c.l.b16 %v3827
    %v4558 = vunpack.c.h.b16 %v3827
    %v4559 = vunpack.c.l.b16 %v3828
    %v4560 = vunpack.c.h.b16 %v3828
    %v4561 = vunpack.c.l.b16 %v3829
    %v4562 = vunpack.c.h.b16 %v3829
    %v4563 = vunpack.c.l.b16 %v3830
    %v4564 = vunpack.c.h.b16 %v3830
    %v4565 = vunpack.c.l.b16 %v3831
    %v4566 = vunpack.c.h.b16 %v3831
    %v4567 = vunpack.c.l.b16 %v3832
    %v4568 = vunpack.c.h.b16 %v3832
    %v4569 = vunpack.c.l.b16 %v3833
    %v4570 = vunpack.c.h.b16 %v3833
    %v4571 = vunpack.c.l.b16 %v3834
    %v4572 = vunpack.c.h.b16 %v3834
    %v4573 = vunpack.c.l.b16 %v3835
    %v4574 = vunpack.c.h.b16 %v3835
    %v4575 = vunpack.c.l.b16 %v3836
    %v4576 = vunpack.c.h.b16 %v3836
    %v4577 = vunpack.c.l.b16 %v3837
    %v4578 = vunpack.c.h.b16 %v3837
    %v4579 = vunpack.c.l.b16 %v3838
    %v4580 = vunpack.c.h.b16 %v3838
    %v4581 = vunpack.c.l.b16 %v3839
    %v4582 = vunpack.c.h.b16 %v3839
    %v4583 = vunpack.c.l.b16 %v3840
    %v4584 = vunpack.c.h.b16 %v3840
    %v4585 = vunpack.c.l.b16 %v3841
    %v4586 = vunpack.c.h.b16 %v3841
    %v4587 = vunpack.c.l.b16 %v3842
    %v4588 = vunpack.c.h.b16 %v3842
    %v4589 = vunpack.c.l.b16 %v3843
    %v4590 = vunpack.c.h.b16 %v3843
    %v4591 = vunpack.c.l.b16 %v3844
    %v4592 = vunpack.c.h.b16 %v3844
    %v4593 = vunpack.c.l.b16 %v3845
    %v4594 = vunpack.c.h.b16 %v3845
    %v4595 = vunpack.c.l.b16 %v3846
    %v4596 = vunpack.c.h.b16 %v3846
    %v4597 = vunpack.c.l.b16 %v3847
    %v4598 = vunpack.c.h.b16 %v3847
    %v4599 = vunpack.c.l.b16 %v3848
    %v4600 = vunpack.c.h.b16 %v3848
    %v4601 = vunpack.c.l.b16 %v3849
    %v4602 = vunpack.c.h.b16 %v3849
    %v4603 = vunpack.c.l.b16 %v3850
    %v4604 = vunpack.c.h.b16 %v3850
    %v4605 = vunpack.c.l.b16 %v3851
    %v4606 = vunpack.c.h.b16 %v3851
    %v4607 = vunpack.c.l.b16 %v3852
    %v4608 = vunpack.c.h.b16 %v3852
    %v4609 = vunpack.c.l.b16 %v3853
    %v4610 = vunpack.c.h.b16 %v3853
    %v4611 = vunpack.c.l.b16 %v3854
    %v4612 = vunpack.c.h.b16 %v3854
    %v4613 = vunpack.c.l.b16 %v3855
    %v4614 = vunpack.c.h.b16 %v3855
    %v4615 = vunpack.c.l.b16 %v3856
    %v4616 = vunpack.c.h.b16 %v3856
    %v4617 = vunpack.c.l.b16 %v3857
    %v4618 = vunpack.c.h.b16 %v3857
    %v4619 = vunpack.c.l.b16 %v3858
    %v4620 = vunpack.c.h.b16 %v3858
    %v4621 = vunpack.c.l.b16 %v3859
    %v4622 = vunpack.c.h.b16 %v3859
    %v4623 = vunpack.c.l.b16 %v3860
    %v4624 = vunpack.c.h.b16 %v3860
    %v4625 = vunpack.c.l.b16 %v3861
    %v4626 = vunpack.c.h.b16 %v3861
    %v4627 = vunpack.c.l.b16 %v3862
    %v4628 = vunpack.c.h.b16 %v3862
    %v4629 = vunpack.c.l.b16 %v3863
    %v4630 = vunpack.c.h.b16 %v3863
    %v4631 = vunpack.c.l.b16 %v3864
    %v4632 = vunpack.c.h.b16 %v3864
    %v4633 = vunpack.c.l.b16 %v3865
    %v4634 = vunpack.c.h.b16 %v3865
    %v4635 = vunpack.c.l.b16 %v3866
    %v4636 = vunpack.c.h.b16 %v3866
    %v4637 = vunpack.c.l.b16 %v3867
    %v4638 = vunpack.c.h.b16 %v3867
    %v4639 = vunpack.c.l.b16 %v3868
    %v4640 = vunpack.c.h.b16 %v3868
    %v4641 = vunpack.c.l.b16 %v3869
    %v4642 = vunpack.c.h.b16 %v3869
    %v4643 = vunpack.c.l.b16 %v3870
    %v4644 = vunpack.c.h.b16 %v3870
    %v4645 = vunpack.c.l.b16 %v3871
    %v4646 = vunpack.c.h.b16 %v3871
    %v4647 = vunpack.c.l.b16 %v3872
    %v4648 = vunpack.c.h.b16 %v3872
    %v4649 = vunpack.c.l.b16 %v3873
    %v4650 = vunpack.c.h.b16 %v3873
    %v4651 = vunpack.c.l.b16 %v3874
    %v4652 = vunpack.c.h.b16 %v3874
    %v4653 = vunpack.c.l.b16 %v3875
    %v4654 = vunpack.c.h.b16 %v3875
    %v4655 = vunpack.c.l.b16 %v3876
    %v4656 = vunpack.c.h.b16 %v3876
    %v4657 = vunpack.c.l.b16 %v3877
    %v4658 = vunpack.c.h.b16 %v3877
    %v4659 = vunpack.c.l.b16 %v3878
    %v4660 = vunpack.c.h.b16 %v3878
    %v4661 = vunpack.c.l.b16 %v3879
    %v4662 = vunpack.c.h.b16 %v3879
    %v4663 = vunpack.c.l.b16 %v3880
    %v4664 = vunpack.c.h.b16 %v3880
    %v4665 = vunpack.c.l.b16 %v3881
    %v4666 = vunpack.c.h.b16 %v3881
    %v4667 = vunpack.c.l.b16 %v3882
    %v4668 = vunpack.c.h.b16 %v3882
    %v4669 = vunpack.c.l.b16 %v3883
    %v4670 = vunpack.c.h.b16 %v3883
    %v4671 = vunpack.c.l.b16 %v3884
    %v4672 = vunpack.c.h.b16 %v3884
    %v4673 = vunpack.c.l.b16 %v3885
    %v4674 = vunpack.c.h.b16 %v3885
    %v4675 = vunpack.c.l.b16 %v3886
    %v4676 = vunpack.c.h.b16 %v3886
    %v4677 = vunpack.c.l.b16 %v3887
    %v4678 = vunpack.c.h.b16 %v3887
    %v4679 = vunpack.c.l.b16 %v3888
    %v4680 = vunpack.c.h.b16 %v3888
    %v4681 = vunpack.c.l.b16 %v3889
    %v4682 = vunpack.c.h.b16 %v3889
    %v4683 = vunpack.c.l.b16 %v3890
    %v4684 = vunpack.c.h.b16 %v3890
    %v4685 = vunpack.c.l.b16 %v3891
    %v4686 = vunpack.c.h.b16 %v3891
    %v4687 = vunpack.c.l.b16 %v3892
    %v4688 = vunpack.c.h.b16 %v3892
    %v4689 = vunpack.c.l.b16 %v3893
    %v4690 = vunpack.c.h.b16 %v3893
    %v4691 = vunpack.c.l.b16 %v3894
    %v4692 = vunpack.c.h.b16 %v3894
    %v4693 = vunpack.c.l.b16 %v3895
    %v4694 = vunpack.c.h.b16 %v3895
    %v4695 = vunpack.c.l.b16 %v3896
    %v4696 = vunpack.c.h.b16 %v3896
    %v4697 = vunpack.c.l.b16 %v3897
    %v4698 = vunpack.c.h.b16 %v3897
    %v4699 = vunpack.c.l.b16 %v3898
    %v4700 = vunpack.c.h.b16 %v3898
    %v4701 = vunpack.c.l.b16 %v3899
    %v4702 = vunpack.c.h.b16 %v3899
    %v4703 = vunpack.c.l.b16 %v3900
    %v4704 = vunpack.c.h.b16 %v3900
    %v4705 = vunpack.c.l.b16 %v3901
    %v4706 = vunpack.c.h.b16 %v3901
    %v4707 = vunpack.c.l.b16 %v3902
    %v4708 = vunpack.c.h.b16 %v3902
    %v4709 = vunpack.c.l.b16 %v3903
    %v4710 = vunpack.c.h.b16 %v3903
    %v4711 = vunpack.c.l.b16 %v3904
    %v4712 = vunpack.c.h.b16 %v3904
    %v4713 = vunpack.c.l.b16 %v3905
    %v4714 = vunpack.c.h.b16 %v3905
    %v4715 = vunpack.c.l.b16 %v3906
    %v4716 = vunpack.c.h.b16 %v3906
    %v4717 = vpack.c.b16 %v4213, %v4205
    %v4718 = vpack.c.b16 %v4214, %v4206
    %v4719 = vpack.c.b16 %v4215, %v4207
    %v4720 = vpack.c.b16 %v4216, %v4208
    %v4721 = vpack.c.b16 %v4217, %v4209
    %v4722 = vpack.c.b16 %v4218, %v4210
    %v4723 = vpack.c.b16 %v4219, %v4211
    %v4724 = vpack.c.b16 %v4220, %v4212
    %v4725 = vpack.c.b16 %v4229, %v4221
    %v4726 = vpack.c.b16 %v4230, %v4222
    %v4727 = vpack.c.b16 %v4231, %v4223
    %v4728 = vpack.c.b16 %v4232, %v4224
    %v4729 = vpack.c.b16 %v4233, %v4225
    %v4730 = vpack.c.b16 %v4234, %v4226
    %v4731 = vpack.c.b16 %v4235, %v4227
    %v4732 = vpack.c.b16 %v4236, %v4228
    %v4733 = vpack.c.b16 %v4245, %v4237
    %v4734 = vpack.c.b16 %v4246, %v4238
    %v4735 = vpack.c.b16 %v4247, %v4239
    %v4736 = vpack.c.b16 %v4248, %v4240
    %v4737 = vpack.c.b16 %v4249, %v4241
    %v4738 = vpack.c.b16 %v4250, %v4242
    %v4739 = vpack.c.b16 %v4251, %v4243
    %v4740 = vpack.c.b16 %v4252, %v4244
    %v4741 = vpack.c.b16 %v4261, %v4253
    %v4742 = vpack.c.b16 %v4262, %v4254
    %v4743 = vpack.c.b16 %v4263, %v4255
    %v4744 = vpack.c.b16 %v4264, %v4256
    %v4745 = vpack.c.b16 %v4265, %v4257
    %v4746 = vpack.c.b16 %v4266, %v4258
    %v4747 = vpack.c.b16 %v4267, %v4259
    %v4748 = vpack.c.b16 %v4268, %v4260
    %v4749 = vpack.c.b16 %v4277, %v4269
    %v4750 = vpack.c.b16 %v4278, %v4270
    %v4751 = vpack.c.b16 %v4279, %v4271
    %v4752 = vpack.c.b16 %v4280, %v4272
    %v4753 = vpack.c.b16 %v4281, %v4273
    %v4754 = vpack.c.b16 %v4282, %v4274
    %v4755 = vpack.c.b16 %v4283, %v4275
    %v4756 = vpack.c.b16 %v4284, %v4276
    %v4757 = vpack.c.b16 %v4293, %v4285
    %v4758 = vpack.c.b16 %v4294, %v4286
    %v4759 = vpack.c.b16 %v4295, %v4287
    %v4760 = vpack.c.b16 %v4296, %v4288
    %v4761 = vpack.c.b16 %v4297, %v4289
    %v4762 = vpack.c.b16 %v4298, %v4290
    %v4763 = vpack.c.b16 %v4299, %v4291
    %v4764 = vpack.c.b16 %v4300, %v4292
    %v4765 = vpack.c.b16 %v4309, %v4301
    %v4766 = vpack.c.b16 %v4310, %v4302
    %v4767 = vpack.c.b16 %v4311, %v4303
    %v4768 = vpack.c.b16 %v4312, %v4304
    %v4769 = vpack.c.b16 %v4313, %v4305
    %v4770 = vpack.c.b16 %v4314, %v4306
    %v4771 = vpack.c.b16 %v4315, %v4307
    %v4772 = vpack.c.b16 %v4316, %v4308
    %v4773 = vpack.c.b16 %v4325, %v4317
    %v4774 = vpack.c.b16 %v4326, %v4318
    %v4775 = vpack.c.b16 %v4327, %v4319
    %v4776 = vpack.c.b16 %v4328, %v4320
    %v4777 = vpack.c.b16 %v4329, %v4321
    %v4778 = vpack.c.b16 %v4330, %v4322
    %v4779 = vpack.c.b16 %v4331, %v4323
    %v4780 = vpack.c.b16 %v4332, %v4324
    %v4781 = vpack.c.b16 %v4341, %v4333
    %v4782 = vpack.c.b16 %v4342, %v4334
    %v4783 = vpack.c.b16 %v4343, %v4335
    %v4784 = vpack.c.b16 %v4344, %v4336
    %v4785 = vpack.c.b16 %v4345, %v4337
    %v4786 = vpack.c.b16 %v4346, %v4338
    %v4787 = vpack.c.b16 %v4347, %v4339
    %v4788 = vpack.c.b16 %v4348, %v4340
    %v4789 = vpack.c.b16 %v4357, %v4349
    %v4790 = vpack.c.b16 %v4358, %v4350
    %v4791 = vpack.c.b16 %v4359, %v4351
    %v4792 = vpack.c.b16 %v4360, %v4352
    %v4793 = vpack.c.b16 %v4361, %v4353
    %v4794 = vpack.c.b16 %v4362, %v4354
    %v4795 = vpack.c.b16 %v4363, %v4355
    %v4796 = vpack.c.b16 %v4364, %v4356
    %v4797 = vpack.c.b16 %v4373, %v4365
    %v4798 = vpack.c.b16 %v4374, %v4366
    %v4799 = vpack.c.b16 %v4375, %v4367
    %v4800 = vpack.c.b16 %v4376, %v4368
    %v4801 = vpack.c.b16 %v4377, %v4369
    %v4802 = vpack.c.b16 %v4378, %v4370
    %v4803 = vpack.c.b16 %v4379, %v4371
    %v4804 = vpack.c.b16 %v4380, %v4372
    %v4805 = vpack.c.b16 %v4389, %v4381
    %v4806 = vpack.c.b16 %v4390, %v4382
    %v4807 = vpack.c.b16 %v4391, %v4383
    %v4808 = vpack.c.b16 %v4392, %v4384
    %v4809 = vpack.c.b16 %v4393, %v4385
    %v4810 = vpack.c.b16 %v4394, %v4386
    %v4811 = vpack.c.b16 %v4395, %v4387
    %v4812 = vpack.c.b16 %v4396, %v4388
    %v4813 = vpack.c.b16 %v4405, %v4397
    %v4814 = vpack.c.b16 %v4406, %v4398
    %v4815 = vpack.c.b16 %v4407, %v4399
    %v4816 = vpack.c.b16 %v4408, %v4400
    %v4817 = vpack.c.b16 %v4409, %v4401
    %v4818 = vpack.c.b16 %v4410, %v4402
    %v4819 = vpack.c.b16 %v4411, %v4403
    %v4820 = vpack.c.b16 %v4412, %v4404
    %v4821 = vpack.c.b16 %v4421, %v4413
    %v4822 = vpack.c.b16 %v4422, %v4414
    %v4823 = vpack.c.b16 %v4423, %v4415
    %v4824 = vpack.c.b16 %v4424, %v4416
    %v4825 = vpack.c.b16 %v4425, %v4417
    %v4826 = vpack.c.b16 %v4426, %v4418
    %v4827 = vpack.c.b16 %v4427, %v4419
    %v4828 = vpack.c.b16 %v4428, %v4420
    %v4829 = vpack.c.b16 %v4437, %v4429
    %v4830 = vpack.c.b16 %v4438, %v4430
    %v4831 = vpack.c.b16 %v4439, %v4431
    %v4832 = vpack.c.b16 %v4440, %v4432
    %v4833 = vpack.c.b16 %v4441, %v4433
    %v4834 = vpack.c.b16 %v4442, %v4434
    %v4835 = vpack.c.b16 %v4443, %v4435
    %v4836 = vpack.c.b16 %v4444, %v4436
    %v4837 = vpack.c.b16 %v4453, %v4445
    %v4838 = vpack.c.b16 %v4454, %v4446
    %v4839 = vpack.c.b16 %v4455, %v4447
    %v4840 = vpack.c.b16 %v4456, %v4448
    %v4841 = vpack.c.b16 %v4457, %v4449
    %v4842 = vpack.c.b16 %v4458, %v4450
    %v4843 = vpack.c.b16 %v4459, %v4451
    %v4844 = vpack.c.b16 %v4460, %v4452
    %v4845 = vpack.c.b16 %v4469, %v4461
    %v4846 = vpack.c.b16 %v4470, %v4462
    %v4847 = vpack.c.b16 %v4471, %v4463
    %v4848 = vpack.c.b16 %v4472, %v4464
    %v4849 = vpack.c.b16 %v4473, %v4465
    %v4850 = vpack.c.b16 %v4474, %v4466
    %v4851 = vpack.c.b16 %v4475, %v4467
    %v4852 = vpack.c.b16 %v4476, %v4468
    %v4853 = vpack.c.b16 %v4485, %v4477
    %v4854 = vpack.c.b16 %v4486, %v4478
    %v4855 = vpack.c.b16 %v4487, %v4479
    %v4856 = vpack.c.b16 %v4488, %v4480
    %v4857 = vpack.c.b16 %v4489, %v4481
    %v4858 = vpack.c.b16 %v4490, %v4482
    %v4859 = vpack.c.b16 %v4491, %v4483
    %v4860 = vpack.c.b16 %v4492, %v4484
    %v4861 = vpack.c.b16 %v4501, %v4493
    %v4862 = vpack.c.b16 %v4502, %v4494
    %v4863 = vpack.c.b16 %v4503, %v4495
    %v4864 = vpack.c.b16 %v4504, %v4496
    %v4865 = vpack.c.b16 %v4505, %v4497
    %v4866 = vpack.c.b16 %v4506, %v4498
    %v4867 = vpack.c.b16 %v4507, %v4499
    %v4868 = vpack.c.b16 %v4508, %v4500
    %v4869 = vpack.c.b16 %v4517, %v4509
    %v4870 = vpack.c.b16 %v4518, %v4510
    %v4871 = vpack.c.b16 %v4519, %v4511
    %v4872 = vpack.c.b16 %v4520, %v4512
    %v4873 = vpack.c.b16 %v4521, %v4513
    %v4874 = vpack.c.b16 %v4522, %v4514
    %v4875 = vpack.c.b16 %v4523, %v4515
    %v4876 = vpack.c.b16 %v4524, %v4516
    %v4877 = vpack.c.b16 %v4533, %v4525
    %v4878 = vpack.c.b16 %v4534, %v4526
    %v4879 = vpack.c.b16 %v4535, %v4527
    %v4880 = vpack.c.b16 %v4536, %v4528
    %v4881 = vpack.c.b16 %v4537, %v4529
    %v4882 = vpack.c.b16 %v4538, %v4530
    %v4883 = vpack.c.b16 %v4539, %v4531
    %v4884 = vpack.c.b16 %v4540, %v4532
    %v4885 = vpack.c.b16 %v4549, %v4541
    %v4886 = vpack.c.b16 %v4550, %v4542
    %v4887 = vpack.c.b16 %v4551, %v4543
    %v4888 = vpack.c.b16 %v4552, %v4544
    %v4889 = vpack.c.b16 %v4553, %v4545
    %v4890 = vpack.c.b16 %v4554, %v4546
    %v4891 = vpack.c.b16 %v4555, %v4547
    %v4892 = vpack.c.b16 %v4556, %v4548
    %v4893 = vpack.c.b16 %v4565, %v4557
    %v4894 = vpack.c.b16 %v4566, %v4558
    %v4895 = vpack.c.b16 %v4567, %v4559
    %v4896 = vpack.c.b16 %v4568, %v4560
    %v4897 = vpack.c.b16 %v4569, %v4561
    %v4898 = vpack.c.b16 %v4570, %v4562
    %v4899 = vpack.c.b16 %v4571, %v4563
    %v4900 = vpack.c.b16 %v4572, %v4564
    %v4901 = vpack.c.b16 %v4581, %v4573
    %v4902 = vpack.c.b16 %v4582, %v4574
    %v4903 = vpack.c.b16 %v4583, %v4575
    %v4904 = vpack.c.b16 %v4584, %v4576
    %v4905 = vpack.c.b16 %v4585, %v4577
    %v4906 = vpack.c.b16 %v4586, %v4578
    %v4907 = vpack.c.b16 %v4587, %v4579
    %v4908 = vpack.c.b16 %v4588, %v4580
    %v4909 = vpack.c.b16 %v4597, %v4589
    %v4910 = vpack.c.b16 %v4598, %v4590
    %v4911 = vpack.c.b16 %v4599, %v4591
    %v4912 = vpack.c.b16 %v4600, %v4592
    %v4913 = vpack.c.b16 %v4601, %v4593
    %v4914 = vpack.c.b16 %v4602, %v4594
    %v4915 = vpack.c.b16 %v4603, %v4595
    %v4916 = vpack.c.b16 %v4604, %v4596
    %v4917 = vpack.c.b16 %v4613, %v4605
    %v4918 = vpack.c.b16 %v4614, %v4606
    %v4919 = vpack.c.b16 %v4615, %v4607
    %v4920 = vpack.c.b16 %v4616, %v4608
    %v4921 = vpack.c.b16 %v4617, %v4609
    %v4922 = vpack.c.b16 %v4618, %v4610
    %v4923 = vpack.c.b16 %v4619, %v4611
    %v4924 = vpack.c.b16 %v4620, %v4612
    %v4925 = vpack.c.b16 %v4629, %v4621
    %v4926 = vpack.c.b16 %v4630, %v4622
    %v4927 = vpack.c.b16 %v4631, %v4623
    %v4928 = vpack.c.b16 %v4632, %v4624
    %v4929 = vpack.c.b16 %v4633, %v4625
    %v4930 = vpack.c.b16 %v4634, %v4626
    %v4931 = vpack.c.b16 %v4635, %v4627
    %v4932 = vpack.c.b16 %v4636, %v4628
    %v4933 = vpack.c.b16 %v4645, %v4637
    %v4934 = vpack.c.b16 %v4646, %v4638
    %v4935 = vpack.c.b16 %v4647, %v4639
    %v4936 = vpack.c.b16 %v4648, %v4640
    %v4937 = vpack.c.b16 %v4649, %v4641
    %v4938 = vpack.c.b16 %v4650, %v4642
    %v4939 = vpack.c.b16 %v4651, %v4643
    %v4940 = vpack.c.b16 %v4652, %v4644
    %v4941 = vpack.c.b16 %v4661, %v4653
    %v4942 = vpack.c.b16 %v4662, %v4654
    %v4943 = vpack.c.b16 %v4663, %v4655
    %v4944 = vpack.c.b16 %v4664, %v4656
    %v4945 = vpack.c.b16 %v4665, %v4657
    %v4946 = vpack.c.b16 %v4666, %v4658
    %v4947 = vpack.c.b16 %v4667, %v4659
    %v4948 = vpack.c.b16 %v4668, %v4660
    %v4949 = vpack.c.b16 %v4677, %v4669
    %v4950 = vpack.c.b16 %v4678, %v4670
    %v4951 = vpack.c.b16 %v4679, %v4671
    %v4952 = vpack.c.b16 %v4680, %v4672
    %v4953 = vpack.c.b16 %v4681, %v4673
    %v4954 = vpack.c.b16 %v4682, %v4674
    %v4955 = vpack.c.b16 %v4683, %v4675
    %v4956 = vpack.c.b16 %v4684, %v4676
    %v4957 = vpack.c.b16 %v4693, %v4685
    %v4958 = vpack.c.b16 %v4694, %v4686
    %v4959 = vpack.c.b16 %v4695, %v4687
    %v4960 = vpack.c.b16 %v4696, %v4688
    %v4961 = vpack.c.b16 %v4697, %v4689
    %v4962 = vpack.c.b16 %v4698, %v4690
    %v4963 = vpack.c.b16 %v4699, %v4691
    %v4964 = vpack.c.b16 %v4700, %v4692
    %v4965 = vpack.c.b16 %v4709, %v4701
    %v4966 = vpack.c.b16 %v4710, %v4702
    %v4967 = vpack.c.b16 %v4711, %v4703
    %v4968 = vpack.c.b16 %v4712, %v4704
    %v4969 = vpack.c.b16 %v4713, %v4705
    %v4970 = vpack.c.b16 %v4714, %v4706
    %v4971 = vpack.c.b16 %v4715, %v4707
    %v4972 = vpack.c.b16 %v4716, %v4708
    %5229 = vmatprep.subr.bf16.mxu0 %v4718
    %5230 = vmatpush1.bf16.msra.mxu0 %v4717
    %5231 = vmatprep.subr.bf16.mxu0 %v4726
    %5232 = vmatpush1.bf16.msra.mxu0 %v4725
    %5233 = vmatprep.subr.bf16.mxu0 %v4734
    %5234 = vmatpush1.bf16.msra.mxu0 %v4733
    %5235 = vmatprep.subr.bf16.mxu0 %v4742
    %5236 = vmatpush1.bf16.msra.mxu0 %v4741
    %5237 = vmatprep.subr.bf16.mxu0 %v4750
    %5238 = vmatpush1.bf16.msra.mxu0 %v4749
    %5239 = vmatprep.subr.bf16.mxu0 %v4758
    %5240 = vmatpush1.bf16.msra.mxu0 %v4757
    %5241 = vmatprep.subr.bf16.mxu0 %v4766
    %5242 = vmatpush1.bf16.msra.mxu0 %v4765
    %5243 = vmatprep.subr.bf16.mxu0 %v4774
    %5244 = vmatpush1.bf16.msra.mxu0 %v4773
    %5245 = vmatprep.subr.bf16.mxu0 %v4782
    %5246 = vmatpush1.bf16.msra.mxu0 %v4781
    %5247 = vmatprep.subr.bf16.mxu0 %v4790
    %5248 = vmatpush1.bf16.msra.mxu0 %v4789
    %5249 = vmatprep.subr.bf16.mxu0 %v4798
    %5250 = vmatpush1.bf16.msra.mxu0 %v4797
    %5251 = vmatprep.subr.bf16.mxu0 %v4806
    %5252 = vmatpush1.bf16.msra.mxu0 %v4805
    %5253 = vmatprep.subr.bf16.mxu0 %v4814
    %5254 = vmatpush1.bf16.msra.mxu0 %v4813
    %5255 = vmatprep.subr.bf16.mxu0 %v4822
    %5256 = vmatpush1.bf16.msra.mxu0 %v4821
    %5257 = vmatprep.subr.bf16.mxu0 %v4830
    %5258 = vmatpush1.bf16.msra.mxu0 %v4829
    %5259 = vmatprep.subr.bf16.mxu0 %v4838
    %5260 = vmatpush1.bf16.msra.mxu0 %v4837
    %5261 = vmatprep.mubr.bf16.mxu0 %v3648
    %5262 = vmatmul.mubr.bf16.gmra.mrb[0].mxu0 %v3647
    %v5263 = vpop.f32.mrb[0].mxu0
    %v5264 = vadd.f32 %v3912, %v5263
    %v5265 = vpop.f32.mrb[0].mxu0
    %v5266 = vadd.f32 %v3916, %v5265
    %v5267 = vpop.f32.mrb[0].mxu0
    %v5268 = vadd.f32 %v3912, %v5267
    %v5269 = vpop.f32.mrb[0].mxu0
    %v5270 = vadd.f32 %v3916, %v5269
    %5271 = vdwg.mxu0
    %5272 = vmatprep.subr.bf16.mxu0 %v4846
    %5273 = vmatpush1.bf16.msra.mxu0 %v4845
    %5274 = vmatprep.subr.bf16.mxu0 %v4854
    %5275 = vmatpush1.bf16.msra.mxu0 %v4853
    %5276 = vmatprep.subr.bf16.mxu0 %v4862
    %5277 = vmatpush1.bf16.msra.mxu0 %v4861
    %5278 = vmatprep.subr.bf16.mxu0 %v4870
    %5279 = vmatpush1.bf16.msra.mxu0 %v4869
    %5280 = vmatprep.subr.bf16.mxu0 %v4878
    %5281 = vmatpush1.bf16.msra.mxu0 %v4877
    %5282 = vmatprep.subr.bf16.mxu0 %v4886
    %5283 = vmatpush1.bf16.msra.mxu0 %v4885
    %5284 = vmatprep.subr.bf16.mxu0 %v4894
    %5285 = vmatpush1.bf16.msra.mxu0 %v4893
    %5286 = vmatprep.subr.bf16.mxu0 %v4902
    %5287 = vmatpush1.bf16.msra.mxu0 %v4901
    %5288 = vmatprep.subr.bf16.mxu0 %v4910
    %5289 = vmatpush1.bf16.msra.mxu0 %v4909
    %5290 = vmatprep.subr.bf16.mxu0 %v4918
    %5291 = vmatpush1.bf16.msra.mxu0 %v4917
    %5292 = vmatprep.subr.bf16.mxu0 %v4926
    %5293 = vmatpush1.bf16.msra.mxu0 %v4925
    %5294 = vmatprep.subr.bf16.mxu0 %v4934
    %5295 = vmatpush1.bf16.msra.mxu0 %v4933
    %5296 = vmatprep.subr.bf16.mxu0 %v4942
    %5297 = vmatpush1.bf16.msra.mxu0 %v4941
    %5298 = vmatprep.subr.bf16.mxu0 %v4950
    %5299 = vmatpush1.bf16.msra.mxu0 %v4949
    %5300 = vmatprep.subr.bf16.mxu0 %v4958
    %5301 = vmatpush1.bf16.msra.mxu0 %v4957
    %5302 = vmatprep.subr.bf16.mxu0 %v4966
    %5303 = vmatpush1.bf16.msra.mxu0 %v4965
    %5304 = vmatprep.mubr.bf16.mxu0 %v3650
    %5305 = vmatmul.mubr.bf16.gmra.mrb[0].mxu0 %v3649
    %v5306 = vpop.f32.mrb[0].mxu0
    %v5307 = vadd.f32 %v5264, %v5306
    %v5308 = vpop.f32.mrb[0].mxu0
    %v5309 = vadd.f32 %v5266, %v5308
    %v5310 = vpop.f32.mrb[0].mxu0
    %v5311 = vadd.f32 %v5268, %v5310
    %v5312 = vpop.f32.mrb[0].mxu0
    %v5313 = vadd.f32 %v5270, %v5312
    %5314 = vdwg.mxu0
    %5315 = vmatprep.subr.bf16.mxu0 %v4720
    %5316 = vmatpush1.bf16.msra.mxu0 %v4719
    %5317 = vmatprep.subr.bf16.mxu0 %v4728
    %5318 = vmatpush1.bf16.msra.mxu0 %v4727
    %5319 = vmatprep.subr.bf16.mxu0 %v4736
    %5320 = vmatpush1.bf16.msra.mxu0 %v4735
    %5321 = vmatprep.subr.bf16.mxu0 %v4744
    %5322 = vmatpush1.bf16.msra.mxu0 %v4743
    %5323 = vmatprep.subr.bf16.mxu0 %v4752
    %5324 = vmatpush1.bf16.msra.mxu0 %v4751
    %5325 = vmatprep.subr.bf16.mxu0 %v4760
    %5326 = vmatpush1.bf16.msra.mxu0 %v4759
    %5327 = vmatprep.subr.bf16.mxu0 %v4768
    %5328 = vmatpush1.bf16.msra.mxu0 %v4767
    %5329 = vmatprep.subr.bf16.mxu0 %v4776
    %5330 = vmatpush1.bf16.msra.mxu0 %v4775
    %5331 = vmatprep.subr.bf16.mxu0 %v4784
    %5332 = vmatpush1.bf16.msra.mxu0 %v4783
    %5333 = vmatprep.subr.bf16.mxu0 %v4792
    %5334 = vmatpush1.bf16.msra.mxu0 %v4791
    %5335 = vmatprep.subr.bf16.mxu0 %v4800
    %5336 = vmatpush1.bf16.msra.mxu0 %v4799
    %5337 = vmatprep.subr.bf16.mxu0 %v4808
    %5338 = vmatpush1.bf16.msra.mxu0 %v4807
    %5339 = vmatprep.subr.bf16.mxu0 %v4816
    %5340 = vmatpush1.bf16.msra.mxu0 %v4815
    %5341 = vmatprep.subr.bf16.mxu0 %v4824
    %5342 = vmatpush1.bf16.msra.mxu0 %v4823
    %5343 = vmatprep.subr.bf16.mxu0 %v4832
    %5344 = vmatpush1.bf16.msra.mxu0 %v4831
    %5345 = vmatprep.subr.bf16.mxu0 %v4840
    %5346 = vmatpush1.bf16.msra.mxu0 %v4839
    %5347 = vmatprep.mubr.bf16.mxu0 %v3648
    %5348 = vmatmul.mubr.bf16.gmra.mrb[0].mxu0 %v3647
    %v5349 = vpop.f32.mrb[0].mxu0
    %v5350 = vadd.f32 %v3920, %v5349
    %v5351 = vpop.f32.mrb[0].mxu0
    %v5352 = vadd.f32 %v3924, %v5351
    %v5353 = vpop.f32.mrb[0].mxu0
    %v5354 = vadd.f32 %v3920, %v5353
    %v5355 = vpop.f32.mrb[0].mxu0
    %v5356 = vadd.f32 %v3924, %v5355
    %5357 = vdwg.mxu0
    %5358 = vmatprep.subr.bf16.mxu0 %v4848
    %5359 = vmatpush1.bf16.msra.mxu0 %v4847
    %5360 = vmatprep.subr.bf16.mxu0 %v4856
    %5361 = vmatpush1.bf16.msra.mxu0 %v4855
    %5362 = vmatprep.subr.bf16.mxu0 %v4864
    %5363 = vmatpush1.bf16.msra.mxu0 %v4863
    %5364 = vmatprep.subr.bf16.mxu0 %v4872
    %5365 = vmatpush1.bf16.msra.mxu0 %v4871
    %5366 = vmatprep.subr.bf16.mxu0 %v4880
    %5367 = vmatpush1.bf16.msra.mxu0 %v4879
    %5368 = vmatprep.subr.bf16.mxu0 %v4888
    %5369 = vmatpush1.bf16.msra.mxu0 %v4887
    %5370 = vmatprep.subr.bf16.mxu0 %v4896
    %5371 = vmatpush1.bf16.msra.mxu0 %v4895
    %5372 = vmatprep.subr.bf16.mxu0 %v4904
    %5373 = vmatpush1.bf16.msra.mxu0 %v4903
    %5374 = vmatprep.subr.bf16.mxu0 %v4912
    %5375 = vmatpush1.bf16.msra.mxu0 %v4911
    %5376 = vmatprep.subr.bf16.mxu0 %v4920
    %5377 = vmatpush1.bf16.msra.mxu0 %v4919
    %5378 = vmatprep.subr.bf16.mxu0 %v4928
    %5379 = vmatpush1.bf16.msra.mxu0 %v4927
    %5380 = vmatprep.subr.bf16.mxu0 %v4936
    %5381 = vmatpush1.bf16.msra.mxu0 %v4935
    %5382 = vmatprep.subr.bf16.mxu0 %v4944
    %5383 = vmatpush1.bf16.msra.mxu0 %v4943
    %5384 = vmatprep.subr.bf16.mxu0 %v4952
    %5385 = vmatpush1.bf16.msra.mxu0 %v4951
    %5386 = vmatprep.subr.bf16.mxu0 %v4960
    %5387 = vmatpush1.bf16.msra.mxu0 %v4959
    %5388 = vmatprep.subr.bf16.mxu0 %v4968
    %5389 = vmatpush1.bf16.msra.mxu0 %v4967
    %5390 = vmatprep.mubr.bf16.mxu0 %v3650
    %5391 = vmatmul.mubr.bf16.gmra.mrb[0].mxu0 %v3649
    %v5392 = vpop.f32.mrb[0].mxu0
    %v5393 = vadd.f32 %v5350, %v5392
    %v5394 = vpop.f32.mrb[0].mxu0
    %v5395 = vadd.f32 %v5352, %v5394
    %v5396 = vpop.f32.mrb[0].mxu0
    %v5397 = vadd.f32 %v5354, %v5396
    %v5398 = vpop.f32.mrb[0].mxu0
    %v5399 = vadd.f32 %v5356, %v5398
    %5400 = vdwg.mxu0
    %5401 = vmatprep.subr.bf16.mxu0 %v4722
    %5402 = vmatpush1.bf16.msra.mxu0 %v4721
    %5403 = vmatprep.subr.bf16.mxu0 %v4730
    %5404 = vmatpush1.bf16.msra.mxu0 %v4729
    %5405 = vmatprep.subr.bf16.mxu0 %v4738
    %5406 = vmatpush1.bf16.msra.mxu0 %v4737
    %5407 = vmatprep.subr.bf16.mxu0 %v4746
    %5408 = vmatpush1.bf16.msra.mxu0 %v4745
    %5409 = vmatprep.subr.bf16.mxu0 %v4754
    %5410 = vmatpush1.bf16.msra.mxu0 %v4753
    %5411 = vmatprep.subr.bf16.mxu0 %v4762
    %5412 = vmatpush1.bf16.msra.mxu0 %v4761
    %5413 = vmatprep.subr.bf16.mxu0 %v4770
    %5414 = vmatpush1.bf16.msra.mxu0 %v4769
    %5415 = vmatprep.subr.bf16.mxu0 %v4778
    %5416 = vmatpush1.bf16.msra.mxu0 %v4777
    %5417 = vmatprep.subr.bf16.mxu0 %v4786
    %5418 = vmatpush1.bf16.msra.mxu0 %v4785
    %5419 = vmatprep.subr.bf16.mxu0 %v4794
    %5420 = vmatpush1.bf16.msra.mxu0 %v4793
    %5421 = vmatprep.subr.bf16.mxu0 %v4802
    %5422 = vmatpush1.bf16.msra.mxu0 %v4801
    %5423 = vmatprep.subr.bf16.mxu0 %v4810
    %5424 = vmatpush1.bf16.msra.mxu0 %v4809
    %5425 = vmatprep.subr.bf16.mxu0 %v4818
    %5426 = vmatpush1.bf16.msra.mxu0 %v4817
    %5427 = vmatprep.subr.bf16.mxu0 %v4826
    %5428 = vmatpush1.bf16.msra.mxu0 %v4825
    %5429 = vmatprep.subr.bf16.mxu0 %v4834
    %5430 = vmatpush1.bf16.msra.mxu0 %v4833
    %5431 = vmatprep.subr.bf16.mxu0 %v4842
    %5432 = vmatpush1.bf16.msra.mxu0 %v4841
    %5433 = vmatprep.mubr.bf16.mxu0 %v3648
    %5434 = vmatmul.mubr.bf16.gmra.mrb[0].mxu0 %v3647
    %v5435 = vpop.f32.mrb[0].mxu0
    %v5436 = vadd.f32 %v3928, %v5435
    %v5437 = vpop.f32.mrb[0].mxu0
    %v5438 = vadd.f32 %v3932, %v5437
    %v5439 = vpop.f32.mrb[0].mxu0
    %v5440 = vadd.f32 %v3928, %v5439
    %v5441 = vpop.f32.mrb[0].mxu0
    %v5442 = vadd.f32 %v3932, %v5441
    %5443 = vdwg.mxu0
    %5444 = vmatprep.subr.bf16.mxu0 %v4850
    %5445 = vmatpush1.bf16.msra.mxu0 %v4849
    %5446 = vmatprep.subr.bf16.mxu0 %v4858
    %5447 = vmatpush1.bf16.msra.mxu0 %v4857
    %5448 = vmatprep.subr.bf16.mxu0 %v4866
    %5449 = vmatpush1.bf16.msra.mxu0 %v4865
    %5450 = vmatprep.subr.bf16.mxu0 %v4874
    %5451 = vmatpush1.bf16.msra.mxu0 %v4873
    %5452 = vmatprep.subr.bf16.mxu0 %v4882
    %5453 = vmatpush1.bf16.msra.mxu0 %v4881
    %5454 = vmatprep.subr.bf16.mxu0 %v4890
    %5455 = vmatpush1.bf16.msra.mxu0 %v4889
    %5456 = vmatprep.subr.bf16.mxu0 %v4898
    %5457 = vmatpush1.bf16.msra.mxu0 %v4897
    %5458 = vmatprep.subr.bf16.mxu0 %v4906
    %5459 = vmatpush1.bf16.msra.mxu0 %v4905
    %5460 = vmatprep.subr.bf16.mxu0 %v4914
    %5461 = vmatpush1.bf16.msra.mxu0 %v4913
    %5462 = vmatprep.subr.bf16.mxu0 %v4922
    %5463 = vmatpush1.bf16.msra.mxu0 %v4921
    %5464 = vmatprep.subr.bf16.mxu0 %v4930
    %5465 = vmatpush1.bf16.msra.mxu0 %v4929
    %5466 = vmatprep.subr.bf16.mxu0 %v4938
    %5467 = vmatpush1.bf16.msra.mxu0 %v4937
    %5468 = vmatprep.subr.bf16.mxu0 %v4946
    %5469 = vmatpush1.bf16.msra.mxu0 %v4945
    %5470 = vmatprep.subr.bf16.mxu0 %v4954
    %5471 = vmatpush1.bf16.msra.mxu0 %v4953
    %5472 = vmatprep.subr.bf16.mxu0 %v4962
    %5473 = vmatpush1.bf16.msra.mxu0 %v4961
    %5474 = vmatprep.subr.bf16.mxu0 %v4970
    %5475 = vmatpush1.bf16.msra.mxu0 %v4969
    %5476 = vmatprep.mubr.bf16.mxu0 %v3650
    %5477 = vmatmul.mubr.bf16.gmra.mrb[0].mxu0 %v3649
    %v5478 = vpop.f32.mrb[0].mxu0
    %v5479 = vadd.f32 %v5436, %v5478
    %v5480 = vpop.f32.mrb[0].mxu0
    %v5481 = vadd.f32 %v5438, %v5480
    %v5482 = vpop.f32.mrb[0].mxu0
    %v5483 = vadd.f32 %v5440, %v5482
    %v5484 = vpop.f32.mrb[0].mxu0
    %v5485 = vadd.f32 %v5442, %v5484
    %5486 = vdwg.mxu0
    %5487 = vmatprep.subr.bf16.mxu0 %v4724
    %5488 = vmatpush1.bf16.msra.mxu0 %v4723
    %5489 = vmatprep.subr.bf16.mxu0 %v4732
    %5490 = vmatpush1.bf16.msra.mxu0 %v4731
    %5491 = vmatprep.subr.bf16.mxu0 %v4740
    %5492 = vmatpush1.bf16.msra.mxu0 %v4739
    %5493 = vmatprep.subr.bf16.mxu0 %v4748
    %5494 = vmatpush1.bf16.msra.mxu0 %v4747
    %5495 = vmatprep.subr.bf16.mxu0 %v4756
    %5496 = vmatpush1.bf16.msra.mxu0 %v4755
    %5497 = vmatprep.subr.bf16.mxu0 %v4764
    %5498 = vmatpush1.bf16.msra.mxu0 %v4763
    %5499 = vmatprep.subr.bf16.mxu0 %v4772
    %5500 = vmatpush1.bf16.msra.mxu0 %v4771
    %5501 = vmatprep.subr.bf16.mxu0 %v4780
    %5502 = vmatpush1.bf16.msra.mxu0 %v4779
    %5503 = vmatprep.subr.bf16.mxu0 %v4788
    %5504 = vmatpush1.bf16.msra.mxu0 %v4787
    %5505 = vmatprep.subr.bf16.mxu0 %v4796
    %5506 = vmatpush1.bf16.msra.mxu0 %v4795
    %5507 = vmatprep.subr.bf16.mxu0 %v4804
    %5508 = vmatpush1.bf16.msra.mxu0 %v4803
    %5509 = vmatprep.subr.bf16.mxu0 %v4812
    %5510 = vmatpush1.bf16.msra.mxu0 %v4811
    %5511 = vmatprep.subr.bf16.mxu0 %v4820
    %5512 = vmatpush1.bf16.msra.mxu0 %v4819
    %5513 = vmatprep.subr.bf16.mxu0 %v4828
    %5514 = vmatpush1.bf16.msra.mxu0 %v4827
    %5515 = vmatprep.subr.bf16.mxu0 %v4836
    %5516 = vmatpush1.bf16.msra.mxu0 %v4835
    %5517 = vmatprep.subr.bf16.mxu0 %v4844
    %5518 = vmatpush1.bf16.msra.mxu0 %v4843
    %5519 = vmatprep.mubr.bf16.mxu0 %v3648
    %5520 = vmatmul.mubr.bf16.gmra.mrb[0].mxu0 %v3647
    %v5521 = vpop.f32.mrb[0].mxu0
    %v5522 = vadd.f32 %v3936, %v5521
    %v5523 = vpop.f32.mrb[0].mxu0
    %v5524 = vadd.f32 %v3940, %v5523
    %v5525 = vpop.f32.mrb[0].mxu0
    %v5526 = vadd.f32 %v3936, %v5525
    %v5527 = vpop.f32.mrb[0].mxu0
    %v5528 = vadd.f32 %v3940, %v5527
    %5529 = vdwg.mxu0
    %5530 = vmatprep.subr.bf16.mxu0 %v4852
    %5531 = vmatpush1.bf16.msra.mxu0 %v4851
    %5532 = vmatprep.subr.bf16.mxu0 %v4860
    %5533 = vmatpush1.bf16.msra.mxu0 %v4859
    %5534 = vmatprep.subr.bf16.mxu0 %v4868
    %5535 = vmatpush1.bf16.msra.mxu0 %v4867
    %5536 = vmatprep.subr.bf16.mxu0 %v4876
    %5537 = vmatpush1.bf16.msra.mxu0 %v4875
    %5538 = vmatprep.subr.bf16.mxu0 %v4884
    %5539 = vmatpush1.bf16.msra.mxu0 %v4883
    %5540 = vmatprep.subr.bf16.mxu0 %v4892
    %5541 = vmatpush1.bf16.msra.mxu0 %v4891
    %5542 = vmatprep.subr.bf16.mxu0 %v4900
    %5543 = vmatpush1.bf16.msra.mxu0 %v4899
    %5544 = vmatprep.subr.bf16.mxu0 %v4908
    %5545 = vmatpush1.bf16.msra.mxu0 %v4907
    %5546 = vmatprep.subr.bf16.mxu0 %v4916
    %5547 = vmatpush1.bf16.msra.mxu0 %v4915
    %5548 = vmatprep.subr.bf16.mxu0 %v4924
    %5549 = vmatpush1.bf16.msra.mxu0 %v4923
    %5550 = vmatprep.subr.bf16.mxu0 %v4932
    %5551 = vmatpush1.bf16.msra.mxu0 %v4931
    %5552 = vmatprep.subr.bf16.mxu0 %v4940
    %5553 = vmatpush1.bf16.msra.mxu0 %v4939
    %5554 = vmatprep.subr.bf16.mxu0 %v4948
    %5555 = vmatpush1.bf16.msra.mxu0 %v4947
    %5556 = vmatprep.subr.bf16.mxu0 %v4956
    %5557 = vmatpush1.bf16.msra.mxu0 %v4955
    %5558 = vmatprep.subr.bf16.mxu0 %v4964
    %5559 = vmatpush1.bf16.msra.mxu0 %v4963
    %5560 = vmatprep.subr.bf16.mxu0 %v4972
    %5561 = vmatpush1.bf16.msra.mxu0 %v4971
    %5562 = vmatprep.mubr.bf16.mxu0 %v3650
    %5563 = vmatmul.mubr.bf16.gmra.mrb[0].mxu0 %v3649
    %v5564 = vpop.f32.mrb[0].mxu0
    %v5565 = vadd.f32 %v5522, %v5564
    %v5566 = vpop.f32.mrb[0].mxu0
    %v5567 = vadd.f32 %v5524, %v5566
    %v5568 = vpop.f32.mrb[0].mxu0
    %v5569 = vadd.f32 %v5526, %v5568
    %v5570 = vpop.f32.mrb[0].mxu0
    %v5571 = vadd.f32 %v5528, %v5570
    %5572 = vdwg.mxu0
    %v5573 = vmax.f32 %v5307, 0.0
    %v5574 = vmax.f32 %v5309, 0.0
    %v5575 = vmax.f32 %v5393, 0.0
    %v5576 = vmax.f32 %v5395, 0.0
    %v5577 = vmax.f32 %v5479, 0.0
    %v5578 = vmax.f32 %v5481, 0.0
    %v5579 = vmax.f32 %v5565, 0.0
    %v5580 = vmax.f32 %v5567, 0.0
    %v5581 = vmax.f32 %v5311, 0.0
    %v5582 = vmax.f32 %v5313, 0.0
    %v5583 = vmax.f32 %v5397, 0.0
    %v5584 = vmax.f32 %v5399, 0.0
    %v5585 = vmax.f32 %v5483, 0.0
    %v5586 = vmax.f32 %v5485, 0.0
    %v5587 = vmax.f32 %v5569, 0.0
    %v5588 = vmax.f32 %v5571, 0.0
    %v5589 = vpack.c.bf16 %v5581, %v5573
    %v5590 = vpack.c.bf16 %v5582, %v5574
    %v5591 = vpack.c.bf16 %v5583, %v5575
    %v5592 = vpack.c.bf16 %v5584, %v5576
    %v5593 = vpack.c.bf16 %v5585, %v5577
    %v5594 = vpack.c.bf16 %v5586, %v5578
    %v5595 = vpack.c.bf16 %v5587, %v5579
    %v5596 = vpack.c.bf16 %v5588, %v5580
    %v5597 = vld [vmem:[#allocation13] sm:$0xf]
    %v5598 = vld [vmem:[#allocation13 + $0x4] sm:$0xf]
    %v5599 = vld [vmem:[#allocation13 + $0x8] sm:$0xf]
    %v5600 = vld [vmem:[#allocation13 + $0xc] sm:$0xf]
    %v5601 = vld [vmem:[#allocation13 + $0x10] sm:$0xf]
    %v5602 = vld [vmem:[#allocation13 + $0x14] sm:$0xf]
    %v5603 = vld [vmem:[#allocation13 + $0x18] sm:$0xf]
    %v5604 = vld [vmem:[#allocation13 + $0x1c] sm:$0xf]
    %v5605 = vld [vmem:[#allocation13 + $0x20] sm:$0xf]
    %v5606 = vld [vmem:[#allocation13 + $0x24] sm:$0xf]
    %v5607 = vld [vmem:[#allocation13 + $0x28] sm:$0xf]
    %v5608 = vld [vmem:[#allocation13 + $0x2c] sm:$0xf]
    %v5609 = vld [vmem:[#allocation13 + $0x30] sm:$0xf]
    %v5610 = vld [vmem:[#allocation13 + $0x34] sm:$0xf]
    %v5611 = vld [vmem:[#allocation13 + $0x38] sm:$0xf]
    %v5612 = vld [vmem:[#allocation13 + $0x3c] sm:$0xf]
    %v5613 = vld [vmem:[#allocation13 + $0x40] sm:$0xf]
    %v5614 = vld [vmem:[#allocation13 + $0x44] sm:$0xf]
    %v5615 = vld [vmem:[#allocation13 + $0x48] sm:$0xf]
    %v5616 = vld [vmem:[#allocation13 + $0x4c] sm:$0xf]
    %v5617 = vld [vmem:[#allocation13 + $0x50] sm:$0xf]
    %v5618 = vld [vmem:[#allocation13 + $0x54] sm:$0xf]
    %v5619 = vld [vmem:[#allocation13 + $0x58] sm:$0xf]
    %v5620 = vld [vmem:[#allocation13 + $0x5c] sm:$0xf]
    %v5621 = vld [vmem:[#allocation13 + $0x60] sm:$0xf]
    %v5622 = vld [vmem:[#allocation13 + $0x64] sm:$0xf]
    %v5623 = vld [vmem:[#allocation13 + $0x68] sm:$0xf]
    %v5624 = vld [vmem:[#allocation13 + $0x6c] sm:$0xf]
    %v5625 = vld [vmem:[#allocation13 + $0x70] sm:$0xf]
    %v5626 = vld [vmem:[#allocation13 + $0x74] sm:$0xf]
    %v5627 = vld [vmem:[#allocation13 + $0x78] sm:$0xf]
    %v5628 = vld [vmem:[#allocation13 + $0x7c] sm:$0xf]
    %v5629 = vld [vmem:[#allocation13 + $0x80] sm:$0xf]
    %v5630 = vld [vmem:[#allocation13 + $0x84] sm:$0xf]
    %v5631 = vld [vmem:[#allocation13 + $0x88] sm:$0xf]
    %v5632 = vld [vmem:[#allocation13 + $0x8c] sm:$0xf]
    %v5633 = vld [vmem:[#allocation13 + $0x90] sm:$0xf]
    %v5634 = vld [vmem:[#allocation13 + $0x94] sm:$0xf]
    %v5635 = vld [vmem:[#allocation13 + $0x98] sm:$0xf]
    %v5636 = vld [vmem:[#allocation13 + $0x9c] sm:$0xf]
    %v5637 = vld [vmem:[#allocation13 + $0xa0] sm:$0xf]
    %v5638 = vld [vmem:[#allocation13 + $0xa4] sm:$0xf]
    %v5639 = vld [vmem:[#allocation13 + $0xa8] sm:$0xf]
    %v5640 = vld [vmem:[#allocation13 + $0xac] sm:$0xf]
    %v5641 = vld [vmem:[#allocation13 + $0xb0] sm:$0xf]
    %v5642 = vld [vmem:[#allocation13 + $0xb4] sm:$0xf]
    %v5643 = vld [vmem:[#allocation13 + $0xb8] sm:$0xf]
    %v5644 = vld [vmem:[#allocation13 + $0xbc] sm:$0xf]
    %v5645 = vld [vmem:[#allocation13 + $0xc0] sm:$0xf]
    %v5646 = vld [vmem:[#allocation13 + $0xc4] sm:$0xf]
    %v5647 = vld [vmem:[#allocation13 + $0xc8] sm:$0xf]
    %v5648 = vld [vmem:[#allocation13 + $0xcc] sm:$0xf]
    %v5649 = vld [vmem:[#allocation13 + $0xd0] sm:$0xf]
    %v5650 = vld [vmem:[#allocation13 + $0xd4] sm:$0xf]
    %v5651 = vld [vmem:[#allocation13 + $0xd8] sm:$0xf]
    %v5652 = vld [vmem:[#allocation13 + $0xdc] sm:$0xf]
    %v5653 = vld [vmem:[#allocation13 + $0xe0] sm:$0xf]
    %v5654 = vld [vmem:[#allocation13 + $0xe4] sm:$0xf]
    %v5655 = vld [vmem:[#allocation13 + $0xe8] sm:$0xf]
    %v5656 = vld [vmem:[#allocation13 + $0xec] sm:$0xf]
    %v5657 = vld [vmem:[#allocation13 + $0xf0] sm:$0xf]
    %v5658 = vld [vmem:[#allocation13 + $0xf4] sm:$0xf]
    %v5659 = vld [vmem:[#allocation13 + $0xf8] sm:$0xf]
    %v5660 = vld [vmem:[#allocation13 + $0xfc] sm:$0xf]
    %v5661 = vld [vmem:[#allocation13 + $0x100] sm:$0xf]
    %v5662 = vld [vmem:[#allocation13 + $0x104] sm:$0xf]
    %v5663 = vld [vmem:[#allocation13 + $0x108] sm:$0xf]
    %v5664 = vld [vmem:[#allocation13 + $0x10c] sm:$0xf]
    %v5665 = vld [vmem:[#allocation13 + $0x110] sm:$0xf]
    %v5666 = vld [vmem:[#allocation13 + $0x114] sm:$0xf]
    %v5667 = vld [vmem:[#allocation13 + $0x118] sm:$0xf]
    %v5668 = vld [vmem:[#allocation13 + $0x11c] sm:$0xf]
    %v5669 = vld [vmem:[#allocation13 + $0x120] sm:$0xf]
    %v5670 = vld [vmem:[#allocation13 + $0x124] sm:$0xf]
    %v5671 = vld [vmem:[#allocation13 + $0x128] sm:$0xf]
    %v5672 = vld [vmem:[#allocation13 + $0x12c] sm:$0xf]
    %v5673 = vld [vmem:[#allocation13 + $0x130] sm:$0xf]
    %v5674 = vld [vmem:[#allocation13 + $0x134] sm:$0xf]
    %v5675 = vld [vmem:[#allocation13 + $0x138] sm:$0xf]
    %v5676 = vld [vmem:[#allocation13 + $0x13c] sm:$0xf]
    %v5677 = vld [vmem:[#allocation13 + $0x140] sm:$0xf]
    %v5678 = vld [vmem:[#allocation13 + $0x144] sm:$0xf]
    %v5679 = vld [vmem:[#allocation13 + $0x148] sm:$0xf]
    %v5680 = vld [vmem:[#allocation13 + $0x14c] sm:$0xf]
    %v5681 = vld [vmem:[#allocation13 + $0x150] sm:$0xf]
    %v5682 = vld [vmem:[#allocation13 + $0x154] sm:$0xf]
    %v5683 = vld [vmem:[#allocation13 + $0x158] sm:$0xf]
    %v5684 = vld [vmem:[#allocation13 + $0x15c] sm:$0xf]
    %v5685 = vld [vmem:[#allocation13 + $0x160] sm:$0xf]
    %v5686 = vld [vmem:[#allocation13 + $0x164] sm:$0xf]
    %v5687 = vld [vmem:[#allocation13 + $0x168] sm:$0xf]
    %v5688 = vld [vmem:[#allocation13 + $0x16c] sm:$0xf]
    %v5689 = vld [vmem:[#allocation13 + $0x170] sm:$0xf]
    %v5690 = vld [vmem:[#allocation13 + $0x174] sm:$0xf]
    %v5691 = vld [vmem:[#allocation13 + $0x178] sm:$0xf]
    %v5692 = vld [vmem:[#allocation13 + $0x17c] sm:$0xf]
    %v5693 = vld [vmem:[#allocation13 + $0x180] sm:$0xf]
    %v5694 = vld [vmem:[#allocation13 + $0x184] sm:$0xf]
    %v5695 = vld [vmem:[#allocation13 + $0x188] sm:$0xf]
    %v5696 = vld [vmem:[#allocation13 + $0x18c] sm:$0xf]
    %v5697 = vld [vmem:[#allocation13 + $0x190] sm:$0xf]
    %v5698 = vld [vmem:[#allocation13 + $0x194] sm:$0xf]
    %v5699 = vld [vmem:[#allocation13 + $0x198] sm:$0xf]
    %v5700 = vld [vmem:[#allocation13 + $0x19c] sm:$0xf]
    %v5701 = vld [vmem:[#allocation13 + $0x1a0] sm:$0xf]
    %v5702 = vld [vmem:[#allocation13 + $0x1a4] sm:$0xf]
    %v5703 = vld [vmem:[#allocation13 + $0x1a8] sm:$0xf]
    %v5704 = vld [vmem:[#allocation13 + $0x1ac] sm:$0xf]
    %v5705 = vld [vmem:[#allocation13 + $0x1b0] sm:$0xf]
    %v5706 = vld [vmem:[#allocation13 + $0x1b4] sm:$0xf]
    %v5707 = vld [vmem:[#allocation13 + $0x1b8] sm:$0xf]
    %v5708 = vld [vmem:[#allocation13 + $0x1bc] sm:$0xf]
    %v5709 = vld [vmem:[#allocation13 + $0x1c0] sm:$0xf]
    %v5710 = vld [vmem:[#allocation13 + $0x1c4] sm:$0xf]
    %v5711 = vld [vmem:[#allocation13 + $0x1c8] sm:$0xf]
    %v5712 = vld [vmem:[#allocation13 + $0x1cc] sm:$0xf]
    %v5713 = vld [vmem:[#allocation13 + $0x1d0] sm:$0xf]
    %v5714 = vld [vmem:[#allocation13 + $0x1d4] sm:$0xf]
    %v5715 = vld [vmem:[#allocation13 + $0x1d8] sm:$0xf]
    %v5716 = vld [vmem:[#allocation13 + $0x1dc] sm:$0xf]
    %v5717 = vld [vmem:[#allocation13 + $0x1e0] sm:$0xf]
    %v5718 = vld [vmem:[#allocation13 + $0x1e4] sm:$0xf]
    %v5719 = vld [vmem:[#allocation13 + $0x1e8] sm:$0xf]
    %v5720 = vld [vmem:[#allocation13 + $0x1ec] sm:$0xf]
    %v5721 = vld [vmem:[#allocation13 + $0x1f0] sm:$0xf]
    %v5722 = vld [vmem:[#allocation13 + $0x1f4] sm:$0xf]
    %v5723 = vld [vmem:[#allocation13 + $0x1f8] sm:$0xf]
    %v5724 = vld [vmem:[#allocation13 + $0x1fc] sm:$0xf]
    %v5725 = vld [vmem:[%s10] sm:$0x1]
    %v5727 = vlaneseq
    %v5728 = vshrl.u32 %v5727, 7
    %v5729 = vsub.s32 0, %v5728
    %v5730 = vrot.slane %v5725, %v5729
    %v5860 = vunpack.c.l.b16 %v5597
    %v5861 = vunpack.c.l.b16 %v5598
    %v5862 = vunpack.c.l.b16 %v5599
    %v5863 = vunpack.c.l.b16 %v5600
    %v5864 = vunpack.c.l.b16 %v5601
    %v5865 = vunpack.c.l.b16 %v5602
    %v5866 = vunpack.c.l.b16 %v5603
    %v5867 = vunpack.c.l.b16 %v5604
    %v5868 = vunpack.c.l.b16 %v5605
    %v5869 = vunpack.c.l.b16 %v5606
    %v5870 = vunpack.c.l.b16 %v5607
    %v5871 = vunpack.c.l.b16 %v5608
    %v5872 = vunpack.c.l.b16 %v5609
    %v5873 = vunpack.c.l.b16 %v5610
    %v5874 = vunpack.c.l.b16 %v5611
    %v5875 = vunpack.c.l.b16 %v5612
    %v5876 = vunpack.c.l.b16 %v5613
    %v5877 = vunpack.c.l.b16 %v5614
    %v5878 = vunpack.c.l.b16 %v5615
    %v5879 = vunpack.c.l.b16 %v5616
    %v5880 = vunpack.c.l.b16 %v5617
    %v5881 = vunpack.c.l.b16 %v5618
    %v5882 = vunpack.c.l.b16 %v5619
    %v5883 = vunpack.c.l.b16 %v5620
    %v5884 = vunpack.c.l.b16 %v5621
    %v5885 = vunpack.c.l.b16 %v5622
    %v5886 = vunpack.c.l.b16 %v5623
    %v5887 = vunpack.c.l.b16 %v5624
    %v5888 = vunpack.c.l.b16 %v5625
    %v5889 = vunpack.c.l.b16 %v5626
    %v5890 = vunpack.c.l.b16 %v5627
    %v5891 = vunpack.c.l.b16 %v5628
    %v5892 = vunpack.c.l.b16 %v5629
    %v5893 = vunpack.c.l.b16 %v5630
    %v5894 = vunpack.c.l.b16 %v5631
    %v5895 = vunpack.c.l.b16 %v5632
    %v5896 = vunpack.c.l.b16 %v5633
    %v5897 = vunpack.c.l.b16 %v5634
    %v5898 = vunpack.c.l.b16 %v5635
    %v5899 = vunpack.c.l.b16 %v5636
    %v5900 = vunpack.c.l.b16 %v5637
    %v5901 = vunpack.c.l.b16 %v5638
    %v5902 = vunpack.c.l.b16 %v5639
    %v5903 = vunpack.c.l.b16 %v5640
    %v5904 = vunpack.c.l.b16 %v5641
    %v5905 = vunpack.c.l.b16 %v5642
    %v5906 = vunpack.c.l.b16 %v5643
    %v5907 = vunpack.c.l.b16 %v5644
    %v5908 = vunpack.c.l.b16 %v5645
    %v5909 = vunpack.c.l.b16 %v5646
    %v5910 = vunpack.c.l.b16 %v5647
    %v5911 = vunpack.c.l.b16 %v5648
    %v5912 = vunpack.c.l.b16 %v5649
    %v5913 = vunpack.c.l.b16 %v5650
    %v5914 = vunpack.c.l.b16 %v5651
    %v5915 = vunpack.c.l.b16 %v5652
    %v5916 = vunpack.c.l.b16 %v5653
    %v5917 = vunpack.c.l.b16 %v5654
    %v5918 = vunpack.c.l.b16 %v5655
    %v5919 = vunpack.c.l.b16 %v5656
    %v5920 = vunpack.c.l.b16 %v5657
    %v5921 = vunpack.c.l.b16 %v5658
    %v5922 = vunpack.c.l.b16 %v5659
    %v5923 = vunpack.c.l.b16 %v5660
    %v5924 = vunpack.c.l.b16 %v5661
    %v5925 = vunpack.c.l.b16 %v5662
    %v5926 = vunpack.c.l.b16 %v5663
    %v5927 = vunpack.c.l.b16 %v5664
    %v5928 = vunpack.c.l.b16 %v5665
    %v5929 = vunpack.c.l.b16 %v5666
    %v5930 = vunpack.c.l.b16 %v5667
    %v5931 = vunpack.c.l.b16 %v5668
    %v5932 = vunpack.c.l.b16 %v5669
    %v5933 = vunpack.c.l.b16 %v5670
    %v5934 = vunpack.c.l.b16 %v5671
    %v5935 = vunpack.c.l.b16 %v5672
    %v5936 = vunpack.c.l.b16 %v5673
    %v5937 = vunpack.c.l.b16 %v5674
    %v5938 = vunpack.c.l.b16 %v5675
    %v5939 = vunpack.c.l.b16 %v5676
    %v5940 = vunpack.c.l.b16 %v5677
    %v5941 = vunpack.c.l.b16 %v5678
    %v5942 = vunpack.c.l.b16 %v5679
    %v5943 = vunpack.c.l.b16 %v5680
    %v5944 = vunpack.c.l.b16 %v5681
    %v5945 = vunpack.c.l.b16 %v5682
    %v5946 = vunpack.c.l.b16 %v5683
    %v5947 = vunpack.c.l.b16 %v5684
    %v5948 = vunpack.c.l.b16 %v5685
    %v5949 = vunpack.c.l.b16 %v5686
    %v5950 = vunpack.c.l.b16 %v5687
    %v5951 = vunpack.c.l.b16 %v5688
    %v5952 = vunpack.c.l.b16 %v5689
    %v5953 = vunpack.c.l.b16 %v5690
    %v5954 = vunpack.c.l.b16 %v5691
    %v5955 = vunpack.c.l.b16 %v5692
    %v5956 = vunpack.c.l.b16 %v5693
    %v5957 = vunpack.c.l.b16 %v5694
    %v5958 = vunpack.c.l.b16 %v5695
    %v5959 = vunpack.c.l.b16 %v5696
    %v5960 = vunpack.c.l.b16 %v5697
    %v5961 = vunpack.c.l.b16 %v5698
    %v5962 = vunpack.c.l.b16 %v5699
    %v5963 = vunpack.c.l.b16 %v5700
    %v5964 = vunpack.c.l.b16 %v5701
    %v5965 = vunpack.c.l.b16 %v5702
    %v5966 = vunpack.c.l.b16 %v5703
    %v5967 = vunpack.c.l.b16 %v5704
    %v5968 = vunpack.c.l.b16 %v5705
    %v5969 = vunpack.c.l.b16 %v5706
    %v5970 = vunpack.c.l.b16 %v5707
    %v5971 = vunpack.c.l.b16 %v5708
    %v5972 = vunpack.c.l.b16 %v5709
    %v5973 = vunpack.c.l.b16 %v5710
    %v5974 = vunpack.c.l.b16 %v5711
    %v5975 = vunpack.c.l.b16 %v5712
    %v5976 = vunpack.c.l.b16 %v5713
    %v5977 = vunpack.c.l.b16 %v5714
    %v5978 = vunpack.c.l.b16 %v5715
    %v5979 = vunpack.c.l.b16 %v5716
    %v5980 = vunpack.c.l.b16 %v5717
    %v5981 = vunpack.c.l.b16 %v5718
    %v5982 = vunpack.c.l.b16 %v5719
    %v5983 = vunpack.c.l.b16 %v5720
    %v5984 = vunpack.c.l.b16 %v5721
    %v5985 = vunpack.c.l.b16 %v5722
    %v5986 = vunpack.c.l.b16 %v5723
    %v5987 = vunpack.c.l.b16 %v5724
    %v5988 = vpack.c.b16 %v5861, %v5860
    %v5989 = vpack.c.b16 %v5863, %v5862
    %v5990 = vpack.c.b16 %v5865, %v5864
    %v5991 = vpack.c.b16 %v5867, %v5866
    %v5992 = vpack.c.b16 %v5869, %v5868
    %v5993 = vpack.c.b16 %v5871, %v5870
    %v5994 = vpack.c.b16 %v5873, %v5872
    %v5995 = vpack.c.b16 %v5875, %v5874
    %v5996 = vpack.c.b16 %v5877, %v5876
    %v5997 = vpack.c.b16 %v5879, %v5878
    %v5998 = vpack.c.b16 %v5881, %v5880
    %v5999 = vpack.c.b16 %v5883, %v5882
    %v6000 = vpack.c.b16 %v5885, %v5884
    %v6001 = vpack.c.b16 %v5887, %v5886
    %v6002 = vpack.c.b16 %v5889, %v5888
    %v6003 = vpack.c.b16 %v5891, %v5890
    %v6004 = vpack.c.b16 %v5893, %v5892
    %v6005 = vpack.c.b16 %v5895, %v5894
    %v6006 = vpack.c.b16 %v5897, %v5896
    %v6007 = vpack.c.b16 %v5899, %v5898
    %v6008 = vpack.c.b16 %v5901, %v5900
    %v6009 = vpack.c.b16 %v5903, %v5902
    %v6010 = vpack.c.b16 %v5905, %v5904
    %v6011 = vpack.c.b16 %v5907, %v5906
    %v6012 = vpack.c.b16 %v5909, %v5908
    %v6013 = vpack.c.b16 %v5911, %v5910
    %v6014 = vpack.c.b16 %v5913, %v5912
    %v6015 = vpack.c.b16 %v5915, %v5914
    %v6016 = vpack.c.b16 %v5917, %v5916
    %v6017 = vpack.c.b16 %v5919, %v5918
    %v6018 = vpack.c.b16 %v5921, %v5920
    %v6019 = vpack.c.b16 %v5923, %v5922
    %v6020 = vpack.c.b16 %v5925, %v5924
    %v6021 = vpack.c.b16 %v5927, %v5926
    %v6022 = vpack.c.b16 %v5929, %v5928
    %v6023 = vpack.c.b16 %v5931, %v5930
    %v6024 = vpack.c.b16 %v5933, %v5932
    %v6025 = vpack.c.b16 %v5935, %v5934
    %v6026 = vpack.c.b16 %v5937, %v5936
    %v6027 = vpack.c.b16 %v5939, %v5938
    %v6028 = vpack.c.b16 %v5941, %v5940
    %v6029 = vpack.c.b16 %v5943, %v5942
    %v6030 = vpack.c.b16 %v5945, %v5944
    %v6031 = vpack.c.b16 %v5947, %v5946
    %v6032 = vpack.c.b16 %v5949, %v5948
    %v6033 = vpack.c.b16 %v5951, %v5950
    %v6034 = vpack.c.b16 %v5953, %v5952
    %v6035 = vpack.c.b16 %v5955, %v5954
    %v6036 = vpack.c.b16 %v5957, %v5956
    %v6037 = vpack.c.b16 %v5959, %v5958
    %v6038 = vpack.c.b16 %v5961, %v5960
    %v6039 = vpack.c.b16 %v5963, %v5962
    %v6040 = vpack.c.b16 %v5965, %v5964
    %v6041 = vpack.c.b16 %v5967, %v5966
    %v6042 = vpack.c.b16 %v5969, %v5968
    %v6043 = vpack.c.b16 %v5971, %v5970
    %v6044 = vpack.c.b16 %v5973, %v5972
    %v6045 = vpack.c.b16 %v5975, %v5974
    %v6046 = vpack.c.b16 %v5977, %v5976
    %v6047 = vpack.c.b16 %v5979, %v5978
    %v6048 = vpack.c.b16 %v5981, %v5980
    %v6049 = vpack.c.b16 %v5983, %v5982
    %v6050 = vpack.c.b16 %v5985, %v5984
    %v6051 = vpack.c.b16 %v5987, %v5986
    %6116 = vmatprep.subr.bf16.mxu0 0
    %6117 = vmatpush1.bf16.msra.mxu0 %v5988
    %6118 = vmatprep.subr.bf16.mxu0 0
    %6119 = vmatpush1.bf16.msra.mxu0 %v5989
    %6120 = vmatprep.subr.bf16.mxu0 0
    %6121 = vmatpush1.bf16.msra.mxu0 %v5990
    %6122 = vmatprep.subr.bf16.mxu0 0
    %6123 = vmatpush1.bf16.msra.mxu0 %v5991
    %6124 = vmatprep.subr.bf16.mxu0 0
    %6125 = vmatpush1.bf16.msra.mxu0 %v5992
    %6126 = vmatprep.subr.bf16.mxu0 0
    %6127 = vmatpush1.bf16.msra.mxu0 %v5993
    %6128 = vmatprep.subr.bf16.mxu0 0
    %6129 = vmatpush1.bf16.msra.mxu0 %v5994
    %6130 = vmatprep.subr.bf16.mxu0 0
    %6131 = vmatpush1.bf16.msra.mxu0 %v5995
    %6132 = vmatprep.subr.bf16.mxu0 0
    %6133 = vmatpush1.bf16.msra.mxu0 %v5996
    %6134 = vmatprep.subr.bf16.mxu0 0
    %6135 = vmatpush1.bf16.msra.mxu0 %v5997
    %6136 = vmatprep.subr.bf16.mxu0 0
    %6137 = vmatpush1.bf16.msra.mxu0 %v5998
    %6138 = vmatprep.subr.bf16.mxu0 0
    %6139 = vmatpush1.bf16.msra.mxu0 %v5999
    %6140 = vmatprep.subr.bf16.mxu0 0
    %6141 = vmatpush1.bf16.msra.mxu0 %v6000
    %6142 = vmatprep.subr.bf16.mxu0 0
    %6143 = vmatpush1.bf16.msra.mxu0 %v6001
    %6144 = vmatprep.subr.bf16.mxu0 0
    %6145 = vmatpush1.bf16.msra.mxu0 %v6002
    %6146 = vmatprep.subr.bf16.mxu0 0
    %6147 = vmatpush1.bf16.msra.mxu0 %v6003
    %6148 = vmatprep.mubr.bf16.mxu0 %v5590
    %6149 = vmatmul.mubr.bf16.gmra.mrb[0].mxu0 %v5589
    %v6150 = vpop.f32.mrb[0].mxu0
    %v6151 = vadd.f32 %v5730, %v6150
    %v6152 = vpop.f32.mrb[0].mxu0
    %v6153 = vpop.f32.mrb[0].mxu0
    %v6154 = vadd.f32 %v5730, %v6153
    %v6155 = vpop.f32.mrb[0].mxu0
    %6156 = vdwg.mxu0
    %6157 = vmatprep.subr.bf16.mxu0 0
    %6158 = vmatpush1.bf16.msra.mxu0 %v6004
    %6159 = vmatprep.subr.bf16.mxu0 0
    %6160 = vmatpush1.bf16.msra.mxu0 %v6005
    %6161 = vmatprep.subr.bf16.mxu0 0
    %6162 = vmatpush1.bf16.msra.mxu0 %v6006
    %6163 = vmatprep.subr.bf16.mxu0 0
    %6164 = vmatpush1.bf16.msra.mxu0 %v6007
    %6165 = vmatprep.subr.bf16.mxu0 0
    %6166 = vmatpush1.bf16.msra.mxu0 %v6008
    %6167 = vmatprep.subr.bf16.mxu0 0
    %6168 = vmatpush1.bf16.msra.mxu0 %v6009
    %6169 = vmatprep.subr.bf16.mxu0 0
    %6170 = vmatpush1.bf16.msra.mxu0 %v6010
    %6171 = vmatprep.subr.bf16.mxu0 0
    %6172 = vmatpush1.bf16.msra.mxu0 %v6011
    %6173 = vmatprep.subr.bf16.mxu0 0
    %6174 = vmatpush1.bf16.msra.mxu0 %v6012
    %6175 = vmatprep.subr.bf16.mxu0 0
    %6176 = vmatpush1.bf16.msra.mxu0 %v6013
    %6177 = vmatprep.subr.bf16.mxu0 0
    %6178 = vmatpush1.bf16.msra.mxu0 %v6014
    %6179 = vmatprep.subr.bf16.mxu0 0
    %6180 = vmatpush1.bf16.msra.mxu0 %v6015
    %6181 = vmatprep.subr.bf16.mxu0 0
    %6182 = vmatpush1.bf16.msra.mxu0 %v6016
    %6183 = vmatprep.subr.bf16.mxu0 0
    %6184 = vmatpush1.bf16.msra.mxu0 %v6017
    %6185 = vmatprep.subr.bf16.mxu0 0
    %6186 = vmatpush1.bf16.msra.mxu0 %v6018
    %6187 = vmatprep.subr.bf16.mxu0 0
    %6188 = vmatpush1.bf16.msra.mxu0 %v6019
    %6189 = vmatprep.mubr.bf16.mxu0 %v5592
    %6190 = vmatmul.mubr.bf16.gmra.mrb[0].mxu0 %v5591
    %v6191 = vpop.f32.mrb[0].mxu0
    %v6192 = vadd.f32 %v6151, %v6191
    %v6193 = vpop.f32.mrb[0].mxu0
    %v6194 = vpop.f32.mrb[0].mxu0
    %v6195 = vadd.f32 %v6154, %v6194
    %v6196 = vpop.f32.mrb[0].mxu0
    %6197 = vdwg.mxu0
    %6198 = vmatprep.subr.bf16.mxu0 0
    %6199 = vmatpush1.bf16.msra.mxu0 %v6020
    %6200 = vmatprep.subr.bf16.mxu0 0
    %6201 = vmatpush1.bf16.msra.mxu0 %v6021
    %6202 = vmatprep.subr.bf16.mxu0 0
    %6203 = vmatpush1.bf16.msra.mxu0 %v6022
    %6204 = vmatprep.subr.bf16.mxu0 0
    %6205 = vmatpush1.bf16.msra.mxu0 %v6023
    %6206 = vmatprep.subr.bf16.mxu0 0
    %6207 = vmatpush1.bf16.msra.mxu0 %v6024
    %6208 = vmatprep.subr.bf16.mxu0 0
    %6209 = vmatpush1.bf16.msra.mxu0 %v6025
    %6210 = vmatprep.subr.bf16.mxu0 0
    %6211 = vmatpush1.bf16.msra.mxu0 %v6026
    %6212 = vmatprep.subr.bf16.mxu0 0
    %6213 = vmatpush1.bf16.msra.mxu0 %v6027
    %6214 = vmatprep.subr.bf16.mxu0 0
    %6215 = vmatpush1.bf16.msra.mxu0 %v6028
    %6216 = vmatprep.subr.bf16.mxu0 0
    %6217 = vmatpush1.bf16.msra.mxu0 %v6029
    %6218 = vmatprep.subr.bf16.mxu0 0
    %6219 = vmatpush1.bf16.msra.mxu0 %v6030
    %6220 = vmatprep.subr.bf16.mxu0 0
    %6221 = vmatpush1.bf16.msra.mxu0 %v6031
    %6222 = vmatprep.subr.bf16.mxu0 0
    %6223 = vmatpush1.bf16.msra.mxu0 %v6032
    %6224 = vmatprep.subr.bf16.mxu0 0
    %6225 = vmatpush1.bf16.msra.mxu0 %v6033
    %6226 = vmatprep.subr.bf16.mxu0 0
    %6227 = vmatpush1.bf16.msra.mxu0 %v6034
    %6228 = vmatprep.subr.bf16.mxu0 0
    %6229 = vmatpush1.bf16.msra.mxu0 %v6035
    %6230 = vmatprep.mubr.bf16.mxu0 %v5594
    %6231 = vmatmul.mubr.bf16.gmra.mrb[0].mxu0 %v5593
    %v6232 = vpop.f32.mrb[0].mxu0
    %v6233 = vadd.f32 %v6192, %v6232
    %v6234 = vpop.f32.mrb[0].mxu0
    %v6235 = vpop.f32.mrb[0].mxu0
    %v6236 = vadd.f32 %v6195, %v6235
    %v6237 = vpop.f32.mrb[0].mxu0
    %6238 = vdwg.mxu0
    %6239 = vmatprep.subr.bf16.mxu0 0
    %6240 = vmatpush1.bf16.msra.mxu0 %v6036
    %6241 = vmatprep.subr.bf16.mxu0 0
    %6242 = vmatpush1.bf16.msra.mxu0 %v6037
    %6243 = vmatprep.subr.bf16.mxu0 0
    %6244 = vmatpush1.bf16.msra.mxu0 %v6038
    %6245 = vmatprep.subr.bf16.mxu0 0
    %6246 = vmatpush1.bf16.msra.mxu0 %v6039
    %6247 = vmatprep.subr.bf16.mxu0 0
    %6248 = vmatpush1.bf16.msra.mxu0 %v6040
    %6249 = vmatprep.subr.bf16.mxu0 0
    %6250 = vmatpush1.bf16.msra.mxu0 %v6041
    %6251 = vmatprep.subr.bf16.mxu0 0
    %6252 = vmatpush1.bf16.msra.mxu0 %v6042
    %6253 = vmatprep.subr.bf16.mxu0 0
    %6254 = vmatpush1.bf16.msra.mxu0 %v6043
    %6255 = vmatprep.subr.bf16.mxu0 0
    %6256 = vmatpush1.bf16.msra.mxu0 %v6044
    %6257 = vmatprep.subr.bf16.mxu0 0
    %6258 = vmatpush1.bf16.msra.mxu0 %v6045
    %6259 = vmatprep.subr.bf16.mxu0 0
    %6260 = vmatpush1.bf16.msra.mxu0 %v6046
    %6261 = vmatprep.subr.bf16.mxu0 0
    %6262 = vmatpush1.bf16.msra.mxu0 %v6047
    %6263 = vmatprep.subr.bf16.mxu0 0
    %6264 = vmatpush1.bf16.msra.mxu0 %v6048
    %6265 = vmatprep.subr.bf16.mxu0 0
    %6266 = vmatpush1.bf16.msra.mxu0 %v6049
    %6267 = vmatprep.subr.bf16.mxu0 0
    %6268 = vmatpush1.bf16.msra.mxu0 %v6050
    %6269 = vmatprep.subr.bf16.mxu0 0
    %6270 = vmatpush1.bf16.msra.mxu0 %v6051
    %6271 = vmatprep.mubr.bf16.mxu0 %v5596
    %6272 = vmatmul.mubr.bf16.gmra.mrb[0].mxu0 %v5595
    %v6273 = vpop.f32.mrb[0].mxu0
    %v6274 = vadd.f32 %v6233, %v6273
    %v6275 = vpop.f32.mrb[0].mxu0
    %v6276 = vpop.f32.mrb[0].mxu0
    %v6277 = vadd.f32 %v6236, %v6276
    %v6278 = vpop.f32.mrb[0].mxu0
    %6279 = vdwg.mxu0
    %6280 = vst [vmem:[#allocation14] sm:$0xff] %v6274
    %6281 = vst [vmem:[#allocation14 + $0x8] sm:$0xff] %v6277
    // Predicated region
    $region74: #{tpu_custom_call.1} parent=1 // pred_check
      _
    $region75: #{tpu_custom_call.1} parent=1 // pred_check_branch
      %6283 = sbr.rel (0) target = $region77
    $region76: #{tpu_custom_call.1} parent=1 // pred_region
      %s6285 = ssub.s32 256, 256
      %6286 = vsyncadd [#allocation4], %s6285
      %s6287 = sshll.u32 [#allocation14], 4
      %s6288 = int_to_ptr.vmem [resolvable:$true] %s6287
      %6293 = dma.vmem_to_hbm [thread:$0]  %s6288, 256, %s11, [#allocation4], 128, 128, 8
    $region77: #{tpu_custom_call.1} parent=1 // pred_fallthru
      _
    // Predicated region
    $region78: #{tpu_custom_call.1} parent=1 // pred_check
      _
    $region79: #{tpu_custom_call.1} parent=1 // pred_check_branch
      %6295 = sbr.rel (0) target = $region81
    $region80: #{tpu_custom_call.1} parent=1 // pred_region
      %6296 = dma.done [#allocation4], 256
    $region81: #{tpu_custom_call.1} parent=1 // pred_fallthru
      _
    %6297 = vsyncpa [#allocation3], 1
    %6298 = vsyncpa [#allocation6], 1
    %6299 = vsyncpa [#allocation9], 1
    %6300 = vsyncpa [#allocation12], 1
    %6301 = vsyncpa [#allocation4], 1

</llo_original>
